<compile_context>
chip_gen: v7x
topology: tpu7x:2x2x1
jax: 0.10.0
libtpu: 0.0.40
codegen_flags: <defaults>
</compile_context>

<pallas_src>
from functools import partial

import jax
import jax.numpy as jnp
from jax.experimental import pallas as pl
from jax.experimental.pallas import tpu as pltpu


# --------------------------------------------------------------------------
# Fused kernel: one grid step per block of Bn images.
#   patches_ref : (Bn, H*W, 9*Cin)  im2col patches (VMEM)
#   wmat_ref    : (9*Cin, Cout)     reshaped conv weight (VMEM, grid-invariant)
#   cbias_ref   : (1, Cout)         conv bias
#   w1/b1/w2/b2 : channel-attention MLP (VMEM, grid-invariant)
#   wrow_ref    : (K*K, Wp+W)       per-tap lane-weight rows for the packed
#                                   [avg | max] spatial-attention plane
#   sab_ref     : (1, 1) SMEM       spatial-attention bias (scalar)
#   o_ref       : (Bn, Cout, H*W)   lane-dense output
#   plane_scr   : (H+K-1, 2*(W+K-1)) staging buffer for the packed plane
# --------------------------------------------------------------------------
def cbam_conv_kernel(patches_ref, wmat_ref, cbias_ref,
                     w1_ref, b1_ref, w2_ref, b2_ref,
                     wrow_ref, sab_ref,
                     o_ref, plane_scr, *, Bn, H, W, C, K):
    P = K // 2
    HW = H * W
    Wp = W + 2 * P               # padded plane width
    SW = Wp + W                  # per-tap packed slice width ([avg .. | max])

    # ---- main 3x3 conv: ONE stacked im2col matmul on the MXU ----
    # (bf16 operands would pay off here once Cin/Cout are scaled up.)
    kkc = patches_ref.shape[-1]
    pm = patches_ref[...].reshape(Bn * HW, kkc)
    y = jnp.dot(pm, wmat_ref[...],
                preferred_element_type=jnp.float32) + cbias_ref[...]    # (Bn*HW, C)

    # ---- channel attention: per-image avg/max pool -> shared MLP -> sigmoid ----
    pooled_rows = (
        [jnp.mean(y[b * HW:(b + 1) * HW, :], axis=0, keepdims=True) for b in range(Bn)]
        + [jnp.max(y[b * HW:(b + 1) * HW, :], axis=0, keepdims=True) for b in range(Bn)])
    pooled = jnp.concatenate(pooled_rows, axis=0)                        # (2*Bn, C)
    h = jnp.maximum(
        jnp.dot(pooled, w1_ref[...], preferred_element_type=jnp.float32)
        + b1_ref[...], 0.0)                                              # (2*Bn, Cr)
    z = jnp.dot(h, w2_ref[...], preferred_element_type=jnp.float32) \
        + b2_ref[...]                                                    # (2*Bn, C)
    # sigmoid(mlp(avg) + mlp(max)) -- matches the PyTorch ChannelAttention
    # (second-layer bias contributes twice, exactly as in the reference).
    ca = jax.nn.sigmoid(z[:Bn] + z[Bn:])                                 # (Bn, C)

    wr = wrow_ref[...]                                                   # (K*K, SW)
    sab = sab_ref[0, 0]

    # identity-pad matrix so the final XLU transpose runs on an (8,128)-aligned
    # tile (channel dim lane-padded up to a multiple of 128 via a tiny matmul).
    Cp = -(-C // 128) * 128
    if Cp != C:
        ipad = (jax.lax.broadcasted_iota(jnp.int32, (C, Cp), 0)
                == jax.lax.broadcasted_iota(jnp.int32, (C, Cp), 1)
                ).astype(jnp.float32)

    for b in range(Bn):
        yb = y[b * HW:(b + 1) * HW, :] * ca[b:b + 1, :]                  # (HW, C)
        y3 = yb.reshape(H, W, C)

        # ---- spatial attention: channel mean/max -> 7x7 conv -> sigmoid ----
        avg_p = jnp.mean(y3, axis=2)                                     # (H, W)
        max_p = jnp.max(y3, axis=2)                                      # (H, W)

        # assemble the zero-padded, lane-packed [avg | max] plane once per image
        # (3 small stores + 1 load; the 49-tap loop below runs on vreg values).
        plane_scr[...] = jnp.zeros_like(plane_scr)
        plane_scr[P:P + H, P:P + W] = avg_p
        plane_scr[P:P + H, Wp + P:Wp + P + W] = max_p
        zp = plane_scr[...]                                              # (Hp, 2*Wp)

        # 49 taps, each covering BOTH planes: one slice + one weight-row mul + add.
        acc = jnp.zeros((H, SW), dtype=jnp.float32)
        for kh in range(K):
            slab = zp[kh:kh + H, :]                                      # (H, 2*Wp)
            for kw in range(K):
                t = kh * K + kw
                acc = acc + slab[:, kw:kw + SW] * wr[t:t + 1, :]
        sa = jax.nn.sigmoid(acc[:, 0:W] + acc[:, Wp:Wp + W] + sab)       # (H, W)

        # ---- epilogue: apply sa, transpose to (C, HW), lane-dense store ----
        scaled = (y3 * sa[:, :, None]).reshape(HW, C)
        if Cp != C:
            scaled = jnp.dot(scaled, ipad, preferred_element_type=jnp.float32)
        o_ref[b] = jnp.transpose(scaled)[:C, :].astype(o_ref.dtype)      # (C, HW)


def _pick_bn(n):
    # batch Bn images per grid step, but keep >= 2 grid steps so both
    # TensorCores on v7x still receive work.
    for bn in (8, 4, 2):
        if n % bn == 0 and n // bn >= 2:
            return bn
    return 1


# --------------------------------------------------------------------------
# Wrapper: NCHW -> NHWC, im2col in XLA, single fused pallas_call, reshape back.
# --------------------------------------------------------------------------
def cbam_conv2d(x_nchw, p):
    N, Cin, H, W = x_nchw.shape
    KH, KW, _, Cout = p["conv_w"].shape
    Cr = p["ca_w1"].shape[-1]
    KSA = p["sa_w"].shape[0]
    PH, PW = KH // 2, KW // 2
    PS = KSA // 2
    Wp = W + 2 * PS
    SW = Wp + W
    Bn = _pick_bn(N)

    x = jnp.transpose(x_nchw, (0, 2, 3, 1))                              # NHWC
    xp = jnp.pad(x, ((0, 0), (PH, PH), (PW, PW), (0, 0)))

    # im2col: per-pixel (kh, kw, cin) patch vector, matching
    # conv_w.reshape(KH*KW*Cin, Cout).
    # TODO(synk): at production H*W*Cin, form the patches inside the kernel from
    # a padded image block instead (this materialization costs 9x activation
    # HBM traffic; negligible at 16x16x4).
    taps = [xp[:, kh:kh + H, kw:kw + W, :]
            for kh in range(KH) for kw in range(KW)]
    patches = jnp.concatenate(taps, axis=-1).reshape(N, H * W, KH * KW * Cin)
    wmat = p["conv_w"].reshape(KH * KW * Cin, Cout)

    # per-tap lane-weight rows for the packed spatial-attention conv:
    # lanes [0, W) carry the avg-plane weight, lanes [Wp, Wp+W) the max-plane
    # weight, everything else 0 (those acc lanes are never read).
    w_avg = p["sa_w"][:, :, 0].reshape(KSA * KSA, 1)
    w_max = p["sa_w"][:, :, 1].reshape(KSA * KSA, 1)
    lane = jnp.arange(SW)[None, :]
    wrow = (jnp.where(lane < W, w_avg, 0.0)
            + jnp.where((lane >= Wp) & (lane < Wp + W), w_max, 0.0)
            ).astype(jnp.float32)                                        # (K*K, SW)

    # VMEM budget: raise the scoped limit only when the per-step footprint needs
    # it (v7x: 64 MiB physical / 32 MiB default scoped, vs 128 MiB on v5e/v6e).
    kkc = KH * KW * Cin
    step_vmem = 4 * (2 * Bn * H * W * kkc                 # patches (double-buffered)
                     + 2 * Bn * Cout * H * W              # output (double-buffered)
                     + 2 * (kkc * Cout + 2 * Cout + Cout * Cr + Cr + Cr * Cout
                            + KSA * KSA * SW)
                     + (H + KSA - 1) * 2 * Wp)
    cp = dict(dimension_semantics=("parallel",))          # megacore on v7x
    if step_vmem > (24 << 20):
        # TODO(synk): switch to H-row halo tiling here instead of only raising
        # the limit.
        cp["vmem_limit_bytes"] = int(min(2 * step_vmem, 96 << 20))

    out = pl.pallas_call(
        partial(cbam_conv_kernel, Bn=Bn, H=H, W=W, C=Cout, K=KSA),
        out_shape=jax.ShapeDtypeStruct((N, Cout, H * W), jnp.float32),
        grid=(N // Bn,),
        in_specs=[
            pl.BlockSpec((Bn, H * W, kkc), lambda n: (n, 0, 0)),
            # grid-invariant weights (same block every step); pl.Buffered(1)
            # single-buffering only pays off once Cin/Cout grow, skipped here.
            pl.BlockSpec((kkc, Cout), lambda n: (0, 0)),
            pl.BlockSpec((1, Cout), lambda n: (0, 0)),
            pl.BlockSpec((Cout, Cr), lambda n: (0, 0)),
            pl.BlockSpec((1, Cr), lambda n: (0, 0)),
            pl.BlockSpec((Cr, Cout), lambda n: (0, 0)),
            pl.BlockSpec((1, Cout), lambda n: (0, 0)),
            pl.BlockSpec((KSA * KSA, SW), lambda n: (0, 0)),
            pl.BlockSpec(memory_space=pltpu.MemorySpace.SMEM),           # sa bias
        ],
        out_specs=pl.BlockSpec((Bn, Cout, H * W), lambda n: (n, 0, 0)),
        scratch_shapes=[
            pltpu.VMEM((H + KSA - 1, 2 * Wp), jnp.float32),              # packed plane
        ],
        compiler_params=pltpu.CompilerParams(**cp),
    )(patches, wmat, p["conv_b"], p["ca_w1"], p["ca_b1"],
      p["ca_w2"], p["ca_b2"], wrow, p["sa_b"])

    return out.reshape(N, Cout, H, W)                                    # NCHW


# --------------------------------------------------------------------------
# Pure-JAX reference (same math, XLA convs) for correctness checking.
# --------------------------------------------------------------------------
def reference(x_nchw, p):
    dn = ("NHWC", "HWIO", "NHWC")
    x = jnp.transpose(x_nchw, (0, 2, 3, 1))
    y = jax.lax.conv_general_dilated(
        x, p["conv_w"], (1, 1), ((1, 1), (1, 1)),
        dimension_numbers=dn) + p["conv_b"][0]

    avg = jnp.mean(y, axis=(1, 2), keepdims=True)
    mx = jnp.max(y, axis=(1, 2), keepdims=True)

    def mlp(v):
        h = jnp.maximum(
            jnp.einsum("nijc,cr->nijr", v, p["ca_w1"]) + p["ca_b1"][0], 0.0)
        return jnp.einsum("nijr,rc->nijc", h, p["ca_w2"]) + p["ca_b2"][0]

    ca = jax.nn.sigmoid(mlp(avg) + mlp(mx))
    y = y * ca

    sp = jnp.concatenate([jnp.mean(y, axis=3, keepdims=True),
                          jnp.max(y, axis=3, keepdims=True)], axis=3)
    sa = jax.lax.conv_general_dilated(
        sp, p["sa_w"][..., None], (1, 1), ((3, 3), (3, 3)),
        dimension_numbers=dn) + p["sa_b"][0, 0]
    y = y * jax.nn.sigmoid(sa)
    return jnp.transpose(y, (0, 3, 1, 2))


# --------------------------------------------------------------------------
def make_params(key, cin, cout, ratio, k_main=3, k_sa=7):
    cr = cout // ratio
    ks = jax.random.split(key, 8)
    s = 0.1
    return {
        # main conv: HWIO
        "conv_w": s * jax.random.normal(ks[0], (k_main, k_main, cin, cout), jnp.float32),
        "conv_b": s * jax.random.normal(ks[1], (1, cout), jnp.float32),
        # channel-attention MLP (1x1 convs as dense)
        "ca_w1": s * jax.random.normal(ks[2], (cout, cr), jnp.float32),
        "ca_b1": s * jax.random.normal(ks[3], (1, cr), jnp.float32),
        "ca_w2": s * jax.random.normal(ks[4], (cr, cout), jnp.float32),
        "ca_b2": s * jax.random.normal(ks[5], (1, cout), jnp.float32),
        # spatial-attention 7x7 conv (2 -> 1): HWI (O squeezed), I = [avg, max]
        "sa_w": s * jax.random.normal(ks[6], (k_sa, k_sa, 2), jnp.float32),
        "sa_b": s * jax.random.normal(ks[7], (1, 1), jnp.float32),
    }


if __name__ == "__main__":
    key = jax.random.PRNGKey(0)
    kx, kp = jax.random.split(key)

    N, Cin, H, W = 2, 4, 16, 16
    Cout, ratio = 32, 16

    x = jax.random.normal(kx, (N, Cin, H, W), jnp.float32)    # NCHW like PyTorch
    params = make_params(kp, Cin, Cout, ratio)

    out = cbam_conv2d(x, params)
    out = jax.block_until_ready(out)

    ref = jax.block_until_ready(reference(x, params))
    assert out.shape == (N, Cout, H, W)
    assert jnp.allclose(out, ref, atol=2e-3, rtol=2e-3), "mismatch vs reference"

    print("KERNEL_OK")
</pallas_src>

<mosaic_0001>
module attributes {stable_mosaic.version = 11 : i64} {
  func.func @cbam_conv_kernel(%arg0: i32, %arg1: memref<1x256x36xf32, #tpu.memory_space<vmem>>, %arg2: memref<36x32xf32, #tpu.memory_space<vmem>>, %arg3: memref<1x32xf32, #tpu.memory_space<vmem>>, %arg4: memref<32x2xf32, #tpu.memory_space<vmem>>, %arg5: memref<1x2xf32, #tpu.memory_space<vmem>>, %arg6: memref<2x32xf32, #tpu.memory_space<vmem>>, %arg7: memref<1x32xf32, #tpu.memory_space<vmem>>, %arg8: memref<49x38xf32, #tpu.memory_space<vmem>>, %arg9: memref<1x1xf32, #tpu.memory_space<smem>>, %arg10: memref<1x32x256xf32, #tpu.memory_space<vmem>>, %arg11: memref<22x44xf32, #tpu.memory_space<vmem>>) attributes {dimension_semantics = [#tpu.dimension_semantics<parallel>], iteration_bounds = array<i64: 2>, scalar_prefetch = 0 : i64, scratch_operands = 1 : i64, tpu.core_type = #tpu.core_type<tc>, window_params = [{transform_indices = @transform_0, window_bounds = array<i64: 1, 256, 36>}, {pipeline_mode = #tpu.pipeline_mode<synchronous>, transform_indices = @transform_1, window_bounds = array<i64: 36, 32>}, {pipeline_mode = #tpu.pipeline_mode<synchronous>, transform_indices = @transform_2, window_bounds = array<i64: 1, 32>}, {pipeline_mode = #tpu.pipeline_mode<synchronous>, transform_indices = @transform_3, window_bounds = array<i64: 32, 2>}, {pipeline_mode = #tpu.pipeline_mode<synchronous>, transform_indices = @transform_4, window_bounds = array<i64: 1, 2>}, {pipeline_mode = #tpu.pipeline_mode<synchronous>, transform_indices = @transform_5, window_bounds = array<i64: 2, 32>}, {pipeline_mode = #tpu.pipeline_mode<synchronous>, transform_indices = @transform_6, window_bounds = array<i64: 1, 32>}, {pipeline_mode = #tpu.pipeline_mode<synchronous>, transform_indices = @transform_7, window_bounds = array<i64: 49, 38>}, {transform_indices = @transform_8, window_bounds = array<i64: 1, 1>}, {transform_indices = @transform_9, window_bounds = array<i64: 1, 32, 256>}]} {
    %c0 = arith.constant 0 : index
    %c0_0 = arith.constant 0 : index
    %c0_1 = arith.constant 0 : index
    %0 = vector.load %arg1[%c0, %c0_0, %c0_1] : memref<1x256x36xf32, #tpu.memory_space<vmem>>, vector<1x256x36xf32>
    %1 = vector.shape_cast %0 : vector<1x256x36xf32> to vector<256x36xf32>
    %c0_2 = arith.constant 0 : index
    %c0_3 = arith.constant 0 : index
    %2 = vector.load %arg2[%c0_2, %c0_3] : memref<36x32xf32, #tpu.memory_space<vmem>>, vector<36x32xf32>
    %cst = arith.constant dense<0.000000e+00> : vector<256x32xf32>
    %3 = tpu.matmul %1, %2, %cst {dimension_numbers = #tpu.dot_dimension_numbers<[1], [0], [0], [1], [0, 0, 1, 1], [], []>} : vector<256x36xf32>, vector<36x32xf32>, vector<256x32xf32> -> vector<256x32xf32>
    %c0_4 = arith.constant 0 : index
    %c0_5 = arith.constant 0 : index
    %4 = vector.load %arg3[%c0_4, %c0_5] : memref<1x32xf32, #tpu.memory_space<vmem>>, vector<1x32xf32>
    %5 = vector.broadcast %4 : vector<1x32xf32> to vector<256x32xf32>
    %6 = arith.addf %3, %5 : vector<256x32xf32>
    %cst_6 = arith.constant dense<0.000000e+00> : vector<32xf32>
    %7 = vector.multi_reduction <add>, %6, %cst_6 [0] : vector<256x32xf32> to vector<32xf32>
    %8 = vector.shape_cast %7 : vector<32xf32> to vector<1x32xf32>
    %cst_7 = arith.constant 2.560000e+02 : f32
    %9 = vector.broadcast %cst_7 : f32 to vector<1x32xf32>
    %10 = arith.divf %8, %9 : vector<1x32xf32>
    %cst_8 = arith.constant dense<0xFF800000> : vector<32xf32>
    %11 = vector.multi_reduction <maximumf>, %6, %cst_8 [0] : vector<256x32xf32> to vector<32xf32>
    %12 = vector.shape_cast %11 : vector<32xf32> to vector<1x32xf32>
    %13 = tpu.concatenate %10, %12 in 0 : vector<1x32xf32>, vector<1x32xf32> -> vector<2x32xf32>
    %c0_9 = arith.constant 0 : index
    %c0_10 = arith.constant 0 : index
    %14 = vector.load %arg4[%c0_9, %c0_10] : memref<32x2xf32, #tpu.memory_space<vmem>>, vector<32x2xf32>
    %cst_11 = arith.constant dense<0.000000e+00> : vector<2x2xf32>
    %15 = tpu.matmul %13, %14, %cst_11 {dimension_numbers = #tpu.dot_dimension_numbers<[1], [0], [0], [1], [0, 0, 1, 1], [], []>} : vector<2x32xf32>, vector<32x2xf32>, vector<2x2xf32> -> vector<2x2xf32>
    %c0_12 = arith.constant 0 : index
    %c0_13 = arith.constant 0 : index
    %16 = vector.load %arg5[%c0_12, %c0_13] : memref<1x2xf32, #tpu.memory_space<vmem>>, vector<1x2xf32>
    %17 = vector.broadcast %16 : vector<1x2xf32> to vector<2x2xf32>
    %18 = arith.addf %15, %17 : vector<2x2xf32>
    %cst_14 = arith.constant 0.000000e+00 : f32
    %19 = vector.broadcast %cst_14 : f32 to vector<2x2xf32>
    %20 = arith.maximumf %18, %19 : vector<2x2xf32>
    %c0_15 = arith.constant 0 : index
    %c0_16 = arith.constant 0 : index
    %21 = vector.load %arg6[%c0_15, %c0_16] : memref<2x32xf32, #tpu.memory_space<vmem>>, vector<2x32xf32>
    %cst_17 = arith.constant dense<0.000000e+00> : vector<2x32xf32>
    %22 = tpu.matmul %20, %21, %cst_17 {dimension_numbers = #tpu.dot_dimension_numbers<[1], [0], [0], [1], [0, 0, 1, 1], [], []>} : vector<2x2xf32>, vector<2x32xf32>, vector<2x32xf32> -> vector<2x32xf32>
    %c0_18 = arith.constant 0 : index
    %c0_19 = arith.constant 0 : index
    %23 = vector.load %arg7[%c0_18, %c0_19] : memref<1x32xf32, #tpu.memory_space<vmem>>, vector<1x32xf32>
    %24 = vector.broadcast %23 : vector<1x32xf32> to vector<2x32xf32>
    %25 = arith.addf %22, %24 : vector<2x32xf32>
    %26 = vector.extract_strided_slice %25 {offsets = [0, 0], sizes = [1, 32], strides = [1, 1]} : vector<2x32xf32> to vector<1x32xf32>
    %27 = vector.extract_strided_slice %25 {offsets = [1, 0], sizes = [1, 32], strides = [1, 1]} : vector<2x32xf32> to vector<1x32xf32>
    %28 = arith.addf %26, %27 : vector<1x32xf32>
    %29 = arith.negf %28 : vector<1x32xf32>
    %30 = math.exp %29 : vector<1x32xf32>
    %cst_20 = arith.constant 1.000000e+00 : f32
    %31 = vector.broadcast %cst_20 : f32 to vector<1x32xf32>
    %32 = arith.addf %31, %30 : vector<1x32xf32>
    %33 = arith.divf %31, %32 : vector<1x32xf32>
    %c0_21 = arith.constant 0 : index
    %c0_22 = arith.constant 0 : index
    %34 = vector.load %arg8[%c0_21, %c0_22] : memref<49x38xf32, #tpu.memory_space<vmem>>, vector<49x38xf32>
    %c0_23 = arith.constant 0 : index
    %c0_24 = arith.constant 0 : index
    %35 = memref.load %arg9[%c0_23, %c0_24] : memref<1x1xf32, #tpu.memory_space<smem>>
    %36 = tpu.iota {dimensions = array<i32: 0>} : vector<32x128xi32>
    %37 = tpu.iota {dimensions = array<i32: 1>} : vector<32x128xi32>
    %38 = arith.cmpi eq, %36, %37 : vector<32x128xi32>
    %39 = arith.extui %38 : vector<32x128xi1> to vector<32x128xi32>
    %40 = arith.sitofp %39 : vector<32x128xi32> to vector<32x128xf32>
    %41 = vector.broadcast %33 : vector<1x32xf32> to vector<256x32xf32>
    %42 = arith.mulf %6, %41 : vector<256x32xf32>
    %43 = vector.shape_cast %42 : vector<256x32xf32> to vector<16x16x32xf32>
    %cst_25 = arith.constant dense<0.000000e+00> : vector<16x16xf32>
    %44 = vector.multi_reduction <add>, %43, %cst_25 [2] : vector<16x16x32xf32> to vector<16x16xf32>
    %cst_26 = arith.constant 3.200000e+01 : f32
    %45 = vector.broadcast %cst_26 : f32 to vector<16x16xf32>
    %46 = arith.divf %44, %45 : vector<16x16xf32>
    %cst_27 = arith.constant dense<0xFF800000> : vector<16x16xf32>
    %47 = vector.multi_reduction <maximumf>, %43, %cst_27 [2] : vector<16x16x32xf32> to vector<16x16xf32>
    %cst_28 = arith.constant 0.000000e+00 : f32
    %48 = vector.broadcast %cst_28 : f32 to vector<22x44xf32>
    %c0_29 = arith.constant 0 : index
    %c0_30 = arith.constant 0 : index
    %49 = vector.load %arg11[%c0_29, %c0_30] : memref<22x44xf32, #tpu.memory_space<vmem>>, vector<22x44xf32>
    tpu.vector_store %arg11[%c0_29, %c0_30], %48 {strides = array<i32>} : memref<22x44xf32, #tpu.memory_space<vmem>>, vector<22x44xf32>,
    %c3 = arith.constant 3 : index
    %c3_31 = arith.constant 3 : index
    %50 = vector.load %arg11[%c3, %c3_31] : memref<22x44xf32, #tpu.memory_space<vmem>>, vector<16x16xf32>
    tpu.vector_store %arg11[%c3, %c3_31], %46 {strides = array<i32>} : memref<22x44xf32, #tpu.memory_space<vmem>>, vector<16x16xf32>,
    %c3_32 = arith.constant 3 : index
    %c25 = arith.constant 25 : index
    %51 = vector.load %arg11[%c3_32, %c25] : memref<22x44xf32, #tpu.memory_space<vmem>>, vector<16x16xf32>
    tpu.vector_store %arg11[%c3_32, %c25], %47 {strides = array<i32>} : memref<22x44xf32, #tpu.memory_space<vmem>>, vector<16x16xf32>,
    %c0_33 = arith.constant 0 : index
    %c0_34 = arith.constant 0 : index
    %52 = vector.load %arg11[%c0_33, %c0_34] : memref<22x44xf32, #tpu.memory_space<vmem>>, vector<22x44xf32>
    %cst_35 = arith.constant 0.000000e+00 : f32
    %53 = vector.broadcast %cst_35 : f32 to vector<16x38xf32>
    %54 = vector.extract_strided_slice %52 {offsets = [0, 0], sizes = [16, 44], strides = [1, 1]} : vector<22x44xf32> to vector<16x44xf32>
    %55 = vector.extract_strided_slice %54 {offsets = [0, 0], sizes = [16, 38], strides = [1, 1]} : vector<16x44xf32> to vector<16x38xf32>
    %56 = vector.extract_strided_slice %34 {offsets = [0, 0], sizes = [1, 38], strides = [1, 1]} : vector<49x38xf32> to vector<1x38xf32>
    %57 = vector.broadcast %56 : vector<1x38xf32> to vector<16x38xf32>
    %58 = arith.mulf %55, %57 : vector<16x38xf32>
    %59 = arith.addf %53, %58 : vector<16x38xf32>
    %60 = vector.extract_strided_slice %54 {offsets = [0, 1], sizes = [16, 38], strides = [1, 1]} : vector<16x44xf32> to vector<16x38xf32>
    %61 = vector.extract_strided_slice %34 {offsets = [1, 0], sizes = [1, 38], strides = [1, 1]} : vector<49x38xf32> to vector<1x38xf32>
    %62 = vector.broadcast %61 : vector<1x38xf32> to vector<16x38xf32>
    %63 = arith.mulf %60, %62 : vector<16x38xf32>
    %64 = arith.addf %59, %63 : vector<16x38xf32>
    %65 = vector.extract_strided_slice %54 {offsets = [0, 2], sizes = [16, 38], strides = [1, 1]} : vector<16x44xf32> to vector<16x38xf32>
    %66 = vector.extract_strided_slice %34 {offsets = [2, 0], sizes = [1, 38], strides = [1, 1]} : vector<49x38xf32> to vector<1x38xf32>
    %67 = vector.broadcast %66 : vector<1x38xf32> to vector<16x38xf32>
    %68 = arith.mulf %65, %67 : vector<16x38xf32>
    %69 = arith.addf %64, %68 : vector<16x38xf32>
    %70 = vector.extract_strided_slice %54 {offsets = [0, 3], sizes = [16, 38], strides = [1, 1]} : vector<16x44xf32> to vector<16x38xf32>
    %71 = vector.extract_strided_slice %34 {offsets = [3, 0], sizes = [1, 38], strides = [1, 1]} : vector<49x38xf32> to vector<1x38xf32>
    %72 = vector.broadcast %71 : vector<1x38xf32> to vector<16x38xf32>
    %73 = arith.mulf %70, %72 : vector<16x38xf32>
    %74 = arith.addf %69, %73 : vector<16x38xf32>
    %75 = vector.extract_strided_slice %54 {offsets = [0, 4], sizes = [16, 38], strides = [1, 1]} : vector<16x44xf32> to vector<16x38xf32>
    %76 = vector.extract_strided_slice %34 {offsets = [4, 0], sizes = [1, 38], strides = [1, 1]} : vector<49x38xf32> to vector<1x38xf32>
    %77 = vector.broadcast %76 : vector<1x38xf32> to vector<16x38xf32>
    %78 = arith.mulf %75, %77 : vector<16x38xf32>
    %79 = arith.addf %74, %78 : vector<16x38xf32>
    %80 = vector.extract_strided_slice %54 {offsets = [0, 5], sizes = [16, 38], strides = [1, 1]} : vector<16x44xf32> to vector<16x38xf32>
    %81 = vector.extract_strided_slice %34 {offsets = [5, 0], sizes = [1, 38], strides = [1, 1]} : vector<49x38xf32> to vector<1x38xf32>
    %82 = vector.broadcast %81 : vector<1x38xf32> to vector<16x38xf32>
    %83 = arith.mulf %80, %82 : vector<16x38xf32>
    %84 = arith.addf %79, %83 : vector<16x38xf32>
    %85 = vector.extract_strided_slice %54 {offsets = [0, 6], sizes = [16, 38], strides = [1, 1]} : vector<16x44xf32> to vector<16x38xf32>
    %86 = vector.extract_strided_slice %34 {offsets = [6, 0], sizes = [1, 38], strides = [1, 1]} : vector<49x38xf32> to vector<1x38xf32>
    %87 = vector.broadcast %86 : vector<1x38xf32> to vector<16x38xf32>
    %88 = arith.mulf %85, %87 : vector<16x38xf32>
    %89 = arith.addf %84, %88 : vector<16x38xf32>
    %90 = vector.extract_strided_slice %52 {offsets = [1, 0], sizes = [16, 44], strides = [1, 1]} : vector<22x44xf32> to vector<16x44xf32>
    %91 = vector.extract_strided_slice %90 {offsets = [0, 0], sizes = [16, 38], strides = [1, 1]} : vector<16x44xf32> to vector<16x38xf32>
    %92 = vector.extract_strided_slice %34 {offsets = [7, 0], sizes = [1, 38], strides = [1, 1]} : vector<49x38xf32> to vector<1x38xf32>
    %93 = vector.broadcast %92 : vector<1x38xf32> to vector<16x38xf32>
    %94 = arith.mulf %91, %93 : vector<16x38xf32>
    %95 = arith.addf %89, %94 : vector<16x38xf32>
    %96 = vector.extract_strided_slice %90 {offsets = [0, 1], sizes = [16, 38], strides = [1, 1]} : vector<16x44xf32> to vector<16x38xf32>
    %97 = vector.extract_strided_slice %34 {offsets = [8, 0], sizes = [1, 38], strides = [1, 1]} : vector<49x38xf32> to vector<1x38xf32>
    %98 = vector.broadcast %97 : vector<1x38xf32> to vector<16x38xf32>
    %99 = arith.mulf %96, %98 : vector<16x38xf32>
    %100 = arith.addf %95, %99 : vector<16x38xf32>
    %101 = vector.extract_strided_slice %90 {offsets = [0, 2], sizes = [16, 38], strides = [1, 1]} : vector<16x44xf32> to vector<16x38xf32>
    %102 = vector.extract_strided_slice %34 {offsets = [9, 0], sizes = [1, 38], strides = [1, 1]} : vector<49x38xf32> to vector<1x38xf32>
    %103 = vector.broadcast %102 : vector<1x38xf32> to vector<16x38xf32>
    %104 = arith.mulf %101, %103 : vector<16x38xf32>
    %105 = arith.addf %100, %104 : vector<16x38xf32>
    %106 = vector.extract_strided_slice %90 {offsets = [0, 3], sizes = [16, 38], strides = [1, 1]} : vector<16x44xf32> to vector<16x38xf32>
    %107 = vector.extract_strided_slice %34 {offsets = [10, 0], sizes = [1, 38], strides = [1, 1]} : vector<49x38xf32> to vector<1x38xf32>
    %108 = vector.broadcast %107 : vector<1x38xf32> to vector<16x38xf32>
    %109 = arith.mulf %106, %108 : vector<16x38xf32>
    %110 = arith.addf %105, %109 : vector<16x38xf32>
    %111 = vector.extract_strided_slice %90 {offsets = [0, 4], sizes = [16, 38], strides = [1, 1]} : vector<16x44xf32> to vector<16x38xf32>
    %112 = vector.extract_strided_slice %34 {offsets = [11, 0], sizes = [1, 38], strides = [1, 1]} : vector<49x38xf32> to vector<1x38xf32>
    %113 = vector.broadcast %112 : vector<1x38xf32> to vector<16x38xf32>
    %114 = arith.mulf %111, %113 : vector<16x38xf32>
    %115 = arith.addf %110, %114 : vector<16x38xf32>
    %116 = vector.extract_strided_slice %90 {offsets = [0, 5], sizes = [16, 38], strides = [1, 1]} : vector<16x44xf32> to vector<16x38xf32>
    %117 = vector.extract_strided_slice %34 {offsets = [12, 0], sizes = [1, 38], strides = [1, 1]} : vector<49x38xf32> to vector<1x38xf32>
    %118 = vector.broadcast %117 : vector<1x38xf32> to vector<16x38xf32>
    %119 = arith.mulf %116, %118 : vector<16x38xf32>
    %120 = arith.addf %115, %119 : vector<16x38xf32>
    %121 = vector.extract_strided_slice %90 {offsets = [0, 6], sizes = [16, 38], strides = [1, 1]} : vector<16x44xf32> to vector<16x38xf32>
    %122 = vector.extract_strided_slice %34 {offsets = [13, 0], sizes = [1, 38], strides = [1, 1]} : vector<49x38xf32> to vector<1x38xf32>
    %123 = vector.broadcast %122 : vector<1x38xf32> to vector<16x38xf32>
    %124 = arith.mulf %121, %123 : vector<16x38xf32>
    %125 = arith.addf %120, %124 : vector<16x38xf32>
    %126 = vector.extract_strided_slice %52 {offsets = [2, 0], sizes = [16, 44], strides = [1, 1]} : vector<22x44xf32> to vector<16x44xf32>
    %127 = vector.extract_strided_slice %126 {offsets = [0, 0], sizes = [16, 38], strides = [1, 1]} : vector<16x44xf32> to vector<16x38xf32>
    %128 = vector.extract_strided_slice %34 {offsets = [14, 0], sizes = [1, 38], strides = [1, 1]} : vector<49x38xf32> to vector<1x38xf32>
    %129 = vector.broadcast %128 : vector<1x38xf32> to vector<16x38xf32>
    %130 = arith.mulf %127, %129 : vector<16x38xf32>
    %131 = arith.addf %125, %130 : vector<16x38xf32>
    %132 = vector.extract_strided_slice %126 {offsets = [0, 1], sizes = [16, 38], strides = [1, 1]} : vector<16x44xf32> to vector<16x38xf32>
    %133 = vector.extract_strided_slice %34 {offsets = [15, 0], sizes = [1, 38], strides = [1, 1]} : vector<49x38xf32> to vector<1x38xf32>
    %134 = vector.broadcast %133 : vector<1x38xf32> to vector<16x38xf32>
    %135 = arith.mulf %132, %134 : vector<16x38xf32>
    %136 = arith.addf %131, %135 : vector<16x38xf32>
    %137 = vector.extract_strided_slice %126 {offsets = [0, 2], sizes = [16, 38], strides = [1, 1]} : vector<16x44xf32> to vector<16x38xf32>
    %138 = vector.extract_strided_slice %34 {offsets = [16, 0], sizes = [1, 38], strides = [1, 1]} : vector<49x38xf32> to vector<1x38xf32>
    %139 = vector.broadcast %138 : vector<1x38xf32> to vector<16x38xf32>
    %140 = arith.mulf %137, %139 : vector<16x38xf32>
    %141 = arith.addf %136, %140 : vector<16x38xf32>
    %142 = vector.extract_strided_slice %126 {offsets = [0, 3], sizes = [16, 38], strides = [1, 1]} : vector<16x44xf32> to vector<16x38xf32>
    %143 = vector.extract_strided_slice %34 {offsets = [17, 0], sizes = [1, 38], strides = [1, 1]} : vector<49x38xf32> to vector<1x38xf32>
    %144 = vector.broadcast %143 : vector<1x38xf32> to vector<16x38xf32>
    %145 = arith.mulf %142, %144 : vector<16x38xf32>
    %146 = arith.addf %141, %145 : vector<16x38xf32>
    %147 = vector.extract_strided_slice %126 {offsets = [0, 4], sizes = [16, 38], strides = [1, 1]} : vector<16x44xf32> to vector<16x38xf32>
    %148 = vector.extract_strided_slice %34 {offsets = [18, 0], sizes = [1, 38], strides = [1, 1]} : vector<49x38xf32> to vector<1x38xf32>
    %149 = vector.broadcast %148 : vector<1x38xf32> to vector<16x38xf32>
    %150 = arith.mulf %147, %149 : vector<16x38xf32>
    %151 = arith.addf %146, %150 : vector<16x38xf32>
    %152 = vector.extract_strided_slice %126 {offsets = [0, 5], sizes = [16, 38], strides = [1, 1]} : vector<16x44xf32> to vector<16x38xf32>
    %153 = vector.extract_strided_slice %34 {offsets = [19, 0], sizes = [1, 38], strides = [1, 1]} : vector<49x38xf32> to vector<1x38xf32>
    %154 = vector.broadcast %153 : vector<1x38xf32> to vector<16x38xf32>
    %155 = arith.mulf %152, %154 : vector<16x38xf32>
    %156 = arith.addf %151, %155 : vector<16x38xf32>
    %157 = vector.extract_strided_slice %126 {offsets = [0, 6], sizes = [16, 38], strides = [1, 1]} : vector<16x44xf32> to vector<16x38xf32>
    %158 = vector.extract_strided_slice %34 {offsets = [20, 0], sizes = [1, 38], strides = [1, 1]} : vector<49x38xf32> to vector<1x38xf32>
    %159 = vector.broadcast %158 : vector<1x38xf32> to vector<16x38xf32>
    %160 = arith.mulf %157, %159 : vector<16x38xf32>
    %161 = arith.addf %156, %160 : vector<16x38xf32>
    %162 = vector.extract_strided_slice %52 {offsets = [3, 0], sizes = [16, 44], strides = [1, 1]} : vector<22x44xf32> to vector<16x44xf32>
    %163 = vector.extract_strided_slice %162 {offsets = [0, 0], sizes = [16, 38], strides = [1, 1]} : vector<16x44xf32> to vector<16x38xf32>
    %164 = vector.extract_strided_slice %34 {offsets = [21, 0], sizes = [1, 38], strides = [1, 1]} : vector<49x38xf32> to vector<1x38xf32>
    %165 = vector.broadcast %164 : vector<1x38xf32> to vector<16x38xf32>
    %166 = arith.mulf %163, %165 : vector<16x38xf32>
    %167 = arith.addf %161, %166 : vector<16x38xf32>
    %168 = vector.extract_strided_slice %162 {offsets = [0, 1], sizes = [16, 38], strides = [1, 1]} : vector<16x44xf32> to vector<16x38xf32>
    %169 = vector.extract_strided_slice %34 {offsets = [22, 0], sizes = [1, 38], strides = [1, 1]} : vector<49x38xf32> to vector<1x38xf32>
    %170 = vector.broadcast %169 : vector<1x38xf32> to vector<16x38xf32>
    %171 = arith.mulf %168, %170 : vector<16x38xf32>
    %172 = arith.addf %167, %171 : vector<16x38xf32>
    %173 = vector.extract_strided_slice %162 {offsets = [0, 2], sizes = [16, 38], strides = [1, 1]} : vector<16x44xf32> to vector<16x38xf32>
    %174 = vector.extract_strided_slice %34 {offsets = [23, 0], sizes = [1, 38], strides = [1, 1]} : vector<49x38xf32> to vector<1x38xf32>
    %175 = vector.broadcast %174 : vector<1x38xf32> to vector<16x38xf32>
    %176 = arith.mulf %173, %175 : vector<16x38xf32>
    %177 = arith.addf %172, %176 : vector<16x38xf32>
    %178 = vector.extract_strided_slice %162 {offsets = [0, 3], sizes = [16, 38], strides = [1, 1]} : vector<16x44xf32> to vector<16x38xf32>
    %179 = vector.extract_strided_slice %34 {offsets = [24, 0], sizes = [1, 38], strides = [1, 1]} : vector<49x38xf32> to vector<1x38xf32>
    %180 = vector.broadcast %179 : vector<1x38xf32> to vector<16x38xf32>
    %181 = arith.mulf %178, %180 : vector<16x38xf32>
    %182 = arith.addf %177, %181 : vector<16x38xf32>
    %183 = vector.extract_strided_slice %162 {offsets = [0, 4], sizes = [16, 38], strides = [1, 1]} : vector<16x44xf32> to vector<16x38xf32>
    %184 = vector.extract_strided_slice %34 {offsets = [25, 0], sizes = [1, 38], strides = [1, 1]} : vector<49x38xf32> to vector<1x38xf32>
    %185 = vector.broadcast %184 : vector<1x38xf32> to vector<16x38xf32>
    %186 = arith.mulf %183, %185 : vector<16x38xf32>
    %187 = arith.addf %182, %186 : vector<16x38xf32>
    %188 = vector.extract_strided_slice %162 {offsets = [0, 5], sizes = [16, 38], strides = [1, 1]} : vector<16x44xf32> to vector<16x38xf32>
    %189 = vector.extract_strided_slice %34 {offsets = [26, 0], sizes = [1, 38], strides = [1, 1]} : vector<49x38xf32> to vector<1x38xf32>
    %190 = vector.broadcast %189 : vector<1x38xf32> to vector<16x38xf32>
    %191 = arith.mulf %188, %190 : vector<16x38xf32>
    %192 = arith.addf %187, %191 : vector<16x38xf32>
    %193 = vector.extract_strided_slice %162 {offsets = [0, 6], sizes = [16, 38], strides = [1, 1]} : vector<16x44xf32> to vector<16x38xf32>
    %194 = vector.extract_strided_slice %34 {offsets = [27, 0], sizes = [1, 38], strides = [1, 1]} : vector<49x38xf32> to vector<1x38xf32>
    %195 = vector.broadcast %194 : vector<1x38xf32> to vector<16x38xf32>
    %196 = arith.mulf %193, %195 : vector<16x38xf32>
    %197 = arith.addf %192, %196 : vector<16x38xf32>
    %198 = vector.extract_strided_slice %52 {offsets = [4, 0], sizes = [16, 44], strides = [1, 1]} : vector<22x44xf32> to vector<16x44xf32>
    %199 = vector.extract_strided_slice %198 {offsets = [0, 0], sizes = [16, 38], strides = [1, 1]} : vector<16x44xf32> to vector<16x38xf32>
    %200 = vector.extract_strided_slice %34 {offsets = [28, 0], sizes = [1, 38], strides = [1, 1]} : vector<49x38xf32> to vector<1x38xf32>
    %201 = vector.broadcast %200 : vector<1x38xf32> to vector<16x38xf32>
    %202 = arith.mulf %199, %201 : vector<16x38xf32>
    %203 = arith.addf %197, %202 : vector<16x38xf32>
    %204 = vector.extract_strided_slice %198 {offsets = [0, 1], sizes = [16, 38], strides = [1, 1]} : vector<16x44xf32> to vector<16x38xf32>
    %205 = vector.extract_strided_slice %34 {offsets = [29, 0], sizes = [1, 38], strides = [1, 1]} : vector<49x38xf32> to vector<1x38xf32>
    %206 = vector.broadcast %205 : vector<1x38xf32> to vector<16x38xf32>
    %207 = arith.mulf %204, %206 : vector<16x38xf32>
    %208 = arith.addf %203, %207 : vector<16x38xf32>
    %209 = vector.extract_strided_slice %198 {offsets = [0, 2], sizes = [16, 38], strides = [1, 1]} : vector<16x44xf32> to vector<16x38xf32>
    %210 = vector.extract_strided_slice %34 {offsets = [30, 0], sizes = [1, 38], strides = [1, 1]} : vector<49x38xf32> to vector<1x38xf32>
    %211 = vector.broadcast %210 : vector<1x38xf32> to vector<16x38xf32>
    %212 = arith.mulf %209, %211 : vector<16x38xf32>
    %213 = arith.addf %208, %212 : vector<16x38xf32>
    %214 = vector.extract_strided_slice %198 {offsets = [0, 3], sizes = [16, 38], strides = [1, 1]} : vector<16x44xf32> to vector<16x38xf32>
    %215 = vector.extract_strided_slice %34 {offsets = [31, 0], sizes = [1, 38], strides = [1, 1]} : vector<49x38xf32> to vector<1x38xf32>
    %216 = vector.broadcast %215 : vector<1x38xf32> to vector<16x38xf32>
    %217 = arith.mulf %214, %216 : vector<16x38xf32>
    %218 = arith.addf %213, %217 : vector<16x38xf32>
    %219 = vector.extract_strided_slice %198 {offsets = [0, 4], sizes = [16, 38], strides = [1, 1]} : vector<16x44xf32> to vector<16x38xf32>
    %220 = vector.extract_strided_slice %34 {offsets = [32, 0], sizes = [1, 38], strides = [1, 1]} : vector<49x38xf32> to vector<1x38xf32>
    %221 = vector.broadcast %220 : vector<1x38xf32> to vector<16x38xf32>
    %222 = arith.mulf %219, %221 : vector<16x38xf32>
    %223 = arith.addf %218, %222 : vector<16x38xf32>
    %224 = vector.extract_strided_slice %198 {offsets = [0, 5], sizes = [16, 38], strides = [1, 1]} : vector<16x44xf32> to vector<16x38xf32>
    %225 = vector.extract_strided_slice %34 {offsets = [33, 0], sizes = [1, 38], strides = [1, 1]} : vector<49x38xf32> to vector<1x38xf32>
    %226 = vector.broadcast %225 : vector<1x38xf32> to vector<16x38xf32>
    %227 = arith.mulf %224, %226 : vector<16x38xf32>
    %228 = arith.addf %223, %227 : vector<16x38xf32>
    %229 = vector.extract_strided_slice %198 {offsets = [0, 6], sizes = [16, 38], strides = [1, 1]} : vector<16x44xf32> to vector<16x38xf32>
    %230 = vector.extract_strided_slice %34 {offsets = [34, 0], sizes = [1, 38], strides = [1, 1]} : vector<49x38xf32> to vector<1x38xf32>
    %231 = vector.broadcast %230 : vector<1x38xf32> to vector<16x38xf32>
    %232 = arith.mulf %229, %231 : vector<16x38xf32>
    %233 = arith.addf %228, %232 : vector<16x38xf32>
    %234 = vector.extract_strided_slice %52 {offsets = [5, 0], sizes = [16, 44], strides = [1, 1]} : vector<22x44xf32> to vector<16x44xf32>
    %235 = vector.extract_strided_slice %234 {offsets = [0, 0], sizes = [16, 38], strides = [1, 1]} : vector<16x44xf32> to vector<16x38xf32>
    %236 = vector.extract_strided_slice %34 {offsets = [35, 0], sizes = [1, 38], strides = [1, 1]} : vector<49x38xf32> to vector<1x38xf32>
    %237 = vector.broadcast %236 : vector<1x38xf32> to vector<16x38xf32>
    %238 = arith.mulf %235, %237 : vector<16x38xf32>
    %239 = arith.addf %233, %238 : vector<16x38xf32>
    %240 = vector.extract_strided_slice %234 {offsets = [0, 1], sizes = [16, 38], strides = [1, 1]} : vector<16x44xf32> to vector<16x38xf32>
    %241 = vector.extract_strided_slice %34 {offsets = [36, 0], sizes = [1, 38], strides = [1, 1]} : vector<49x38xf32> to vector<1x38xf32>
    %242 = vector.broadcast %241 : vector<1x38xf32> to vector<16x38xf32>
    %243 = arith.mulf %240, %242 : vector<16x38xf32>
    %244 = arith.addf %239, %243 : vector<16x38xf32>
    %245 = vector.extract_strided_slice %234 {offsets = [0, 2], sizes = [16, 38], strides = [1, 1]} : vector<16x44xf32> to vector<16x38xf32>
    %246 = vector.extract_strided_slice %34 {offsets = [37, 0], sizes = [1, 38], strides = [1, 1]} : vector<49x38xf32> to vector<1x38xf32>
    %247 = vector.broadcast %246 : vector<1x38xf32> to vector<16x38xf32>
    %248 = arith.mulf %245, %247 : vector<16x38xf32>
    %249 = arith.addf %244, %248 : vector<16x38xf32>
    %250 = vector.extract_strided_slice %234 {offsets = [0, 3], sizes = [16, 38], strides = [1, 1]} : vector<16x44xf32> to vector<16x38xf32>
    %251 = vector.extract_strided_slice %34 {offsets = [38, 0], sizes = [1, 38], strides = [1, 1]} : vector<49x38xf32> to vector<1x38xf32>
    %252 = vector.broadcast %251 : vector<1x38xf32> to vector<16x38xf32>
    %253 = arith.mulf %250, %252 : vector<16x38xf32>
    %254 = arith.addf %249, %253 : vector<16x38xf32>
    %255 = vector.extract_strided_slice %234 {offsets = [0, 4], sizes = [16, 38], strides = [1, 1]} : vector<16x44xf32> to vector<16x38xf32>
    %256 = vector.extract_strided_slice %34 {offsets = [39, 0], sizes = [1, 38], strides = [1, 1]} : vector<49x38xf32> to vector<1x38xf32>
    %257 = vector.broadcast %256 : vector<1x38xf32> to vector<16x38xf32>
    %258 = arith.mulf %255, %257 : vector<16x38xf32>
    %259 = arith.addf %254, %258 : vector<16x38xf32>
    %260 = vector.extract_strided_slice %234 {offsets = [0, 5], sizes = [16, 38], strides = [1, 1]} : vector<16x44xf32> to vector<16x38xf32>
    %261 = vector.extract_strided_slice %34 {offsets = [40, 0], sizes = [1, 38], strides = [1, 1]} : vector<49x38xf32> to vector<1x38xf32>
    %262 = vector.broadcast %261 : vector<1x38xf32> to vector<16x38xf32>
    %263 = arith.mulf %260, %262 : vector<16x38xf32>
    %264 = arith.addf %259, %263 : vector<16x38xf32>
    %265 = vector.extract_strided_slice %234 {offsets = [0, 6], sizes = [16, 38], strides = [1, 1]} : vector<16x44xf32> to vector<16x38xf32>
    %266 = vector.extract_strided_slice %34 {offsets = [41, 0], sizes = [1, 38], strides = [1, 1]} : vector<49x38xf32> to vector<1x38xf32>
    %267 = vector.broadcast %266 : vector<1x38xf32> to vector<16x38xf32>
    %268 = arith.mulf %265, %267 : vector<16x38xf32>
    %269 = arith.addf %264, %268 : vector<16x38xf32>
    %270 = vector.extract_strided_slice %52 {offsets = [6, 0], sizes = [16, 44], strides = [1, 1]} : vector<22x44xf32> to vector<16x44xf32>
    %271 = vector.extract_strided_slice %270 {offsets = [0, 0], sizes = [16, 38], strides = [1, 1]} : vector<16x44xf32> to vector<16x38xf32>
    %272 = vector.extract_strided_slice %34 {offsets = [42, 0], sizes = [1, 38], strides = [1, 1]} : vector<49x38xf32> to vector<1x38xf32>
    %273 = vector.broadcast %272 : vector<1x38xf32> to vector<16x38xf32>
    %274 = arith.mulf %271, %273 : vector<16x38xf32>
    %275 = arith.addf %269, %274 : vector<16x38xf32>
    %276 = vector.extract_strided_slice %270 {offsets = [0, 1], sizes = [16, 38], strides = [1, 1]} : vector<16x44xf32> to vector<16x38xf32>
    %277 = vector.extract_strided_slice %34 {offsets = [43, 0], sizes = [1, 38], strides = [1, 1]} : vector<49x38xf32> to vector<1x38xf32>
    %278 = vector.broadcast %277 : vector<1x38xf32> to vector<16x38xf32>
    %279 = arith.mulf %276, %278 : vector<16x38xf32>
    %280 = arith.addf %275, %279 : vector<16x38xf32>
    %281 = vector.extract_strided_slice %270 {offsets = [0, 2], sizes = [16, 38], strides = [1, 1]} : vector<16x44xf32> to vector<16x38xf32>
    %282 = vector.extract_strided_slice %34 {offsets = [44, 0], sizes = [1, 38], strides = [1, 1]} : vector<49x38xf32> to vector<1x38xf32>
    %283 = vector.broadcast %282 : vector<1x38xf32> to vector<16x38xf32>
    %284 = arith.mulf %281, %283 : vector<16x38xf32>
    %285 = arith.addf %280, %284 : vector<16x38xf32>
    %286 = vector.extract_strided_slice %270 {offsets = [0, 3], sizes = [16, 38], strides = [1, 1]} : vector<16x44xf32> to vector<16x38xf32>
    %287 = vector.extract_strided_slice %34 {offsets = [45, 0], sizes = [1, 38], strides = [1, 1]} : vector<49x38xf32> to vector<1x38xf32>
    %288 = vector.broadcast %287 : vector<1x38xf32> to vector<16x38xf32>
    %289 = arith.mulf %286, %288 : vector<16x38xf32>
    %290 = arith.addf %285, %289 : vector<16x38xf32>
    %291 = vector.extract_strided_slice %270 {offsets = [0, 4], sizes = [16, 38], strides = [1, 1]} : vector<16x44xf32> to vector<16x38xf32>
    %292 = vector.extract_strided_slice %34 {offsets = [46, 0], sizes = [1, 38], strides = [1, 1]} : vector<49x38xf32> to vector<1x38xf32>
    %293 = vector.broadcast %292 : vector<1x38xf32> to vector<16x38xf32>
    %294 = arith.mulf %291, %293 : vector<16x38xf32>
    %295 = arith.addf %290, %294 : vector<16x38xf32>
    %296 = vector.extract_strided_slice %270 {offsets = [0, 5], sizes = [16, 38], strides = [1, 1]} : vector<16x44xf32> to vector<16x38xf32>
    %297 = vector.extract_strided_slice %34 {offsets = [47, 0], sizes = [1, 38], strides = [1, 1]} : vector<49x38xf32> to vector<1x38xf32>
    %298 = vector.broadcast %297 : vector<1x38xf32> to vector<16x38xf32>
    %299 = arith.mulf %296, %298 : vector<16x38xf32>
    %300 = arith.addf %295, %299 : vector<16x38xf32>
    %301 = vector.extract_strided_slice %270 {offsets = [0, 6], sizes = [16, 38], strides = [1, 1]} : vector<16x44xf32> to vector<16x38xf32>
    %302 = vector.extract_strided_slice %34 {offsets = [48, 0], sizes = [1, 38], strides = [1, 1]} : vector<49x38xf32> to vector<1x38xf32>
    %303 = vector.broadcast %302 : vector<1x38xf32> to vector<16x38xf32>
    %304 = arith.mulf %301, %303 : vector<16x38xf32>
    %305 = arith.addf %300, %304 : vector<16x38xf32>
    %306 = vector.extract_strided_slice %305 {offsets = [0, 0], sizes = [16, 16], strides = [1, 1]} : vector<16x38xf32> to vector<16x16xf32>
    %307 = vector.extract_strided_slice %305 {offsets = [0, 22], sizes = [16, 16], strides = [1, 1]} : vector<16x38xf32> to vector<16x16xf32>
    %308 = arith.addf %306, %307 : vector<16x16xf32>
    %309 = vector.broadcast %35 : f32 to vector<16x16xf32>
    %310 = arith.addf %308, %309 : vector<16x16xf32>
    %311 = arith.negf %310 : vector<16x16xf32>
    %312 = math.exp %311 : vector<16x16xf32>
    %cst_36 = arith.constant 1.000000e+00 : f32
    %313 = vector.broadcast %cst_36 : f32 to vector<16x16xf32>
    %314 = arith.addf %313, %312 : vector<16x16xf32>
    %315 = arith.divf %313, %314 : vector<16x16xf32>
    %316 = vector.shape_cast %315 : vector<16x16xf32> to vector<16x16x1xf32>
    %317 = vector.broadcast %316 : vector<16x16x1xf32> to vector<16x16x32xf32>
    %318 = arith.mulf %43, %317 : vector<16x16x32xf32>
    %319 = vector.shape_cast %318 : vector<16x16x32xf32> to vector<256x32xf32>
    %cst_37 = arith.constant dense<0.000000e+00> : vector<256x128xf32>
    %320 = tpu.matmul %319, %40, %cst_37 {dimension_numbers = #tpu.dot_dimension_numbers<[1], [0], [0], [1], [0, 0, 1, 1], [], []>} : vector<256x32xf32>, vector<32x128xf32>, vector<256x128xf32> -> vector<256x128xf32>
    %321 = tpu.transpose %320, [1, 0] : vector<256x128xf32> -> vector<128x256xf32>
    %322 = vector.extract_strided_slice %321 {offsets = [0, 0], sizes = [32, 256], strides = [1, 1]} : vector<128x256xf32> to vector<32x256xf32>
    %c0_38 = arith.constant 0 : index
    %c0_39 = arith.constant 0 : index
    %c0_40 = arith.constant 0 : index
    %323 = vector.load %arg10[%c0_38, %c0_39, %c0_40] : memref<1x32x256xf32, #tpu.memory_space<vmem>>, vector<1x32x256xf32>
    %324 = vector.shape_cast %323 : vector<1x32x256xf32> to vector<32x256xf32>
    %325 = vector.shape_cast %322 : vector<32x256xf32> to vector<1x32x256xf32>
    tpu.vector_store %arg10[%c0_38, %c0_39, %c0_40], %325 {strides = array<i32>} : memref<1x32x256xf32, #tpu.memory_space<vmem>>, vector<1x32x256xf32>,
    return
  }
  func.func @transform_0(%arg0: i32) -> (i32, i32, i32) {
    %c0_i32 = arith.constant 0 : i32
    %c0_i32_0 = arith.constant 0 : i32
    %c0_i32_1 = arith.constant 0 : i32
    return %arg0, %c0_i32, %c0_i32_0 : i32, i32, i32
  }
  func.func @transform_1(%arg0: i32) -> (i32, i32) {
    %c0_i32 = arith.constant 0 : i32
    %c0_i32_0 = arith.constant 0 : i32
    %c0_i32_1 = arith.constant 0 : i32
    return %c0_i32, %c0_i32_0 : i32, i32
  }
  func.func @transform_2(%arg0: i32) -> (i32, i32) {
    %c0_i32 = arith.constant 0 : i32
    %c0_i32_0 = arith.constant 0 : i32
    %c0_i32_1 = arith.constant 0 : i32
    return %c0_i32, %c0_i32_0 : i32, i32
  }
  func.func @transform_3(%arg0: i32) -> (i32, i32) {
    %c0_i32 = arith.constant 0 : i32
    %c0_i32_0 = arith.constant 0 : i32
    %c0_i32_1 = arith.constant 0 : i32
    return %c0_i32, %c0_i32_0 : i32, i32
  }
  func.func @transform_4(%arg0: i32) -> (i32, i32) {
    %c0_i32 = arith.constant 0 : i32
    %c0_i32_0 = arith.constant 0 : i32
    %c0_i32_1 = arith.constant 0 : i32
    return %c0_i32, %c0_i32_0 : i32, i32
  }
  func.func @transform_5(%arg0: i32) -> (i32, i32) {
    %c0_i32 = arith.constant 0 : i32
    %c0_i32_0 = arith.constant 0 : i32
    %c0_i32_1 = arith.constant 0 : i32
    return %c0_i32, %c0_i32_0 : i32, i32
  }
  func.func @transform_6(%arg0: i32) -> (i32, i32) {
    %c0_i32 = arith.constant 0 : i32
    %c0_i32_0 = arith.constant 0 : i32
    %c0_i32_1 = arith.constant 0 : i32
    return %c0_i32, %c0_i32_0 : i32, i32
  }
  func.func @transform_7(%arg0: i32) -> (i32, i32) {
    %c0_i32 = arith.constant 0 : i32
    %c0_i32_0 = arith.constant 0 : i32
    %c0_i32_1 = arith.constant 0 : i32
    return %c0_i32, %c0_i32_0 : i32, i32
  }
  func.func @transform_8(%arg0: i32) -> (i32, i32) {
    %c0_i32 = arith.constant 0 : i32
    %c0_i32_0 = arith.constant 0 : i32
    %c0_i32_1 = arith.constant 0 : i32
    return %c0_i32, %c0_i32_0 : i32, i32
  }
  func.func @transform_9(%arg0: i32) -> (i32, i32, i32) {
    %c0_i32 = arith.constant 0 : i32
    %c0_i32_0 = arith.constant 0 : i32
    %c0_i32_1 = arith.constant 0 : i32
    return %arg0, %c0_i32, %c0_i32_0 : i32, i32, i32
  }
}

</mosaic_0001>

<llo_original>
// kernel: tpu_custom_call.1
$region0: #{tpu_custom_call.1}
  #allocation0 [shape = 'u32[]', space=smem, size = 0x4, offset = 0x4, fixed_abs, tag = 'smem constant byte address 0x4 - core index']
  #allocation1 [shape = 'u32[144,128]{1,0:T(1,128)}', space=vmem, size = 0x12000, scoped, tag = 'internal scratch']
  #allocation2 [shape = 'f32[22,44]{1,0:T(8,128)}', space=vmem, size = 0x3000, scoped, tag = 'scratch operand']
  #allocation3 [shape = 'f32[1,1]{1,0:T(1,128)S(6)}', space=smem, size = 0x200, scoped, tag = 'scoped memory for tpu_custom_call.1']
  %s0 = inlined_call_operand.vmem [shape: f32[2,256,36], index: 0, kind: input, shape index: {}]
  %s1 = inlined_call_operand.vmem [shape: f32[36,32], index: 1, kind: input, shape index: {}]
  %s2 = inlined_call_operand.vmem [shape: f32[1,32], index: 2, kind: input, shape index: {}]
  %s3 = inlined_call_operand.vmem [shape: f32[32,2], index: 3, kind: input, shape index: {}]
  %s4 = inlined_call_operand.vmem [shape: f32[1,2], index: 4, kind: input, shape index: {}]
  %s5 = inlined_call_operand.vmem [shape: f32[2,32], index: 5, kind: input, shape index: {}]
  %s6 = inlined_call_operand.vmem [shape: f32[1,32], index: 6, kind: input, shape index: {}]
  %s7 = inlined_call_operand.vmem [shape: f32[49,38], index: 7, kind: input, shape index: {}]
  %s8 = inlined_call_operand.<no memory space> [shape: f32[1,1], index: 8, kind: input, shape index: {}]
  %s9 = inlined_call_operand.hbm [shape: f32[2,32,256], index: 9, kind: output, shape index: {}]
  %s10 = sld [smem:[#allocation0]]
  $region69: #{tpu_custom_call.1} parent=0
    _
  %s12 = ssub.s32 1, %s10
  %s13 = scalar_select 0, %s12, %s10
  %14 = sst [smem:[#allocation3]] %s8
  $region1: #{tpu_custom_call.1} parent=0
    #allocation4 [shape = 'u8[65536]{0}', space=vmem, size = 0x10000, scoped, tag = 'output window, operand 0']
    #allocation5 [shape = 's32[2]{0}', space=sflag, size = 0x8, scoped, tag = 'scoped memory for tpu_custom_call.1']
    %15 = vsyncpa [#allocation5], 0
    %s16 = scalar_lea.sflag [#allocation5], 1
    %17 = vsyncpa %s16, 0
    loop: start=0, step=1, limit=4
    $region2: #{tpu_custom_call.1} parent=1 // loop_pre_header
      _
    $region3: #{tpu_custom_call.1} parent=1 // loop_header
      %s19 = sphi 0, %s23
      %p20 = scmp.ge.s32.totalorder %s19, 4
      %s29 = sphi 0, %s31
      %s32 = sphi 0, %s29
      %s33 = sphi 0, %s32
      %s49 = sphi 0, %s33
      %s53 = sphi 0, %s53
      %s55 = sphi 0, %s53
      %s56 = sphi 0, %s55
      %s70 = sphi 0, %s56
      %s74 = sphi 0, %s74
      %s76 = sphi 0, %s74
      %s77 = sphi 0, %s76
      %s91 = sphi 0, %s77
      %s95 = sphi 0, %s95
      %s97 = sphi 0, %s95
      %s98 = sphi 0, %s97
      %s112 = sphi 0, %s98
      %s116 = sphi 0, %s116
      %s118 = sphi 0, %s116
      %s119 = sphi 0, %s118
      %s133 = sphi 0, %s119
      %s137 = sphi 0, %s137
      %s139 = sphi 0, %s137
      %s140 = sphi 0, %s139
      %s154 = sphi 0, %s140
      %s158 = sphi 0, %s158
      %s160 = sphi 0, %s158
      %s161 = sphi 0, %s160
      %s175 = sphi 0, %s161
      %s179 = sphi 0, %s179
      %s181 = sphi 0, %s179
      %s182 = sphi 0, %s181
      %s196 = sphi 0, %s182
      %s200 = sphi 0, %s200
      %s202 = sphi 0, %s200
      %s203 = sphi 0, %s202
      %s217 = sphi 0, %s203
      %s223 = sphi 0, %s225
      %s226 = sphi 0, %s223
      %s227 = sphi 0, %s226
      %s243 = sphi 0, %s227
    $region4: #{tpu_custom_call.1} parent=1 // loop_header_branch
      %22 = sbr.rel (%p20) target = $region8
    $region5: #{tpu_custom_call.1} parent=1 // loop_body
      %s24 = ssub.s32 %s19, 1
      %s25 = ssub.s32 %s19, 2
      %s26 = sadd.s32 %s19, 1
      %s27 = ssub.s32 %s19, %s26
      %p28 = scmp.eq.s32.totalorder %s27, 0
      %s30 = sadd.s32 %s29, 1
      %s31 = scalar_select %p28, %s29, %s30
      %p34 = pneg %p28
      %p35 = scmp.eq.s32.totalorder %s19, 1
      %p36 = por %p34, %p35
      %p37 = scmp.ne.s32.totalorder %s29, %s32
      %p38 = scmp.eq.s32.totalorder %s19, 0
      %p39 = por %p37, %p38
      %p40 = scmp.ne.s32.totalorder %s29, %s32
      %p41 = scmp.eq.s32.totalorder %s24, 1
      %p42 = por %p40, %p41
      %p43 = scmp.ne.s32.totalorder %s32, %s33
      %p44 = scmp.eq.s32.totalorder %s24, 0
      %p45 = por %p43, %p44
      %p46 = scmp.ne.s32.totalorder %s32, %s33
      %p47 = scmp.eq.s32.totalorder %s25, 1
      %p48 = por %p46, %p47
      %p50 = scmp.ne.s32.totalorder %s33, %s49
      %p51 = scmp.eq.s32.totalorder %s25, 0
      %p52 = por %p50, %p51
      %s54 = sadd.s32 %s53, 1
      %p57 = scmp.eq.s32.totalorder %s19, 1
      %p58 = scmp.ne.s32.totalorder %s53, %s55
      %p59 = scmp.eq.s32.totalorder %s19, 0
      %p60 = por %p58, %p59
      %p61 = scmp.ne.s32.totalorder %s53, %s55
      %p62 = scmp.eq.s32.totalorder %s24, 1
      %p63 = por %p61, %p62
      %p64 = scmp.ne.s32.totalorder %s55, %s56
      %p65 = scmp.eq.s32.totalorder %s24, 0
      %p66 = por %p64, %p65
      %p67 = scmp.ne.s32.totalorder %s55, %s56
      %p68 = scmp.eq.s32.totalorder %s25, 1
      %p69 = por %p67, %p68
      %p71 = scmp.ne.s32.totalorder %s56, %s70
      %p72 = scmp.eq.s32.totalorder %s25, 0
      %p73 = por %p71, %p72
      %s75 = sadd.s32 %s74, 1
      %p78 = scmp.eq.s32.totalorder %s19, 1
      %p79 = scmp.ne.s32.totalorder %s74, %s76
      %p80 = scmp.eq.s32.totalorder %s19, 0
      %p81 = por %p79, %p80
      %p82 = scmp.ne.s32.totalorder %s74, %s76
      %p83 = scmp.eq.s32.totalorder %s24, 1
      %p84 = por %p82, %p83
      %p85 = scmp.ne.s32.totalorder %s76, %s77
      %p86 = scmp.eq.s32.totalorder %s24, 0
      %p87 = por %p85, %p86
      %p88 = scmp.ne.s32.totalorder %s76, %s77
      %p89 = scmp.eq.s32.totalorder %s25, 1
      %p90 = por %p88, %p89
      %p92 = scmp.ne.s32.totalorder %s77, %s91
      %p93 = scmp.eq.s32.totalorder %s25, 0
      %p94 = por %p92, %p93
      %s96 = sadd.s32 %s95, 1
      %p99 = scmp.eq.s32.totalorder %s19, 1
      %p100 = scmp.ne.s32.totalorder %s95, %s97
      %p101 = scmp.eq.s32.totalorder %s19, 0
      %p102 = por %p100, %p101
      %p103 = scmp.ne.s32.totalorder %s95, %s97
      %p104 = scmp.eq.s32.totalorder %s24, 1
      %p105 = por %p103, %p104
      %p106 = scmp.ne.s32.totalorder %s97, %s98
      %p107 = scmp.eq.s32.totalorder %s24, 0
      %p108 = por %p106, %p107
      %p109 = scmp.ne.s32.totalorder %s97, %s98
      %p110 = scmp.eq.s32.totalorder %s25, 1
      %p111 = por %p109, %p110
      %p113 = scmp.ne.s32.totalorder %s98, %s112
      %p114 = scmp.eq.s32.totalorder %s25, 0
      %p115 = por %p113, %p114
      %s117 = sadd.s32 %s116, 1
      %p120 = scmp.eq.s32.totalorder %s19, 1
      %p121 = scmp.ne.s32.totalorder %s116, %s118
      %p122 = scmp.eq.s32.totalorder %s19, 0
      %p123 = por %p121, %p122
      %p124 = scmp.ne.s32.totalorder %s116, %s118
      %p125 = scmp.eq.s32.totalorder %s24, 1
      %p126 = por %p124, %p125
      %p127 = scmp.ne.s32.totalorder %s118, %s119
      %p128 = scmp.eq.s32.totalorder %s24, 0
      %p129 = por %p127, %p128
      %p130 = scmp.ne.s32.totalorder %s118, %s119
      %p131 = scmp.eq.s32.totalorder %s25, 1
      %p132 = por %p130, %p131
      %p134 = scmp.ne.s32.totalorder %s119, %s133
      %p135 = scmp.eq.s32.totalorder %s25, 0
      %p136 = por %p134, %p135
      %s138 = sadd.s32 %s137, 1
      %p141 = scmp.eq.s32.totalorder %s19, 1
      %p142 = scmp.ne.s32.totalorder %s137, %s139
      %p143 = scmp.eq.s32.totalorder %s19, 0
      %p144 = por %p142, %p143
      %p145 = scmp.ne.s32.totalorder %s137, %s139
      %p146 = scmp.eq.s32.totalorder %s24, 1
      %p147 = por %p145, %p146
      %p148 = scmp.ne.s32.totalorder %s139, %s140
      %p149 = scmp.eq.s32.totalorder %s24, 0
      %p150 = por %p148, %p149
      %p151 = scmp.ne.s32.totalorder %s139, %s140
      %p152 = scmp.eq.s32.totalorder %s25, 1
      %p153 = por %p151, %p152
      %p155 = scmp.ne.s32.totalorder %s140, %s154
      %p156 = scmp.eq.s32.totalorder %s25, 0
      %p157 = por %p155, %p156
      %s159 = sadd.s32 %s158, 1
      %p162 = scmp.eq.s32.totalorder %s19, 1
      %p163 = scmp.ne.s32.totalorder %s158, %s160
      %p164 = scmp.eq.s32.totalorder %s19, 0
      %p165 = por %p163, %p164
      %p166 = scmp.ne.s32.totalorder %s158, %s160
      %p167 = scmp.eq.s32.totalorder %s24, 1
      %p168 = por %p166, %p167
      %p169 = scmp.ne.s32.totalorder %s160, %s161
      %p170 = scmp.eq.s32.totalorder %s24, 0
      %p171 = por %p169, %p170
      %p172 = scmp.ne.s32.totalorder %s160, %s161
      %p173 = scmp.eq.s32.totalorder %s25, 1
      %p174 = por %p172, %p173
      %p176 = scmp.ne.s32.totalorder %s161, %s175
      %p177 = scmp.eq.s32.totalorder %s25, 0
      %p178 = por %p176, %p177
      %s180 = sadd.s32 %s179, 1
      %p183 = scmp.eq.s32.totalorder %s19, 1
      %p184 = scmp.ne.s32.totalorder %s179, %s181
      %p185 = scmp.eq.s32.totalorder %s19, 0
      %p186 = por %p184, %p185
      %p187 = scmp.ne.s32.totalorder %s179, %s181
      %p188 = scmp.eq.s32.totalorder %s24, 1
      %p189 = por %p187, %p188
      %p190 = scmp.ne.s32.totalorder %s181, %s182
      %p191 = scmp.eq.s32.totalorder %s24, 0
      %p192 = por %p190, %p191
      %p193 = scmp.ne.s32.totalorder %s181, %s182
      %p194 = scmp.eq.s32.totalorder %s25, 1
      %p195 = por %p193, %p194
      %p197 = scmp.ne.s32.totalorder %s182, %s196
      %p198 = scmp.eq.s32.totalorder %s25, 0
      %p199 = por %p197, %p198
      %s201 = sadd.s32 %s200, 1
      %p204 = scmp.eq.s32.totalorder %s19, 1
      %p205 = scmp.ne.s32.totalorder %s200, %s202
      %p206 = scmp.eq.s32.totalorder %s19, 0
      %p207 = por %p205, %p206
      %p208 = scmp.ne.s32.totalorder %s200, %s202
      %p209 = scmp.eq.s32.totalorder %s24, 1
      %p210 = por %p208, %p209
      %p211 = scmp.ne.s32.totalorder %s202, %s203
      %p212 = scmp.eq.s32.totalorder %s24, 0
      %p213 = por %p211, %p212
      %p214 = scmp.ne.s32.totalorder %s202, %s203
      %p215 = scmp.eq.s32.totalorder %s25, 1
      %p216 = por %p214, %p215
      %p218 = scmp.ne.s32.totalorder %s203, %s217
      %p219 = scmp.eq.s32.totalorder %s25, 0
      %p220 = por %p218, %p219
      %s221 = ssub.s32 %s19, %s26
      %p222 = scmp.eq.s32.totalorder %s221, 0
      %s224 = sadd.s32 %s223, 1
      %s225 = scalar_select %p222, %s223, %s224
      %p228 = pneg %p222
      %p229 = scmp.eq.s32.totalorder %s19, 1
      %p230 = por %p228, %p229
      %p231 = scmp.ne.s32.totalorder %s223, %s226
      %p232 = scmp.eq.s32.totalorder %s19, 0
      %p233 = por %p231, %p232
      %p234 = scmp.ne.s32.totalorder %s223, %s226
      %p235 = scmp.eq.s32.totalorder %s24, 1
      %p236 = por %p234, %p235
      %p237 = scmp.ne.s32.totalorder %s226, %s227
      %p238 = scmp.eq.s32.totalorder %s24, 0
      %p239 = por %p237, %p238
      %p240 = scmp.ne.s32.totalorder %s226, %s227
      %p241 = scmp.eq.s32.totalorder %s25, 1
      %p242 = por %p240, %p241
      %p244 = scmp.ne.s32.totalorder %s227, %s243
      %p245 = scmp.eq.s32.totalorder %s25, 0
      %p246 = por %p244, %p245
      %p247 = scmp.le.s32.totalorder 1, %s19
      %p248 = scmp.lt.s32.totalorder %s19, 3
      %p249 = pnand %p247, %p248
      %p250 = pneg %p249
      // Predicated region
      $region9: #{tpu_custom_call.1} parent=5 // pred_check
        _
      $region10: #{tpu_custom_call.1} parent=5 // pred_check_branch
        %252 = sbr.rel (%p249) target = $region12
      $region11: #{tpu_custom_call.1} parent=5 // pred_region
        %s253 = ssub.s32 %s19, 1
        // Predicated region
        $region13: #{tpu_custom_call.1} parent=11 // pred_check
          %p254 = pneg %p66
        $region14: #{tpu_custom_call.1} parent=11 // pred_check_branch
          %256 = sbr.rel (%p254) target = $region16
        $region15: #{tpu_custom_call.1} parent=11 // pred_region
          _
        $region16: #{tpu_custom_call.1} parent=11 // pred_fallthru
          _
        // Predicated region
        $region17: #{tpu_custom_call.1} parent=11 // pred_check
          %p257 = pneg %p87
        $region18: #{tpu_custom_call.1} parent=11 // pred_check_branch
          %259 = sbr.rel (%p257) target = $region20
        $region19: #{tpu_custom_call.1} parent=11 // pred_region
          _
        $region20: #{tpu_custom_call.1} parent=11 // pred_fallthru
          _
        // Predicated region
        $region21: #{tpu_custom_call.1} parent=11 // pred_check
          %p260 = pneg %p108
        $region22: #{tpu_custom_call.1} parent=11 // pred_check_branch
          %262 = sbr.rel (%p260) target = $region24
        $region23: #{tpu_custom_call.1} parent=11 // pred_region
          _
        $region24: #{tpu_custom_call.1} parent=11 // pred_fallthru
          _
        // Predicated region
        $region25: #{tpu_custom_call.1} parent=11 // pred_check
          %p263 = pneg %p129
        $region26: #{tpu_custom_call.1} parent=11 // pred_check_branch
          %265 = sbr.rel (%p263) target = $region28
        $region27: #{tpu_custom_call.1} parent=11 // pred_region
          _
        $region28: #{tpu_custom_call.1} parent=11 // pred_fallthru
          _
        // Predicated region
        $region29: #{tpu_custom_call.1} parent=11 // pred_check
          %p266 = pneg %p150
        $region30: #{tpu_custom_call.1} parent=11 // pred_check_branch
          %268 = sbr.rel (%p266) target = $region32
        $region31: #{tpu_custom_call.1} parent=11 // pred_region
          _
        $region32: #{tpu_custom_call.1} parent=11 // pred_fallthru
          _
        // Predicated region
        $region33: #{tpu_custom_call.1} parent=11 // pred_check
          %p269 = pneg %p171
        $region34: #{tpu_custom_call.1} parent=11 // pred_check_branch
          %271 = sbr.rel (%p269) target = $region36
        $region35: #{tpu_custom_call.1} parent=11 // pred_region
          _
        $region36: #{tpu_custom_call.1} parent=11 // pred_fallthru
          _
        // Predicated region
        $region37: #{tpu_custom_call.1} parent=11 // pred_check
          %p272 = pneg %p192
        $region38: #{tpu_custom_call.1} parent=11 // pred_check_branch
          %274 = sbr.rel (%p272) target = $region40
        $region39: #{tpu_custom_call.1} parent=11 // pred_region
          _
        $region40: #{tpu_custom_call.1} parent=11 // pred_fallthru
          _
        // Predicated region
        $region41: #{tpu_custom_call.1} parent=11 // pred_check
          %p275 = pneg %p213
        $region42: #{tpu_custom_call.1} parent=11 // pred_check_branch
          %277 = sbr.rel (%p275) target = $region44
        $region43: #{tpu_custom_call.1} parent=11 // pred_region
          _
        $region44: #{tpu_custom_call.1} parent=11 // pred_fallthru
          _
      $region12: #{tpu_custom_call.1} parent=5 // pred_fallthru
        _
      %p278 = scmp.lt.s32.totalorder %s19, 2
      // Predicated region
      $region45: #{tpu_custom_call.1} parent=5 // pred_check
        %p279 = pneg %p278
      $region46: #{tpu_custom_call.1} parent=5 // pred_check_branch
        %281 = sbr.rel (%p279) target = $region48
      $region47: #{tpu_custom_call.1} parent=5 // pred_region
        // Predicated region
        $region49: #{tpu_custom_call.1} parent=47 // pred_check
          %p282 = pneg %p39
        $region50: #{tpu_custom_call.1} parent=47 // pred_check_branch
          %284 = sbr.rel (%p282) target = $region52
        $region51: #{tpu_custom_call.1} parent=47 // pred_region
          %p285 = scmp.lt.s32.totalorder %s19, 1
          %s286 = scalar_select %p285, %s19, 1
          %s287 = smul.addr %s286, 32
          %s288 = smul.addr %s287, 8
          %s289 = scalar_lea.vmem %s0, %s288
        $region52: #{tpu_custom_call.1} parent=47 // pred_fallthru
          _
      $region48: #{tpu_custom_call.1} parent=5 // pred_fallthru
        _
      %p290 = scmp.le.s32.totalorder 1, %s19
      %p291 = scmp.lt.s32.totalorder %s19, 3
      %p292 = pnand %p290, %p291
      %p293 = pneg %p292
      // Predicated region
      $region53: #{tpu_custom_call.1} parent=5 // pred_check
        _
      $region54: #{tpu_custom_call.1} parent=5 // pred_check_branch
        %295 = sbr.rel (%p292) target = $region56
      $region55: #{tpu_custom_call.1} parent=5 // pred_region
        %s296 = ssub.s32 %s19, 1
        %p297 = scmp.lt.s32.totalorder %s24, 1
        %s298 = scalar_select %p297, %s24, 1
        %s299 = smul.addr %s298, 32
        %s300 = smul.addr %s299, 8
        %s301 = scalar_lea.vmem %s0, %s300
        %p302 = pneg %p45
        %p303 = pneg %p42
        %p304 = pneg %p66
        %p305 = pneg %p63
        %p306 = pneg %p87
        %p307 = pneg %p84
        %p308 = pneg %p108
        %p309 = pneg %p105
        %p310 = pneg %p129
        %p311 = pneg %p126
        %p312 = pneg %p150
        %p313 = pneg %p147
        %p314 = pneg %p171
        %p315 = pneg %p168
        %p316 = pneg %p192
        %p317 = pneg %p189
        %p318 = pneg %p213
        %p319 = pneg %p210
        %p320 = pneg %p239
        %p321 = pneg %p236
        %s322 = sand.u32 %s226, 1
        %s323 = scalar_lea.sflag [#allocation5], %s322
        %s324 = sand.u32 %s226, 1
        %s325 = smul.addr %s324, 64
        %s326 = scalar_lea.vmem [#allocation4], %s325
        %p327 = scmp.lt.s32.totalorder %s24, 1
        %s328 = scalar_select %p327, %s24, 1
        %s329 = smul.addr %s328, 32
        %s330 = smul.addr %s329, 8
        %s331 = scalar_lea.vmem %s0, %s330
        %v332 = vld [vmem:[%s331] sm:$0xff]
        %v333 = vld [vmem:[%s331 + $0x8] sm:$0xff]
        %v334 = vld [vmem:[%s331 + $0x10] sm:$0xff]
        %v335 = vld [vmem:[%s331 + $0x18] sm:$0xff]
        %v336 = vld [vmem:[%s331 + $0x20] sm:$0xff]
        %v337 = vld [vmem:[%s331 + $0x28] sm:$0xff]
        %v338 = vld [vmem:[%s331 + $0x30] sm:$0xff]
        %v339 = vld [vmem:[%s331 + $0x38] sm:$0xff]
        %v340 = vld [vmem:[%s331 + $0x40] sm:$0xff]
        %v341 = vld [vmem:[%s331 + $0x48] sm:$0xff]
        %v342 = vld [vmem:[%s331 + $0x50] sm:$0xff]
        %v343 = vld [vmem:[%s331 + $0x58] sm:$0xff]
        %v344 = vld [vmem:[%s331 + $0x60] sm:$0xff]
        %v345 = vld [vmem:[%s331 + $0x68] sm:$0xff]
        %v346 = vld [vmem:[%s331 + $0x70] sm:$0xff]
        %v347 = vld [vmem:[%s331 + $0x78] sm:$0xff]
        %v348 = vld [vmem:[%s331 + $0x80] sm:$0xff]
        %v349 = vld [vmem:[%s331 + $0x88] sm:$0xff]
        %v350 = vld [vmem:[%s331 + $0x90] sm:$0xff]
        %v351 = vld [vmem:[%s331 + $0x98] sm:$0xff]
        %v352 = vld [vmem:[%s331 + $0xa0] sm:$0xff]
        %v353 = vld [vmem:[%s331 + $0xa8] sm:$0xff]
        %v354 = vld [vmem:[%s331 + $0xb0] sm:$0xff]
        %v355 = vld [vmem:[%s331 + $0xb8] sm:$0xff]
        %v356 = vld [vmem:[%s331 + $0xc0] sm:$0xff]
        %v357 = vld [vmem:[%s331 + $0xc8] sm:$0xff]
        %v358 = vld [vmem:[%s331 + $0xd0] sm:$0xff]
        %v359 = vld [vmem:[%s331 + $0xd8] sm:$0xff]
        %v360 = vld [vmem:[%s331 + $0xe0] sm:$0xff]
        %v361 = vld [vmem:[%s331 + $0xe8] sm:$0xff]
        %v362 = vld [vmem:[%s331 + $0xf0] sm:$0xff]
        %v363 = vld [vmem:[%s331 + $0xf8] sm:$0xff]
        %v364 = vld [vmem:[%s1] sm:$0xff]
        %v365 = vld [vmem:[%s1 + $0x8] sm:$0xff]
        %v366 = vld [vmem:[%s1 + $0x10] sm:$0xff]
        %v367 = vld [vmem:[%s1 + $0x18] sm:$0xff]
        %v368 = vld [vmem:[%s1 + $0x20] sm:$0xf]
        %v369 = vld [vmem:[%s2] sm:$0x1]
        %v371 = vlaneseq
        %v372 = vshrl.u32 %v371, 7
        %v373 = vsub.s32 0, %v372
        %v374 = vrot.slane %v369, %v373
        %vm376 = vcmask 293888
        %v378 = vsel %vm376, %v332, 0
        %v381 = vsel %vm376, %v333, 0
        %v384 = vsel %vm376, %v334, 0
        %v387 = vsel %vm376, %v335, 0
        %v390 = vsel %vm376, %v336, 0
        %v393 = vsel %vm376, %v337, 0
        %v396 = vsel %vm376, %v338, 0
        %v399 = vsel %vm376, %v339, 0
        %v402 = vsel %vm376, %v340, 0
        %v405 = vsel %vm376, %v341, 0
        %v408 = vsel %vm376, %v342, 0
        %v411 = vsel %vm376, %v343, 0
        %v414 = vsel %vm376, %v344, 0
        %v417 = vsel %vm376, %v345, 0
        %v420 = vsel %vm376, %v346, 0
        %v423 = vsel %vm376, %v347, 0
        %v426 = vsel %vm376, %v348, 0
        %v429 = vsel %vm376, %v349, 0
        %v432 = vsel %vm376, %v350, 0
        %v435 = vsel %vm376, %v351, 0
        %v438 = vsel %vm376, %v352, 0
        %v441 = vsel %vm376, %v353, 0
        %v444 = vsel %vm376, %v354, 0
        %v447 = vsel %vm376, %v355, 0
        %v450 = vsel %vm376, %v356, 0
        %v453 = vsel %vm376, %v357, 0
        %v456 = vsel %vm376, %v358, 0
        %v459 = vsel %vm376, %v359, 0
        %v462 = vsel %vm376, %v360, 0
        %v465 = vsel %vm376, %v361, 0
        %v468 = vsel %vm376, %v362, 0
        %v471 = vsel %vm376, %v363, 0
        %vm473 = vcmask 1043456
        %v475 = vsel %vm473, %v368, 0
        %477 = vmatprep.subr.mxu0 0.0
        %478 = vmatpush1.msra.mxu0 %v364
        %479 = vmatprep.subr.mxu0 0.0
        %480 = vmatpush1.msra.mxu0 %v365
        %481 = vmatprep.subr.mxu0 0.0
        %482 = vmatpush1.msra.mxu0 %v366
        %483 = vmatprep.subr.mxu0 0.0
        %484 = vmatpush1.msra.mxu0 %v367
        %485 = vmatprep.subr.mxu0 0.0
        %486 = vmatpush1.msra.mxu0 %v475
        %487 = vmatprep.subr.mxu0 0.0
        %488 = vmatpush1.msra.mxu0 0.0
        %489 = vmatprep.subr.mxu0 0.0
        %490 = vmatpush1.msra.mxu0 0.0
        %491 = vmatprep.subr.mxu0 0.0
        %492 = vmatpush1.msra.mxu0 0.0
        %493 = vmatprep.subr.mxu0 0.0
        %494 = vmatpush1.msra.mxu0 0.0
        %495 = vmatprep.subr.mxu0 0.0
        %496 = vmatpush1.msra.mxu0 0.0
        %497 = vmatprep.subr.mxu0 0.0
        %498 = vmatpush1.msra.mxu0 0.0
        %499 = vmatprep.subr.mxu0 0.0
        %500 = vmatpush1.msra.mxu0 0.0
        %501 = vmatprep.subr.mxu0 0.0
        %502 = vmatpush1.msra.mxu0 0.0
        %503 = vmatprep.subr.mxu0 0.0
        %504 = vmatpush1.msra.mxu0 0.0
        %505 = vmatprep.subr.mxu0 0.0
        %506 = vmatpush1.msra.mxu0 0.0
        %507 = vmatprep.subr.mxu0 0.0
        %508 = vmatpush1.msra.mxu0 0.0
        %509 = vmatprep.subr.mxu0 0.0
        %510 = vmatpush1.msra.mxu0 0.0
        %511 = vmatprep.subr.mxu0 0.0
        %512 = vmatpush1.msra.mxu0 0.0
        %513 = vmatprep.subr.mxu0 0.0
        %514 = vmatpush1.msra.mxu0 0.0
        %515 = vmatprep.subr.mxu0 0.0
        %516 = vmatpush1.msra.mxu0 0.0
        %517 = vmatprep.subr.mxu0 0.0
        %518 = vmatpush1.msra.mxu0 0.0
        %519 = vmatprep.subr.mxu0 0.0
        %520 = vmatpush1.msra.mxu0 0.0
        %521 = vmatprep.subr.mxu0 0.0
        %522 = vmatpush1.msra.mxu0 0.0
        %523 = vmatprep.subr.mxu0 0.0
        %524 = vmatpush1.msra.mxu0 0.0
        %525 = vmatprep.subr.mxu0 0.0
        %526 = vmatpush1.msra.mxu0 0.0
        %527 = vmatprep.subr.mxu0 0.0
        %528 = vmatpush1.msra.mxu0 0.0
        %529 = vmatprep.subr.mxu0 0.0
        %530 = vmatpush1.msra.mxu0 0.0
        %531 = vmatprep.subr.mxu0 0.0
        %532 = vmatpush1.msra.mxu0 0.0
        %533 = vmatprep.subr.mxu0 0.0
        %534 = vmatpush1.msra.mxu0 0.0
        %535 = vmatprep.subr.mxu0 0.0
        %536 = vmatpush1.msra.mxu0 0.0
        %537 = vmatprep.subr.mxu0 0.0
        %538 = vmatpush1.msra.mxu0 0.0
        %539 = vmatprep.subr.mxu0 0.0
        %540 = vmatpush1.msra.mxu0 0.0
        %541 = vmatprep.mubr.f32.mxu0 0.0
        %542 = vmatmul.mubr.f32.gmra.mrb[0].mxu0 %v378
        %v543 = vpop.f32.mrb[0].mxu0
        %v544 = vadd.f32 %v374, %v543
        %v545 = vpop.f32.mrb[0].mxu0
        %546 = vmatprep.mubr.f32.mxu0 0.0
        %547 = vmatmul.mubr.f32.gmra.mrb[0].mxu0 %v381
        %v548 = vpop.f32.mrb[0].mxu0
        %v549 = vadd.f32 %v374, %v548
        %v550 = vpop.f32.mrb[0].mxu0
        %551 = vmatprep.mubr.f32.mxu0 0.0
        %552 = vmatmul.mubr.f32.gmra.mrb[0].mxu0 %v384
        %v553 = vpop.f32.mrb[0].mxu0
        %v554 = vadd.f32 %v374, %v553
        %v555 = vpop.f32.mrb[0].mxu0
        %556 = vmatprep.mubr.f32.mxu0 0.0
        %557 = vmatmul.mubr.f32.gmra.mrb[0].mxu0 %v387
        %v558 = vpop.f32.mrb[0].mxu0
        %v559 = vadd.f32 %v374, %v558
        %v560 = vpop.f32.mrb[0].mxu0
        %561 = vmatprep.mubr.f32.mxu0 0.0
        %562 = vmatmul.mubr.f32.gmra.mrb[0].mxu0 %v390
        %v563 = vpop.f32.mrb[0].mxu0
        %v564 = vadd.f32 %v374, %v563
        %v565 = vpop.f32.mrb[0].mxu0
        %566 = vmatprep.mubr.f32.mxu0 0.0
        %567 = vmatmul.mubr.f32.gmra.mrb[0].mxu0 %v393
        %v568 = vpop.f32.mrb[0].mxu0
        %v569 = vadd.f32 %v374, %v568
        %v570 = vpop.f32.mrb[0].mxu0
        %571 = vmatprep.mubr.f32.mxu0 0.0
        %572 = vmatmul.mubr.f32.gmra.mrb[0].mxu0 %v396
        %v573 = vpop.f32.mrb[0].mxu0
        %v574 = vadd.f32 %v374, %v573
        %v575 = vpop.f32.mrb[0].mxu0
        %576 = vmatprep.mubr.f32.mxu0 0.0
        %577 = vmatmul.mubr.f32.gmra.mrb[0].mxu0 %v399
        %v578 = vpop.f32.mrb[0].mxu0
        %v579 = vadd.f32 %v374, %v578
        %v580 = vpop.f32.mrb[0].mxu0
        %581 = vmatprep.mubr.f32.mxu0 0.0
        %582 = vmatmul.mubr.f32.gmra.mrb[0].mxu0 %v402
        %v583 = vpop.f32.mrb[0].mxu0
        %v584 = vadd.f32 %v374, %v583
        %v585 = vpop.f32.mrb[0].mxu0
        %586 = vmatprep.mubr.f32.mxu0 0.0
        %587 = vmatmul.mubr.f32.gmra.mrb[0].mxu0 %v405
        %v588 = vpop.f32.mrb[0].mxu0
        %v589 = vadd.f32 %v374, %v588
        %v590 = vpop.f32.mrb[0].mxu0
        %591 = vmatprep.mubr.f32.mxu0 0.0
        %592 = vmatmul.mubr.f32.gmra.mrb[0].mxu0 %v408
        %v593 = vpop.f32.mrb[0].mxu0
        %v594 = vadd.f32 %v374, %v593
        %v595 = vpop.f32.mrb[0].mxu0
        %596 = vmatprep.mubr.f32.mxu0 0.0
        %597 = vmatmul.mubr.f32.gmra.mrb[0].mxu0 %v411
        %v598 = vpop.f32.mrb[0].mxu0
        %v599 = vadd.f32 %v374, %v598
        %v600 = vpop.f32.mrb[0].mxu0
        %601 = vmatprep.mubr.f32.mxu0 0.0
        %602 = vmatmul.mubr.f32.gmra.mrb[0].mxu0 %v414
        %v603 = vpop.f32.mrb[0].mxu0
        %v604 = vadd.f32 %v374, %v603
        %v605 = vpop.f32.mrb[0].mxu0
        %606 = vmatprep.mubr.f32.mxu0 0.0
        %607 = vmatmul.mubr.f32.gmra.mrb[0].mxu0 %v417
        %v608 = vpop.f32.mrb[0].mxu0
        %v609 = vadd.f32 %v374, %v608
        %v610 = vpop.f32.mrb[0].mxu0
        %611 = vmatprep.mubr.f32.mxu0 0.0
        %612 = vmatmul.mubr.f32.gmra.mrb[0].mxu0 %v420
        %v613 = vpop.f32.mrb[0].mxu0
        %v614 = vadd.f32 %v374, %v613
        %v615 = vpop.f32.mrb[0].mxu0
        %616 = vmatprep.mubr.f32.mxu0 0.0
        %617 = vmatmul.mubr.f32.gmra.mrb[0].mxu0 %v423
        %v618 = vpop.f32.mrb[0].mxu0
        %v619 = vadd.f32 %v374, %v618
        %v620 = vpop.f32.mrb[0].mxu0
        %621 = vmatprep.mubr.f32.mxu0 0.0
        %622 = vmatmul.mubr.f32.gmra.mrb[0].mxu0 %v426
        %v623 = vpop.f32.mrb[0].mxu0
        %v624 = vadd.f32 %v374, %v623
        %v625 = vpop.f32.mrb[0].mxu0
        %626 = vmatprep.mubr.f32.mxu0 0.0
        %627 = vmatmul.mubr.f32.gmra.mrb[0].mxu0 %v429
        %v628 = vpop.f32.mrb[0].mxu0
        %v629 = vadd.f32 %v374, %v628
        %v630 = vpop.f32.mrb[0].mxu0
        %631 = vmatprep.mubr.f32.mxu0 0.0
        %632 = vmatmul.mubr.f32.gmra.mrb[0].mxu0 %v432
        %v633 = vpop.f32.mrb[0].mxu0
        %v634 = vadd.f32 %v374, %v633
        %v635 = vpop.f32.mrb[0].mxu0
        %636 = vmatprep.mubr.f32.mxu0 0.0
        %637 = vmatmul.mubr.f32.gmra.mrb[0].mxu0 %v435
        %v638 = vpop.f32.mrb[0].mxu0
        %v639 = vadd.f32 %v374, %v638
        %v640 = vpop.f32.mrb[0].mxu0
        %641 = vmatprep.mubr.f32.mxu0 0.0
        %642 = vmatmul.mubr.f32.gmra.mrb[0].mxu0 %v438
        %v643 = vpop.f32.mrb[0].mxu0
        %v644 = vadd.f32 %v374, %v643
        %v645 = vpop.f32.mrb[0].mxu0
        %646 = vmatprep.mubr.f32.mxu0 0.0
        %647 = vmatmul.mubr.f32.gmra.mrb[0].mxu0 %v441
        %v648 = vpop.f32.mrb[0].mxu0
        %v649 = vadd.f32 %v374, %v648
        %v650 = vpop.f32.mrb[0].mxu0
        %651 = vmatprep.mubr.f32.mxu0 0.0
        %652 = vmatmul.mubr.f32.gmra.mrb[0].mxu0 %v444
        %v653 = vpop.f32.mrb[0].mxu0
        %v654 = vadd.f32 %v374, %v653
        %v655 = vpop.f32.mrb[0].mxu0
        %656 = vmatprep.mubr.f32.mxu0 0.0
        %657 = vmatmul.mubr.f32.gmra.mrb[0].mxu0 %v447
        %v658 = vpop.f32.mrb[0].mxu0
        %v659 = vadd.f32 %v374, %v658
        %v660 = vpop.f32.mrb[0].mxu0
        %661 = vmatprep.mubr.f32.mxu0 0.0
        %662 = vmatmul.mubr.f32.gmra.mrb[0].mxu0 %v450
        %v663 = vpop.f32.mrb[0].mxu0
        %v664 = vadd.f32 %v374, %v663
        %v665 = vpop.f32.mrb[0].mxu0
        %666 = vmatprep.mubr.f32.mxu0 0.0
        %667 = vmatmul.mubr.f32.gmra.mrb[0].mxu0 %v453
        %v668 = vpop.f32.mrb[0].mxu0
        %v669 = vadd.f32 %v374, %v668
        %v670 = vpop.f32.mrb[0].mxu0
        %671 = vmatprep.mubr.f32.mxu0 0.0
        %672 = vmatmul.mubr.f32.gmra.mrb[0].mxu0 %v456
        %v673 = vpop.f32.mrb[0].mxu0
        %v674 = vadd.f32 %v374, %v673
        %v675 = vpop.f32.mrb[0].mxu0
        %676 = vmatprep.mubr.f32.mxu0 0.0
        %677 = vmatmul.mubr.f32.gmra.mrb[0].mxu0 %v459
        %v678 = vpop.f32.mrb[0].mxu0
        %v679 = vadd.f32 %v374, %v678
        %v680 = vpop.f32.mrb[0].mxu0
        %681 = vmatprep.mubr.f32.mxu0 0.0
        %682 = vmatmul.mubr.f32.gmra.mrb[0].mxu0 %v462
        %v683 = vpop.f32.mrb[0].mxu0
        %v684 = vadd.f32 %v374, %v683
        %v685 = vpop.f32.mrb[0].mxu0
        %686 = vmatprep.mubr.f32.mxu0 0.0
        %687 = vmatmul.mubr.f32.gmra.mrb[0].mxu0 %v465
        %v688 = vpop.f32.mrb[0].mxu0
        %v689 = vadd.f32 %v374, %v688
        %v690 = vpop.f32.mrb[0].mxu0
        %691 = vmatprep.mubr.f32.mxu0 0.0
        %692 = vmatmul.mubr.f32.gmra.mrb[0].mxu0 %v468
        %v693 = vpop.f32.mrb[0].mxu0
        %v694 = vadd.f32 %v374, %v693
        %v695 = vpop.f32.mrb[0].mxu0
        %696 = vmatprep.mubr.f32.mxu0 0.0
        %697 = vmatmul.mubr.f32.gmra.mrb[0].mxu0 %v471
        %v698 = vpop.f32.mrb[0].mxu0
        %v699 = vadd.f32 %v374, %v698
        %v700 = vpop.f32.mrb[0].mxu0
        %701 = vdwg.mxu0
        %vm702 = vcmask 261120
        %v703 = vsel %vm702, %v544, 0.0
        %v704 = vsel %vm702, %v549, 0.0
        %v705 = vadd.f32 %v703, %v704
        %v706 = vsel %vm702, %v554, 0.0
        %v707 = vadd.f32 %v705, %v706
        %v708 = vsel %vm702, %v559, 0.0
        %v709 = vadd.f32 %v707, %v708
        %v710 = vsel %vm702, %v564, 0.0
        %v711 = vadd.f32 %v709, %v710
        %v712 = vsel %vm702, %v569, 0.0
        %v713 = vadd.f32 %v711, %v712
        %v714 = vsel %vm702, %v574, 0.0
        %v715 = vadd.f32 %v713, %v714
        %v716 = vsel %vm702, %v579, 0.0
        %v717 = vadd.f32 %v715, %v716
        %v718 = vsel %vm702, %v584, 0.0
        %v719 = vadd.f32 %v717, %v718
        %v720 = vsel %vm702, %v589, 0.0
        %v721 = vadd.f32 %v719, %v720
        %v722 = vsel %vm702, %v594, 0.0
        %v723 = vadd.f32 %v721, %v722
        %v724 = vsel %vm702, %v599, 0.0
        %v725 = vadd.f32 %v723, %v724
        %v726 = vsel %vm702, %v604, 0.0
        %v727 = vadd.f32 %v725, %v726
        %v728 = vsel %vm702, %v609, 0.0
        %v729 = vadd.f32 %v727, %v728
        %v730 = vsel %vm702, %v614, 0.0
        %v731 = vadd.f32 %v729, %v730
        %v732 = vsel %vm702, %v619, 0.0
        %v733 = vadd.f32 %v731, %v732
        %v734 = vsel %vm702, %v624, 0.0
        %v735 = vadd.f32 %v733, %v734
        %v736 = vsel %vm702, %v629, 0.0
        %v737 = vadd.f32 %v735, %v736
        %v738 = vsel %vm702, %v634, 0.0
        %v739 = vadd.f32 %v737, %v738
        %v740 = vsel %vm702, %v639, 0.0
        %v741 = vadd.f32 %v739, %v740
        %v742 = vsel %vm702, %v644, 0.0
        %v743 = vadd.f32 %v741, %v742
        %v744 = vsel %vm702, %v649, 0.0
        %v745 = vadd.f32 %v743, %v744
        %v746 = vsel %vm702, %v654, 0.0
        %v747 = vadd.f32 %v745, %v746
        %v748 = vsel %vm702, %v659, 0.0
        %v749 = vadd.f32 %v747, %v748
        %v750 = vsel %vm702, %v664, 0.0
        %v751 = vadd.f32 %v749, %v750
        %v752 = vsel %vm702, %v669, 0.0
        %v753 = vadd.f32 %v751, %v752
        %v754 = vsel %vm702, %v674, 0.0
        %v755 = vadd.f32 %v753, %v754
        %v756 = vsel %vm702, %v679, 0.0
        %v757 = vadd.f32 %v755, %v756
        %v758 = vsel %vm702, %v684, 0.0
        %v759 = vadd.f32 %v757, %v758
        %v760 = vsel %vm702, %v689, 0.0
        %v761 = vadd.f32 %v759, %v760
        %v762 = vsel %vm702, %v694, 0.0
        %v763 = vadd.f32 %v761, %v762
        %v764 = vsel %vm702, %v699, 0.0
        %v765 = vadd.f32 %v763, %v764
        %v766 = vrot.slane %v765, 4
        %v767 = vadd.f32 %v765, %v766
        %v768 = vrot.slane %v767, 2
        %v769 = vadd.f32 %v767, %v768
        %v770 = vrot.slane %v769, 1
        %v771 = vadd.f32 %v769, %v770
        %v772 = vrcp.pop 256.0
        %v773 = vmul.f32 %v771, %v772
        %v774 = vsel %vm702, %v544, -inf
        %v775 = vsel %vm702, %v549, -inf
        %v776 = vsel %vm702, %v554, -inf
        %v777 = vsel %vm702, %v559, -inf
        %v778 = vsel %vm702, %v564, -inf
        %v779 = vmax.f32 %v774, %v778
        %v780 = vsel %vm702, %v569, -inf
        %v781 = vmax.f32 %v775, %v780
        %v782 = vsel %vm702, %v574, -inf
        %v783 = vmax.f32 %v776, %v782
        %v784 = vsel %vm702, %v579, -inf
        %v785 = vmax.f32 %v777, %v784
        %v786 = vsel %vm702, %v584, -inf
        %v787 = vmax.f32 %v779, %v786
        %v788 = vsel %vm702, %v589, -inf
        %v789 = vmax.f32 %v781, %v788
        %v790 = vsel %vm702, %v594, -inf
        %v791 = vmax.f32 %v783, %v790
        %v792 = vsel %vm702, %v599, -inf
        %v793 = vmax.f32 %v785, %v792
        %v794 = vsel %vm702, %v604, -inf
        %v795 = vmax.f32 %v787, %v794
        %v796 = vsel %vm702, %v609, -inf
        %v797 = vmax.f32 %v789, %v796
        %v798 = vsel %vm702, %v614, -inf
        %v799 = vmax.f32 %v791, %v798
        %v800 = vsel %vm702, %v619, -inf
        %v801 = vmax.f32 %v793, %v800
        %v802 = vsel %vm702, %v624, -inf
        %v803 = vmax.f32 %v795, %v802
        %v804 = vsel %vm702, %v629, -inf
        %v805 = vmax.f32 %v797, %v804
        %v806 = vsel %vm702, %v634, -inf
        %v807 = vmax.f32 %v799, %v806
        %v808 = vsel %vm702, %v639, -inf
        %v809 = vmax.f32 %v801, %v808
        %v810 = vsel %vm702, %v644, -inf
        %v811 = vmax.f32 %v803, %v810
        %v812 = vsel %vm702, %v649, -inf
        %v813 = vmax.f32 %v805, %v812
        %v814 = vsel %vm702, %v654, -inf
        %v815 = vmax.f32 %v807, %v814
        %v816 = vsel %vm702, %v659, -inf
        %v817 = vmax.f32 %v809, %v816
        %v818 = vsel %vm702, %v664, -inf
        %v819 = vmax.f32 %v811, %v818
        %v820 = vsel %vm702, %v669, -inf
        %v821 = vmax.f32 %v813, %v820
        %v822 = vsel %vm702, %v674, -inf
        %v823 = vmax.f32 %v815, %v822
        %v824 = vsel %vm702, %v679, -inf
        %v825 = vmax.f32 %v817, %v824
        %v826 = vsel %vm702, %v684, -inf
        %v827 = vmax.f32 %v819, %v826
        %v828 = vsel %vm702, %v689, -inf
        %v829 = vmax.f32 %v821, %v828
        %v830 = vsel %vm702, %v694, -inf
        %v831 = vmax.f32 %v823, %v830
        %v832 = vsel %vm702, %v699, -inf
        %v833 = vmax.f32 %v825, %v832
        %v834 = vmax.f32 %v827, %v829
        %v835 = vmax.f32 %v831, %v833
        %v836 = vmax.f32 %v834, %v835
        %v837 = vrot.slane %v836, 4
        %v838 = vmax.f32 %v836, %v837
        %v839 = vrot.slane %v838, 2
        %v840 = vmax.f32 %v838, %v839
        %v841 = vrot.slane %v840, 1
        %v842 = vmax.f32 %v840, %v841
        %vm843 = vcmask 1040384
        %v844 = vsel %vm843, %v773, %v842
        %v845 = vld [vmem:[%s3] sm:$0xff]
        %v846 = vld [vmem:[%s3 + $0x8] sm:$0xff]
        %v847 = vld [vmem:[%s3 + $0x10] sm:$0xff]
        %v848 = vld [vmem:[%s3 + $0x18] sm:$0xff]
        %v849 = vld [vmem:[%s4] sm:$0x1]
        %v851 = vlaneseq
        %v852 = vshrl.u32 %v851, 7
        %v853 = vsub.s32 0, %v852
        %v854 = vrot.slane %v849, %v853
        %v857 = vsel %vm702, %v844, 0
        %859 = vmatprep.subr.mxu0 0.0
        %860 = vmatpush1.msra.mxu0 %v845
        %861 = vmatprep.subr.mxu0 0.0
        %862 = vmatpush1.msra.mxu0 %v846
        %863 = vmatprep.subr.mxu0 0.0
        %864 = vmatpush1.msra.mxu0 %v847
        %865 = vmatprep.subr.mxu0 0.0
        %866 = vmatpush1.msra.mxu0 %v848
        %867 = vmatprep.subr.mxu0 0.0
        %868 = vmatpush1.msra.mxu0 0.0
        %869 = vmatprep.subr.mxu0 0.0
        %870 = vmatpush1.msra.mxu0 0.0
        %871 = vmatprep.subr.mxu0 0.0
        %872 = vmatpush1.msra.mxu0 0.0
        %873 = vmatprep.subr.mxu0 0.0
        %874 = vmatpush1.msra.mxu0 0.0
        %875 = vmatprep.subr.mxu0 0.0
        %876 = vmatpush1.msra.mxu0 0.0
        %877 = vmatprep.subr.mxu0 0.0
        %878 = vmatpush1.msra.mxu0 0.0
        %879 = vmatprep.subr.mxu0 0.0
        %880 = vmatpush1.msra.mxu0 0.0
        %881 = vmatprep.subr.mxu0 0.0
        %882 = vmatpush1.msra.mxu0 0.0
        %883 = vmatprep.subr.mxu0 0.0
        %884 = vmatpush1.msra.mxu0 0.0
        %885 = vmatprep.subr.mxu0 0.0
        %886 = vmatpush1.msra.mxu0 0.0
        %887 = vmatprep.subr.mxu0 0.0
        %888 = vmatpush1.msra.mxu0 0.0
        %889 = vmatprep.subr.mxu0 0.0
        %890 = vmatpush1.msra.mxu0 0.0
        %891 = vmatprep.subr.mxu0 0.0
        %892 = vmatpush1.msra.mxu0 0.0
        %893 = vmatprep.subr.mxu0 0.0
        %894 = vmatpush1.msra.mxu0 0.0
        %895 = vmatprep.subr.mxu0 0.0
        %896 = vmatpush1.msra.mxu0 0.0
        %897 = vmatprep.subr.mxu0 0.0
        %898 = vmatpush1.msra.mxu0 0.0
        %899 = vmatprep.subr.mxu0 0.0
        %900 = vmatpush1.msra.mxu0 0.0
        %901 = vmatprep.subr.mxu0 0.0
        %902 = vmatpush1.msra.mxu0 0.0
        %903 = vmatprep.subr.mxu0 0.0
        %904 = vmatpush1.msra.mxu0 0.0
        %905 = vmatprep.subr.mxu0 0.0
        %906 = vmatpush1.msra.mxu0 0.0
        %907 = vmatprep.subr.mxu0 0.0
        %908 = vmatpush1.msra.mxu0 0.0
        %909 = vmatprep.subr.mxu0 0.0
        %910 = vmatpush1.msra.mxu0 0.0
        %911 = vmatprep.subr.mxu0 0.0
        %912 = vmatpush1.msra.mxu0 0.0
        %913 = vmatprep.subr.mxu0 0.0
        %914 = vmatpush1.msra.mxu0 0.0
        %915 = vmatprep.subr.mxu0 0.0
        %916 = vmatpush1.msra.mxu0 0.0
        %917 = vmatprep.subr.mxu0 0.0
        %918 = vmatpush1.msra.mxu0 0.0
        %919 = vmatprep.subr.mxu0 0.0
        %920 = vmatpush1.msra.mxu0 0.0
        %921 = vmatprep.subr.mxu0 0.0
        %922 = vmatpush1.msra.mxu0 0.0
        %923 = vmatprep.mubr.f32.mxu0 0.0
        %924 = vmatmul.mubr.f32.gmra.mrb[0].mxu0 %v857
        %v925 = vpop.f32.mrb[0].mxu0
        %v926 = vadd.f32 %v854, %v925
        %v927 = vpop.f32.mrb[0].mxu0
        %928 = vdwg.mxu0
        %v929 = vmax.f32 %v926, 0.0
        %v930 = vld [vmem:[%s5] sm:$0x3]
        %v931 = vld [vmem:[%s6] sm:$0x1]
        %v933 = vlaneseq
        %v934 = vshrl.u32 %v933, 7
        %v935 = vsub.s32 0, %v934
        %v936 = vrot.slane %v931, %v935
        %vm938 = vcmask 15360
        %v940 = vsel %vm938, %v929, 0
        %vm942 = vcmask 1041408
        %v944 = vsel %vm942, %v930, 0
        %946 = vmatprep.subr.mxu0 0.0
        %947 = vmatpush1.msra.mxu0 %v944
        %948 = vmatprep.subr.mxu0 0.0
        %949 = vmatpush1.msra.mxu0 0.0
        %950 = vmatprep.subr.mxu0 0.0
        %951 = vmatpush1.msra.mxu0 0.0
        %952 = vmatprep.subr.mxu0 0.0
        %953 = vmatpush1.msra.mxu0 0.0
        %954 = vmatprep.subr.mxu0 0.0
        %955 = vmatpush1.msra.mxu0 0.0
        %956 = vmatprep.subr.mxu0 0.0
        %957 = vmatpush1.msra.mxu0 0.0
        %958 = vmatprep.subr.mxu0 0.0
        %959 = vmatpush1.msra.mxu0 0.0
        %960 = vmatprep.subr.mxu0 0.0
        %961 = vmatpush1.msra.mxu0 0.0
        %962 = vmatprep.subr.mxu0 0.0
        %963 = vmatpush1.msra.mxu0 0.0
        %964 = vmatprep.subr.mxu0 0.0
        %965 = vmatpush1.msra.mxu0 0.0
        %966 = vmatprep.subr.mxu0 0.0
        %967 = vmatpush1.msra.mxu0 0.0
        %968 = vmatprep.subr.mxu0 0.0
        %969 = vmatpush1.msra.mxu0 0.0
        %970 = vmatprep.subr.mxu0 0.0
        %971 = vmatpush1.msra.mxu0 0.0
        %972 = vmatprep.subr.mxu0 0.0
        %973 = vmatpush1.msra.mxu0 0.0
        %974 = vmatprep.subr.mxu0 0.0
        %975 = vmatpush1.msra.mxu0 0.0
        %976 = vmatprep.subr.mxu0 0.0
        %977 = vmatpush1.msra.mxu0 0.0
        %978 = vmatprep.subr.mxu0 0.0
        %979 = vmatpush1.msra.mxu0 0.0
        %980 = vmatprep.subr.mxu0 0.0
        %981 = vmatpush1.msra.mxu0 0.0
        %982 = vmatprep.subr.mxu0 0.0
        %983 = vmatpush1.msra.mxu0 0.0
        %984 = vmatprep.subr.mxu0 0.0
        %985 = vmatpush1.msra.mxu0 0.0
        %986 = vmatprep.subr.mxu0 0.0
        %987 = vmatpush1.msra.mxu0 0.0
        %988 = vmatprep.subr.mxu0 0.0
        %989 = vmatpush1.msra.mxu0 0.0
        %990 = vmatprep.subr.mxu0 0.0
        %991 = vmatpush1.msra.mxu0 0.0
        %992 = vmatprep.subr.mxu0 0.0
        %993 = vmatpush1.msra.mxu0 0.0
        %994 = vmatprep.subr.mxu0 0.0
        %995 = vmatpush1.msra.mxu0 0.0
        %996 = vmatprep.subr.mxu0 0.0
        %997 = vmatpush1.msra.mxu0 0.0
        %998 = vmatprep.subr.mxu0 0.0
        %999 = vmatpush1.msra.mxu0 0.0
        %1000 = vmatprep.subr.mxu0 0.0
        %1001 = vmatpush1.msra.mxu0 0.0
        %1002 = vmatprep.subr.mxu0 0.0
        %1003 = vmatpush1.msra.mxu0 0.0
        %1004 = vmatprep.subr.mxu0 0.0
        %1005 = vmatpush1.msra.mxu0 0.0
        %1006 = vmatprep.subr.mxu0 0.0
        %1007 = vmatpush1.msra.mxu0 0.0
        %1008 = vmatprep.subr.mxu0 0.0
        %1009 = vmatpush1.msra.mxu0 0.0
        %1010 = vmatprep.mubr.f32.mxu0 0.0
        %1011 = vmatmul.mubr.f32.gmra.mrb[0].mxu0 %v940
        %v1012 = vpop.f32.mrb[0].mxu0
        %v1013 = vadd.f32 %v936, %v1012
        %v1014 = vpop.f32.mrb[0].mxu0
        %1015 = vdwg.mxu0
        %v1017 = vrot.slane %v1013, 1
        %v1019 = vadd.f32 %v1013, %v1017
        %v1020 = vxor.u32 %v1019, 2147483648
        %v1021 = vmul.f32 %v1020, 1.442695
        %v1022 = vpow.pop %v1021
        %v1023 = vadd.f32 %v1022, 1.0
        %v1024 = vrcp.pop %v1023
        %v1025 = vmul.f32 1.0, %v1024
        %v1026 = vld [vmem:[%s7] sm:$0xff]
        %v1027 = vld [vmem:[%s7 + $0x8] sm:$0xff]
        %v1028 = vld [vmem:[%s7 + $0x10] sm:$0xff]
        %v1029 = vld [vmem:[%s7 + $0x18] sm:$0xff]
        %v1030 = vld [vmem:[%s7 + $0x20] sm:$0xff]
        %v1031 = vld [vmem:[%s7 + $0x28] sm:$0xff]
        %v1032 = vld [vmem:[%s7 + $0x30] sm:$0x1]
        %s1033 = sld [smem:[#allocation3]]
        %v1034 = vlaneseq
        %v1035 = vshrl.u32 %v1034, 7
        %v1036 = vadd.s32 %v1035, 8
        %v1037 = vadd.s32 %v1035, 16
        %v1038 = vadd.s32 %v1035, 24
        %v1039 = vlaneseq
        %v1040 = vand.u32 %v1039, 127
        %vm1041 = vcmp.eq.s32.totalorder %v1035, %v1040
        %vm1042 = vcmp.eq.s32.totalorder %v1036, %v1040
        %vm1043 = vcmp.eq.s32.totalorder %v1037, %v1040
        %vm1044 = vcmp.eq.s32.totalorder %v1038, %v1040
        %v1045 = vsel %vm1041, 1, 0
        %v1046 = vsel %vm1042, 1, 0
        %v1047 = vsel %vm1043, 1, 0
        %v1048 = vsel %vm1044, 1, 0
        %v1049 = vcvt.s32.f32 %v1045
        %v1050 = vcvt.s32.f32 %v1046
        %v1051 = vcvt.s32.f32 %v1047
        %v1052 = vcvt.s32.f32 %v1048
        %v1053 = vlaneseq
        %v1054 = vshrl.u32 %v1053, 7
        %v1055 = vsub.s32 0, %v1054
        %v1056 = vrot.slane %v1025, %v1055
        %v1057 = vmul.f32 %v544, %v1056
        %v1058 = vmul.f32 %v549, %v1056
        %v1059 = vmul.f32 %v554, %v1056
        %v1060 = vmul.f32 %v559, %v1056
        %v1061 = vmul.f32 %v564, %v1056
        %v1062 = vmul.f32 %v569, %v1056
        %v1063 = vmul.f32 %v574, %v1056
        %v1064 = vmul.f32 %v579, %v1056
        %v1065 = vmul.f32 %v584, %v1056
        %v1066 = vmul.f32 %v589, %v1056
        %v1067 = vmul.f32 %v594, %v1056
        %v1068 = vmul.f32 %v599, %v1056
        %v1069 = vmul.f32 %v604, %v1056
        %v1070 = vmul.f32 %v609, %v1056
        %v1071 = vmul.f32 %v614, %v1056
        %v1072 = vmul.f32 %v619, %v1056
        %v1073 = vmul.f32 %v624, %v1056
        %v1074 = vmul.f32 %v629, %v1056
        %v1075 = vmul.f32 %v634, %v1056
        %v1076 = vmul.f32 %v639, %v1056
        %v1077 = vmul.f32 %v644, %v1056
        %v1078 = vmul.f32 %v649, %v1056
        %v1079 = vmul.f32 %v654, %v1056
        %v1080 = vmul.f32 %v659, %v1056
        %v1081 = vmul.f32 %v664, %v1056
        %v1082 = vmul.f32 %v669, %v1056
        %v1083 = vmul.f32 %v674, %v1056
        %v1084 = vmul.f32 %v679, %v1056
        %v1085 = vmul.f32 %v684, %v1056
        %v1086 = vmul.f32 %v689, %v1056
        %v1087 = vmul.f32 %v694, %v1056
        %v1088 = vmul.f32 %v699, %v1056
        %v1089 = vsel %vm702, %v1057, 0.0
        %1090 = vadd.xlane.f32.xlu0 %v1089
        %v1091 = vpop.xlane.xlu0 %1090
        %v1092 = vsel %vm702, %v1058, 0.0
        %1093 = vadd.xlane.f32.xlu0 %v1092
        %v1094 = vpop.xlane.xlu0 %1093
        %v1095 = vsel %vm702, %v1059, 0.0
        %1096 = vadd.xlane.f32.xlu0 %v1095
        %v1097 = vpop.xlane.xlu0 %1096
        %v1098 = vsel %vm702, %v1060, 0.0
        %1099 = vadd.xlane.f32.xlu0 %v1098
        %v1100 = vpop.xlane.xlu0 %1099
        %v1101 = vsel %vm702, %v1061, 0.0
        %1102 = vadd.xlane.f32.xlu0 %v1101
        %v1103 = vpop.xlane.xlu0 %1102
        %v1104 = vsel %vm702, %v1062, 0.0
        %1105 = vadd.xlane.f32.xlu0 %v1104
        %v1106 = vpop.xlane.xlu0 %1105
        %v1107 = vsel %vm702, %v1063, 0.0
        %1108 = vadd.xlane.f32.xlu0 %v1107
        %v1109 = vpop.xlane.xlu0 %1108
        %v1110 = vsel %vm702, %v1064, 0.0
        %1111 = vadd.xlane.f32.xlu0 %v1110
        %v1112 = vpop.xlane.xlu0 %1111
        %v1113 = vsel %vm702, %v1065, 0.0
        %1114 = vadd.xlane.f32.xlu0 %v1113
        %v1115 = vpop.xlane.xlu0 %1114
        %v1116 = vsel %vm702, %v1066, 0.0
        %1117 = vadd.xlane.f32.xlu0 %v1116
        %v1118 = vpop.xlane.xlu0 %1117
        %v1119 = vsel %vm702, %v1067, 0.0
        %1120 = vadd.xlane.f32.xlu0 %v1119
        %v1121 = vpop.xlane.xlu0 %1120
        %v1122 = vsel %vm702, %v1068, 0.0
        %1123 = vadd.xlane.f32.xlu0 %v1122
        %v1124 = vpop.xlane.xlu0 %1123
        %v1125 = vsel %vm702, %v1069, 0.0
        %1126 = vadd.xlane.f32.xlu0 %v1125
        %v1127 = vpop.xlane.xlu0 %1126
        %v1128 = vsel %vm702, %v1070, 0.0
        %1129 = vadd.xlane.f32.xlu0 %v1128
        %v1130 = vpop.xlane.xlu0 %1129
        %v1131 = vsel %vm702, %v1071, 0.0
        %1132 = vadd.xlane.f32.xlu0 %v1131
        %v1133 = vpop.xlane.xlu0 %1132
        %v1134 = vsel %vm702, %v1072, 0.0
        %1135 = vadd.xlane.f32.xlu0 %v1134
        %v1136 = vpop.xlane.xlu0 %1135
        %v1137 = vsel %vm702, %v1073, 0.0
        %1138 = vadd.xlane.f32.xlu0 %v1137
        %v1139 = vpop.xlane.xlu0 %1138
        %v1140 = vsel %vm702, %v1074, 0.0
        %1141 = vadd.xlane.f32.xlu0 %v1140
        %v1142 = vpop.xlane.xlu0 %1141
        %v1143 = vsel %vm702, %v1075, 0.0
        %1144 = vadd.xlane.f32.xlu0 %v1143
        %v1145 = vpop.xlane.xlu0 %1144
        %v1146 = vsel %vm702, %v1076, 0.0
        %1147 = vadd.xlane.f32.xlu0 %v1146
        %v1148 = vpop.xlane.xlu0 %1147
        %v1149 = vsel %vm702, %v1077, 0.0
        %1150 = vadd.xlane.f32.xlu0 %v1149
        %v1151 = vpop.xlane.xlu0 %1150
        %v1152 = vsel %vm702, %v1078, 0.0
        %1153 = vadd.xlane.f32.xlu0 %v1152
        %v1154 = vpop.xlane.xlu0 %1153
        %v1155 = vsel %vm702, %v1079, 0.0
        %1156 = vadd.xlane.f32.xlu0 %v1155
        %v1157 = vpop.xlane.xlu0 %1156
        %v1158 = vsel %vm702, %v1080, 0.0
        %1159 = vadd.xlane.f32.xlu0 %v1158
        %v1160 = vpop.xlane.xlu0 %1159
        %v1161 = vsel %vm702, %v1081, 0.0
        %1162 = vadd.xlane.f32.xlu0 %v1161
        %v1163 = vpop.xlane.xlu0 %1162
        %v1164 = vsel %vm702, %v1082, 0.0
        %1165 = vadd.xlane.f32.xlu0 %v1164
        %v1166 = vpop.xlane.xlu0 %1165
        %v1167 = vsel %vm702, %v1083, 0.0
        %1168 = vadd.xlane.f32.xlu0 %v1167
        %v1169 = vpop.xlane.xlu0 %1168
        %v1170 = vsel %vm702, %v1084, 0.0
        %1171 = vadd.xlane.f32.xlu0 %v1170
        %v1172 = vpop.xlane.xlu0 %1171
        %v1173 = vsel %vm702, %v1085, 0.0
        %1174 = vadd.xlane.f32.xlu0 %v1173
        %v1175 = vpop.xlane.xlu0 %1174
        %v1176 = vsel %vm702, %v1086, 0.0
        %1177 = vadd.xlane.f32.xlu0 %v1176
        %v1178 = vpop.xlane.xlu0 %1177
        %v1179 = vsel %vm702, %v1087, 0.0
        %1180 = vadd.xlane.f32.xlu0 %v1179
        %v1181 = vpop.xlane.xlu0 %1180
        %v1182 = vsel %vm702, %v1088, 0.0
        %1183 = vadd.xlane.f32.xlu0 %v1182
        %v1184 = vpop.xlane.xlu0 %1183
        %v1185 = vrcp.pop 32.0
        %v1186 = vmul.f32 %v1091, %v1185
        %v1187 = vmul.f32 %v1094, %v1185
        %v1188 = vmul.f32 %v1097, %v1185
        %v1189 = vmul.f32 %v1100, %v1185
        %v1190 = vmul.f32 %v1103, %v1185
        %v1191 = vmul.f32 %v1106, %v1185
        %v1192 = vmul.f32 %v1109, %v1185
        %v1193 = vmul.f32 %v1112, %v1185
        %v1194 = vmul.f32 %v1115, %v1185
        %v1195 = vmul.f32 %v1118, %v1185
        %v1196 = vmul.f32 %v1121, %v1185
        %v1197 = vmul.f32 %v1124, %v1185
        %v1198 = vmul.f32 %v1127, %v1185
        %v1199 = vmul.f32 %v1130, %v1185
        %v1200 = vmul.f32 %v1133, %v1185
        %v1201 = vmul.f32 %v1136, %v1185
        %v1202 = vmul.f32 %v1139, %v1185
        %v1203 = vmul.f32 %v1142, %v1185
        %v1204 = vmul.f32 %v1145, %v1185
        %v1205 = vmul.f32 %v1148, %v1185
        %v1206 = vmul.f32 %v1151, %v1185
        %v1207 = vmul.f32 %v1154, %v1185
        %v1208 = vmul.f32 %v1157, %v1185
        %v1209 = vmul.f32 %v1160, %v1185
        %v1210 = vmul.f32 %v1163, %v1185
        %v1211 = vmul.f32 %v1166, %v1185
        %v1212 = vmul.f32 %v1169, %v1185
        %v1213 = vmul.f32 %v1172, %v1185
        %v1214 = vmul.f32 %v1175, %v1185
        %v1215 = vmul.f32 %v1178, %v1185
        %v1216 = vmul.f32 %v1181, %v1185
        %v1217 = vmul.f32 %v1184, %v1185
        %v1218 = vsel %vm702, %v1057, -inf
        %1219 = vmax.xlane.f32.xlu0 %v1218
        %v1220 = vpop.xlane.xlu0 %1219
        %v1221 = vsel %vm702, %v1058, -inf
        %1222 = vmax.xlane.f32.xlu0 %v1221
        %v1223 = vpop.xlane.xlu0 %1222
        %v1224 = vsel %vm702, %v1059, -inf
        %1225 = vmax.xlane.f32.xlu0 %v1224
        %v1226 = vpop.xlane.xlu0 %1225
        %v1227 = vsel %vm702, %v1060, -inf
        %1228 = vmax.xlane.f32.xlu0 %v1227
        %v1229 = vpop.xlane.xlu0 %1228
        %v1230 = vsel %vm702, %v1061, -inf
        %1231 = vmax.xlane.f32.xlu0 %v1230
        %v1232 = vpop.xlane.xlu0 %1231
        %v1233 = vsel %vm702, %v1062, -inf
        %1234 = vmax.xlane.f32.xlu0 %v1233
        %v1235 = vpop.xlane.xlu0 %1234
        %v1236 = vsel %vm702, %v1063, -inf
        %1237 = vmax.xlane.f32.xlu0 %v1236
        %v1238 = vpop.xlane.xlu0 %1237
        %v1239 = vsel %vm702, %v1064, -inf
        %1240 = vmax.xlane.f32.xlu0 %v1239
        %v1241 = vpop.xlane.xlu0 %1240
        %v1242 = vsel %vm702, %v1065, -inf
        %1243 = vmax.xlane.f32.xlu0 %v1242
        %v1244 = vpop.xlane.xlu0 %1243
        %v1245 = vsel %vm702, %v1066, -inf
        %1246 = vmax.xlane.f32.xlu0 %v1245
        %v1247 = vpop.xlane.xlu0 %1246
        %v1248 = vsel %vm702, %v1067, -inf
        %1249 = vmax.xlane.f32.xlu0 %v1248
        %v1250 = vpop.xlane.xlu0 %1249
        %v1251 = vsel %vm702, %v1068, -inf
        %1252 = vmax.xlane.f32.xlu0 %v1251
        %v1253 = vpop.xlane.xlu0 %1252
        %v1254 = vsel %vm702, %v1069, -inf
        %1255 = vmax.xlane.f32.xlu0 %v1254
        %v1256 = vpop.xlane.xlu0 %1255
        %v1257 = vsel %vm702, %v1070, -inf
        %1258 = vmax.xlane.f32.xlu0 %v1257
        %v1259 = vpop.xlane.xlu0 %1258
        %v1260 = vsel %vm702, %v1071, -inf
        %1261 = vmax.xlane.f32.xlu0 %v1260
        %v1262 = vpop.xlane.xlu0 %1261
        %v1263 = vsel %vm702, %v1072, -inf
        %1264 = vmax.xlane.f32.xlu0 %v1263
        %v1265 = vpop.xlane.xlu0 %1264
        %v1266 = vsel %vm702, %v1073, -inf
        %1267 = vmax.xlane.f32.xlu0 %v1266
        %v1268 = vpop.xlane.xlu0 %1267
        %v1269 = vsel %vm702, %v1074, -inf
        %1270 = vmax.xlane.f32.xlu0 %v1269
        %v1271 = vpop.xlane.xlu0 %1270
        %v1272 = vsel %vm702, %v1075, -inf
        %1273 = vmax.xlane.f32.xlu0 %v1272
        %v1274 = vpop.xlane.xlu0 %1273
        %v1275 = vsel %vm702, %v1076, -inf
        %1276 = vmax.xlane.f32.xlu0 %v1275
        %v1277 = vpop.xlane.xlu0 %1276
        %v1278 = vsel %vm702, %v1077, -inf
        %1279 = vmax.xlane.f32.xlu0 %v1278
        %v1280 = vpop.xlane.xlu0 %1279
        %v1281 = vsel %vm702, %v1078, -inf
        %1282 = vmax.xlane.f32.xlu0 %v1281
        %v1283 = vpop.xlane.xlu0 %1282
        %v1284 = vsel %vm702, %v1079, -inf
        %1285 = vmax.xlane.f32.xlu0 %v1284
        %v1286 = vpop.xlane.xlu0 %1285
        %v1287 = vsel %vm702, %v1080, -inf
        %1288 = vmax.xlane.f32.xlu0 %v1287
        %v1289 = vpop.xlane.xlu0 %1288
        %v1290 = vsel %vm702, %v1081, -inf
        %1291 = vmax.xlane.f32.xlu0 %v1290
        %v1292 = vpop.xlane.xlu0 %1291
        %v1293 = vsel %vm702, %v1082, -inf
        %1294 = vmax.xlane.f32.xlu0 %v1293
        %v1295 = vpop.xlane.xlu0 %1294
        %v1296 = vsel %vm702, %v1083, -inf
        %1297 = vmax.xlane.f32.xlu0 %v1296
        %v1298 = vpop.xlane.xlu0 %1297
        %v1299 = vsel %vm702, %v1084, -inf
        %1300 = vmax.xlane.f32.xlu0 %v1299
        %v1301 = vpop.xlane.xlu0 %1300
        %v1302 = vsel %vm702, %v1085, -inf
        %1303 = vmax.xlane.f32.xlu0 %v1302
        %v1304 = vpop.xlane.xlu0 %1303
        %v1305 = vsel %vm702, %v1086, -inf
        %1306 = vmax.xlane.f32.xlu0 %v1305
        %v1307 = vpop.xlane.xlu0 %1306
        %v1308 = vsel %vm702, %v1087, -inf
        %1309 = vmax.xlane.f32.xlu0 %v1308
        %v1310 = vpop.xlane.xlu0 %1309
        %v1311 = vsel %vm702, %v1088, -inf
        %1312 = vmax.xlane.f32.xlu0 %v1311
        %v1313 = vpop.xlane.xlu0 %1312
        %vm1314 = vcmask 359424
        %1315 = vst.msk [vmem:[#allocation2] sm:$0xff] %vm1314, 0.0
        %1316 = vst.msk [vmem:[#allocation2 + $0x8] sm:$0xff] %vm1314, 0.0
        %vm1317 = vcmask 357376
        %1318 = vst.msk [vmem:[#allocation2 + $0x10] sm:$0x3f] %vm1317, 0.0
        %v1351 = vadd.s32 %v1040, 4294967293
        %v1352 = vlaneseq
        %v1353 = vshrl.u32 %v1352, 7
        %v1354 = vsub.s32 %v1351, %v1353
        %v1355 = vrot.slane %v1186, %v1354
        %v1356 = vadd.s32 %v1040, 4294967285
        %v1357 = vlaneseq
        %v1358 = vshrl.u32 %v1357, 7
        %v1359 = vsub.s32 %v1356, %v1358
        %v1360 = vrot.slane %v1187, %v1359
        %vm1361 = vcmask 154712
        %v1362 = vsel %vm1361, %v1360, %v1355
        %v1363 = vlaneseq
        %v1364 = vshrl.u32 %v1363, 7
        %v1365 = vsub.s32 %v1351, %v1364
        %v1366 = vrot.slane %v1188, %v1365
        %v1367 = vlaneseq
        %v1368 = vshrl.u32 %v1367, 7
        %v1369 = vsub.s32 %v1356, %v1368
        %v1370 = vrot.slane %v1189, %v1369
        %v1371 = vsel %vm1361, %v1370, %v1366
        %v1372 = vlaneseq
        %v1373 = vshrl.u32 %v1372, 7
        %v1374 = vsub.s32 %v1351, %v1373
        %v1375 = vrot.slane %v1190, %v1374
        %v1376 = vlaneseq
        %v1377 = vshrl.u32 %v1376, 7
        %v1378 = vsub.s32 %v1356, %v1377
        %v1379 = vrot.slane %v1191, %v1378
        %v1380 = vsel %vm1361, %v1379, %v1375
        %v1381 = vlaneseq
        %v1382 = vshrl.u32 %v1381, 7
        %v1383 = vsub.s32 %v1351, %v1382
        %v1384 = vrot.slane %v1192, %v1383
        %v1385 = vlaneseq
        %v1386 = vshrl.u32 %v1385, 7
        %v1387 = vsub.s32 %v1356, %v1386
        %v1388 = vrot.slane %v1193, %v1387
        %v1389 = vsel %vm1361, %v1388, %v1384
        %v1390 = vlaneseq
        %v1391 = vshrl.u32 %v1390, 7
        %v1392 = vsub.s32 %v1351, %v1391
        %v1393 = vrot.slane %v1194, %v1392
        %v1394 = vlaneseq
        %v1395 = vshrl.u32 %v1394, 7
        %v1396 = vsub.s32 %v1356, %v1395
        %v1397 = vrot.slane %v1195, %v1396
        %v1398 = vsel %vm1361, %v1397, %v1393
        %v1399 = vlaneseq
        %v1400 = vshrl.u32 %v1399, 7
        %v1401 = vsub.s32 %v1351, %v1400
        %v1402 = vrot.slane %v1196, %v1401
        %v1403 = vlaneseq
        %v1404 = vshrl.u32 %v1403, 7
        %v1405 = vsub.s32 %v1356, %v1404
        %v1406 = vrot.slane %v1197, %v1405
        %v1407 = vsel %vm1361, %v1406, %v1402
        %v1408 = vlaneseq
        %v1409 = vshrl.u32 %v1408, 7
        %v1410 = vsub.s32 %v1351, %v1409
        %v1411 = vrot.slane %v1198, %v1410
        %v1412 = vlaneseq
        %v1413 = vshrl.u32 %v1412, 7
        %v1414 = vsub.s32 %v1356, %v1413
        %v1415 = vrot.slane %v1199, %v1414
        %v1416 = vsel %vm1361, %v1415, %v1411
        %v1417 = vlaneseq
        %v1418 = vshrl.u32 %v1417, 7
        %v1419 = vsub.s32 %v1351, %v1418
        %v1420 = vrot.slane %v1200, %v1419
        %v1421 = vlaneseq
        %v1422 = vshrl.u32 %v1421, 7
        %v1423 = vsub.s32 %v1356, %v1422
        %v1424 = vrot.slane %v1201, %v1423
        %v1425 = vsel %vm1361, %v1424, %v1420
        %v1426 = vlaneseq
        %v1427 = vshrl.u32 %v1426, 7
        %v1428 = vsub.s32 %v1351, %v1427
        %v1429 = vrot.slane %v1202, %v1428
        %v1430 = vlaneseq
        %v1431 = vshrl.u32 %v1430, 7
        %v1432 = vsub.s32 %v1356, %v1431
        %v1433 = vrot.slane %v1203, %v1432
        %v1434 = vsel %vm1361, %v1433, %v1429
        %v1435 = vlaneseq
        %v1436 = vshrl.u32 %v1435, 7
        %v1437 = vsub.s32 %v1351, %v1436
        %v1438 = vrot.slane %v1204, %v1437
        %v1439 = vlaneseq
        %v1440 = vshrl.u32 %v1439, 7
        %v1441 = vsub.s32 %v1356, %v1440
        %v1442 = vrot.slane %v1205, %v1441
        %v1443 = vsel %vm1361, %v1442, %v1438
        %v1444 = vlaneseq
        %v1445 = vshrl.u32 %v1444, 7
        %v1446 = vsub.s32 %v1351, %v1445
        %v1447 = vrot.slane %v1206, %v1446
        %v1448 = vlaneseq
        %v1449 = vshrl.u32 %v1448, 7
        %v1450 = vsub.s32 %v1356, %v1449
        %v1451 = vrot.slane %v1207, %v1450
        %v1452 = vsel %vm1361, %v1451, %v1447
        %v1453 = vlaneseq
        %v1454 = vshrl.u32 %v1453, 7
        %v1455 = vsub.s32 %v1351, %v1454
        %v1456 = vrot.slane %v1208, %v1455
        %v1457 = vlaneseq
        %v1458 = vshrl.u32 %v1457, 7
        %v1459 = vsub.s32 %v1356, %v1458
        %v1460 = vrot.slane %v1209, %v1459
        %v1461 = vsel %vm1361, %v1460, %v1456
        %v1462 = vlaneseq
        %v1463 = vshrl.u32 %v1462, 7
        %v1464 = vsub.s32 %v1351, %v1463
        %v1465 = vrot.slane %v1210, %v1464
        %v1466 = vlaneseq
        %v1467 = vshrl.u32 %v1466, 7
        %v1468 = vsub.s32 %v1356, %v1467
        %v1469 = vrot.slane %v1211, %v1468
        %v1470 = vsel %vm1361, %v1469, %v1465
        %v1471 = vlaneseq
        %v1472 = vshrl.u32 %v1471, 7
        %v1473 = vsub.s32 %v1351, %v1472
        %v1474 = vrot.slane %v1212, %v1473
        %v1475 = vlaneseq
        %v1476 = vshrl.u32 %v1475, 7
        %v1477 = vsub.s32 %v1356, %v1476
        %v1478 = vrot.slane %v1213, %v1477
        %v1479 = vsel %vm1361, %v1478, %v1474
        %v1480 = vlaneseq
        %v1481 = vshrl.u32 %v1480, 7
        %v1482 = vsub.s32 %v1351, %v1481
        %v1483 = vrot.slane %v1214, %v1482
        %v1484 = vlaneseq
        %v1485 = vshrl.u32 %v1484, 7
        %v1486 = vsub.s32 %v1356, %v1485
        %v1487 = vrot.slane %v1215, %v1486
        %v1488 = vsel %vm1361, %v1487, %v1483
        %v1489 = vlaneseq
        %v1490 = vshrl.u32 %v1489, 7
        %v1491 = vsub.s32 %v1351, %v1490
        %v1492 = vrot.slane %v1216, %v1491
        %v1493 = vlaneseq
        %v1494 = vshrl.u32 %v1493, 7
        %v1495 = vsub.s32 %v1356, %v1494
        %v1496 = vrot.slane %v1217, %v1495
        %v1497 = vsel %vm1361, %v1496, %v1492
        %vm1498 = vcmask 1041409
        %v1499 = vsel %vm1498, %v1371, %v1362
        %vm1500 = vcmask 1042434
        %v1501 = vsel %vm1500, %v1380, %v1499
        %vm1502 = vcmask 1043459
        %v1503 = vsel %vm1502, %v1389, %v1501
        %vm1504 = vcmask 1044484
        %v1505 = vsel %vm1504, %v1398, %v1503
        %vm1506 = vcmask 1045509
        %v1507 = vsel %vm1506, %v1407, %v1505
        %vm1508 = vcmask 1046534
        %v1509 = vsel %vm1508, %v1416, %v1507
        %vm1510 = vcmask 1047559
        %v1511 = vsel %vm1510, %v1425, %v1509
        %v1512 = vsel %vm1498, %v1443, %v1434
        %v1513 = vsel %vm1500, %v1452, %v1512
        %v1514 = vsel %vm1502, %v1461, %v1513
        %v1515 = vsel %vm1504, %v1470, %v1514
        %v1516 = vsel %vm1506, %v1479, %v1515
        %v1517 = vsel %vm1508, %v1488, %v1516
        %v1518 = vsel %vm1510, %v1497, %v1517
        %vm1521 = vcmask 154648
        %1522 = vst.msk [vmem:[#allocation2 + $0x3] sm:$0xff] %vm1521, %v1511
        %1523 = vst.msk [vmem:[#allocation2 + $0xb] sm:$0xff] %vm1521, %v1518
        %v1556 = vadd.s32 %v1040, 4294967271
        %v1557 = vlaneseq
        %v1558 = vshrl.u32 %v1557, 7
        %v1559 = vsub.s32 %v1556, %v1558
        %v1560 = vrot.slane %v1220, %v1559
        %v1561 = vadd.s32 %v1040, 4294967263
        %v1562 = vlaneseq
        %v1563 = vshrl.u32 %v1562, 7
        %v1564 = vsub.s32 %v1561, %v1563
        %v1565 = vrot.slane %v1223, %v1564
        %vm1566 = vcmask 335112
        %v1567 = vsel %vm1566, %v1565, %v1560
        %v1568 = vlaneseq
        %v1569 = vshrl.u32 %v1568, 7
        %v1570 = vsub.s32 %v1556, %v1569
        %v1571 = vrot.slane %v1226, %v1570
        %v1572 = vlaneseq
        %v1573 = vshrl.u32 %v1572, 7
        %v1574 = vsub.s32 %v1561, %v1573
        %v1575 = vrot.slane %v1229, %v1574
        %v1576 = vsel %vm1566, %v1575, %v1571
        %v1577 = vlaneseq
        %v1578 = vshrl.u32 %v1577, 7
        %v1579 = vsub.s32 %v1556, %v1578
        %v1580 = vrot.slane %v1232, %v1579
        %v1581 = vlaneseq
        %v1582 = vshrl.u32 %v1581, 7
        %v1583 = vsub.s32 %v1561, %v1582
        %v1584 = vrot.slane %v1235, %v1583
        %v1585 = vsel %vm1566, %v1584, %v1580
        %v1586 = vlaneseq
        %v1587 = vshrl.u32 %v1586, 7
        %v1588 = vsub.s32 %v1556, %v1587
        %v1589 = vrot.slane %v1238, %v1588
        %v1590 = vlaneseq
        %v1591 = vshrl.u32 %v1590, 7
        %v1592 = vsub.s32 %v1561, %v1591
        %v1593 = vrot.slane %v1241, %v1592
        %v1594 = vsel %vm1566, %v1593, %v1589
        %v1595 = vlaneseq
        %v1596 = vshrl.u32 %v1595, 7
        %v1597 = vsub.s32 %v1556, %v1596
        %v1598 = vrot.slane %v1244, %v1597
        %v1599 = vlaneseq
        %v1600 = vshrl.u32 %v1599, 7
        %v1601 = vsub.s32 %v1561, %v1600
        %v1602 = vrot.slane %v1247, %v1601
        %v1603 = vsel %vm1566, %v1602, %v1598
        %v1604 = vlaneseq
        %v1605 = vshrl.u32 %v1604, 7
        %v1606 = vsub.s32 %v1556, %v1605
        %v1607 = vrot.slane %v1250, %v1606
        %v1608 = vlaneseq
        %v1609 = vshrl.u32 %v1608, 7
        %v1610 = vsub.s32 %v1561, %v1609
        %v1611 = vrot.slane %v1253, %v1610
        %v1612 = vsel %vm1566, %v1611, %v1607
        %v1613 = vlaneseq
        %v1614 = vshrl.u32 %v1613, 7
        %v1615 = vsub.s32 %v1556, %v1614
        %v1616 = vrot.slane %v1256, %v1615
        %v1617 = vlaneseq
        %v1618 = vshrl.u32 %v1617, 7
        %v1619 = vsub.s32 %v1561, %v1618
        %v1620 = vrot.slane %v1259, %v1619
        %v1621 = vsel %vm1566, %v1620, %v1616
        %v1622 = vlaneseq
        %v1623 = vshrl.u32 %v1622, 7
        %v1624 = vsub.s32 %v1556, %v1623
        %v1625 = vrot.slane %v1262, %v1624
        %v1626 = vlaneseq
        %v1627 = vshrl.u32 %v1626, 7
        %v1628 = vsub.s32 %v1561, %v1627
        %v1629 = vrot.slane %v1265, %v1628
        %v1630 = vsel %vm1566, %v1629, %v1625
        %v1631 = vlaneseq
        %v1632 = vshrl.u32 %v1631, 7
        %v1633 = vsub.s32 %v1556, %v1632
        %v1634 = vrot.slane %v1268, %v1633
        %v1635 = vlaneseq
        %v1636 = vshrl.u32 %v1635, 7
        %v1637 = vsub.s32 %v1561, %v1636
        %v1638 = vrot.slane %v1271, %v1637
        %v1639 = vsel %vm1566, %v1638, %v1634
        %v1640 = vlaneseq
        %v1641 = vshrl.u32 %v1640, 7
        %v1642 = vsub.s32 %v1556, %v1641
        %v1643 = vrot.slane %v1274, %v1642
        %v1644 = vlaneseq
        %v1645 = vshrl.u32 %v1644, 7
        %v1646 = vsub.s32 %v1561, %v1645
        %v1647 = vrot.slane %v1277, %v1646
        %v1648 = vsel %vm1566, %v1647, %v1643
        %v1649 = vlaneseq
        %v1650 = vshrl.u32 %v1649, 7
        %v1651 = vsub.s32 %v1556, %v1650
        %v1652 = vrot.slane %v1280, %v1651
        %v1653 = vlaneseq
        %v1654 = vshrl.u32 %v1653, 7
        %v1655 = vsub.s32 %v1561, %v1654
        %v1656 = vrot.slane %v1283, %v1655
        %v1657 = vsel %vm1566, %v1656, %v1652
        %v1658 = vlaneseq
        %v1659 = vshrl.u32 %v1658, 7
        %v1660 = vsub.s32 %v1556, %v1659
        %v1661 = vrot.slane %v1286, %v1660
        %v1662 = vlaneseq
        %v1663 = vshrl.u32 %v1662, 7
        %v1664 = vsub.s32 %v1561, %v1663
        %v1665 = vrot.slane %v1289, %v1664
        %v1666 = vsel %vm1566, %v1665, %v1661
        %v1667 = vlaneseq
        %v1668 = vshrl.u32 %v1667, 7
        %v1669 = vsub.s32 %v1556, %v1668
        %v1670 = vrot.slane %v1292, %v1669
        %v1671 = vlaneseq
        %v1672 = vshrl.u32 %v1671, 7
        %v1673 = vsub.s32 %v1561, %v1672
        %v1674 = vrot.slane %v1295, %v1673
        %v1675 = vsel %vm1566, %v1674, %v1670
        %v1676 = vlaneseq
        %v1677 = vshrl.u32 %v1676, 7
        %v1678 = vsub.s32 %v1556, %v1677
        %v1679 = vrot.slane %v1298, %v1678
        %v1680 = vlaneseq
        %v1681 = vshrl.u32 %v1680, 7
        %v1682 = vsub.s32 %v1561, %v1681
        %v1683 = vrot.slane %v1301, %v1682
        %v1684 = vsel %vm1566, %v1683, %v1679
        %v1685 = vlaneseq
        %v1686 = vshrl.u32 %v1685, 7
        %v1687 = vsub.s32 %v1556, %v1686
        %v1688 = vrot.slane %v1304, %v1687
        %v1689 = vlaneseq
        %v1690 = vshrl.u32 %v1689, 7
        %v1691 = vsub.s32 %v1561, %v1690
        %v1692 = vrot.slane %v1307, %v1691
        %v1693 = vsel %vm1566, %v1692, %v1688
        %v1694 = vlaneseq
        %v1695 = vshrl.u32 %v1694, 7
        %v1696 = vsub.s32 %v1556, %v1695
        %v1697 = vrot.slane %v1310, %v1696
        %v1698 = vlaneseq
        %v1699 = vshrl.u32 %v1698, 7
        %v1700 = vsub.s32 %v1561, %v1699
        %v1701 = vrot.slane %v1313, %v1700
        %v1702 = vsel %vm1566, %v1701, %v1697
        %v1703 = vsel %vm1498, %v1576, %v1567
        %v1704 = vsel %vm1500, %v1585, %v1703
        %v1705 = vsel %vm1502, %v1594, %v1704
        %v1706 = vsel %vm1504, %v1603, %v1705
        %v1707 = vsel %vm1506, %v1612, %v1706
        %v1708 = vsel %vm1508, %v1621, %v1707
        %v1709 = vsel %vm1510, %v1630, %v1708
        %v1710 = vsel %vm1498, %v1648, %v1639
        %v1711 = vsel %vm1500, %v1657, %v1710
        %v1712 = vsel %vm1502, %v1666, %v1711
        %v1713 = vsel %vm1504, %v1675, %v1712
        %v1714 = vsel %vm1506, %v1684, %v1713
        %v1715 = vsel %vm1508, %v1693, %v1714
        %v1716 = vsel %vm1510, %v1702, %v1715
        %vm1719 = vcmask 335048
        %1720 = vst.msk [vmem:[#allocation2 + $0x3] sm:$0xff] %vm1719, %v1709
        %1721 = vst.msk [vmem:[#allocation2 + $0xb] sm:$0xff] %vm1719, %v1716
        %v1722 = vld [vmem:[#allocation2] sm:$0xff]
        %v1723 = vld [vmem:[#allocation2 + $0x8] sm:$0xff]
        %v1724 = vld [vmem:[#allocation2 + $0x10] sm:$0x3f]
        %v1725 = vlaneseq
        %v1726 = vshrl.u32 %v1725, 7
        %v1727 = vsub.s32 0, %v1726
        %v1728 = vrot.slane %v1026, %v1727
        %v1729 = vmul.f32 %v1722, %v1728
        %v1730 = vmul.f32 %v1723, %v1728
        %v1731 = vadd.f32 %v1729, 0.0
        %v1732 = vadd.f32 %v1730, 0.0
        %v1733 = vlaneseq
        %v1734 = vshrl.u32 %v1733, 7
        %v1735 = vsub.s32 1, %v1734
        %v1736 = vrot.slane %v1026, %v1735
        %1738 = vrot.lane.b32.xlu0 %v1736, 1
        %v1739 = vpop.permute.xlu0 %1738
        %v1741 = vmul.f32 %v1722, %v1739
        %v1742 = vmul.f32 %v1723, %v1739
        %1745 = vrot.lane.b32.xlu0 %v1741, 127
        %v1746 = vpop.permute.xlu0 %1745
        %1747 = vrot.lane.b32.xlu0 %v1742, 127
        %v1748 = vpop.permute.xlu0 %1747
        %v1751 = vadd.f32 %v1731, %v1746
        %v1752 = vadd.f32 %v1732, %v1748
        %v1753 = vlaneseq
        %v1754 = vshrl.u32 %v1753, 7
        %v1755 = vsub.s32 2, %v1754
        %v1756 = vrot.slane %v1026, %v1755
        %1758 = vrot.lane.b32.xlu0 %v1756, 2
        %v1759 = vpop.permute.xlu0 %1758
        %v1761 = vmul.f32 %v1722, %v1759
        %v1762 = vmul.f32 %v1723, %v1759
        %1765 = vrot.lane.b32.xlu0 %v1761, 126
        %v1766 = vpop.permute.xlu0 %1765
        %1767 = vrot.lane.b32.xlu0 %v1762, 126
        %v1768 = vpop.permute.xlu0 %1767
        %v1771 = vadd.f32 %v1751, %v1766
        %v1772 = vadd.f32 %v1752, %v1768
        %v1773 = vlaneseq
        %v1774 = vshrl.u32 %v1773, 7
        %v1775 = vsub.s32 3, %v1774
        %v1776 = vrot.slane %v1026, %v1775
        %1778 = vrot.lane.b32.xlu0 %v1776, 3
        %v1779 = vpop.permute.xlu0 %1778
        %v1781 = vmul.f32 %v1722, %v1779
        %v1782 = vmul.f32 %v1723, %v1779
        %1785 = vrot.lane.b32.xlu0 %v1781, 125
        %v1786 = vpop.permute.xlu0 %1785
        %1787 = vrot.lane.b32.xlu0 %v1782, 125
        %v1788 = vpop.permute.xlu0 %1787
        %v1791 = vadd.f32 %v1771, %v1786
        %v1792 = vadd.f32 %v1772, %v1788
        %v1793 = vlaneseq
        %v1794 = vshrl.u32 %v1793, 7
        %v1795 = vsub.s32 4, %v1794
        %v1796 = vrot.slane %v1026, %v1795
        %1798 = vrot.lane.b32.xlu0 %v1796, 4
        %v1799 = vpop.permute.xlu0 %1798
        %v1801 = vmul.f32 %v1722, %v1799
        %v1802 = vmul.f32 %v1723, %v1799
        %1805 = vrot.lane.b32.xlu0 %v1801, 124
        %v1806 = vpop.permute.xlu0 %1805
        %1807 = vrot.lane.b32.xlu0 %v1802, 124
        %v1808 = vpop.permute.xlu0 %1807
        %v1811 = vadd.f32 %v1791, %v1806
        %v1812 = vadd.f32 %v1792, %v1808
        %v1813 = vlaneseq
        %v1814 = vshrl.u32 %v1813, 7
        %v1815 = vsub.s32 5, %v1814
        %v1816 = vrot.slane %v1026, %v1815
        %1818 = vrot.lane.b32.xlu0 %v1816, 5
        %v1819 = vpop.permute.xlu0 %1818
        %v1821 = vmul.f32 %v1722, %v1819
        %v1822 = vmul.f32 %v1723, %v1819
        %1825 = vrot.lane.b32.xlu0 %v1821, 123
        %v1826 = vpop.permute.xlu0 %1825
        %1827 = vrot.lane.b32.xlu0 %v1822, 123
        %v1828 = vpop.permute.xlu0 %1827
        %v1831 = vadd.f32 %v1811, %v1826
        %v1832 = vadd.f32 %v1812, %v1828
        %v1833 = vlaneseq
        %v1834 = vshrl.u32 %v1833, 7
        %v1835 = vsub.s32 6, %v1834
        %v1836 = vrot.slane %v1026, %v1835
        %1838 = vrot.lane.b32.xlu0 %v1836, 6
        %v1839 = vpop.permute.xlu0 %1838
        %v1841 = vmul.f32 %v1722, %v1839
        %v1842 = vmul.f32 %v1723, %v1839
        %1845 = vrot.lane.b32.xlu0 %v1841, 122
        %v1846 = vpop.permute.xlu0 %1845
        %1847 = vrot.lane.b32.xlu0 %v1842, 122
        %v1848 = vpop.permute.xlu0 %1847
        %v1851 = vadd.f32 %v1831, %v1846
        %v1852 = vadd.f32 %v1832, %v1848
        %v1853 = vlaneseq
        %v1854 = vshrl.u32 %v1853, 7
        %v1855 = vsub.s32 7, %v1854
        %v1856 = vrot.slane %v1026, %v1855
        %v1857 = vmul.f32 %v1722, %v1856
        %v1858 = vmul.f32 %v1723, %v1856
        %v1859 = vmul.f32 %v1724, %v1856
        %vm1863 = vcmask 1046528
        %v1864 = vrot.slane %v1857, 1
        %v1865 = vrot.slane %v1858, 1
        %v1866 = vsel %vm1863, %v1864, %v1865
        %v1867 = vrot.slane %v1859, 1
        %v1868 = vsel %vm1863, %v1865, %v1867
        %v1871 = vadd.f32 %v1851, %v1866
        %v1872 = vadd.f32 %v1852, %v1868
        %v1873 = vlaneseq
        %v1874 = vshrl.u32 %v1873, 7
        %v1875 = vsub.s32 0, %v1874
        %v1876 = vrot.slane %v1027, %v1875
        %1878 = vrot.lane.b32.xlu0 %v1876, 1
        %v1879 = vpop.permute.xlu0 %1878
        %v1881 = vmul.f32 %v1722, %v1879
        %v1882 = vmul.f32 %v1723, %v1879
        %v1883 = vmul.f32 %v1724, %v1879
        %v1887 = vrot.slane %v1881, 1
        %v1888 = vrot.slane %v1882, 1
        %v1889 = vsel %vm1863, %v1887, %v1888
        %v1890 = vrot.slane %v1883, 1
        %v1891 = vsel %vm1863, %v1888, %v1890
        %1892 = vrot.lane.b32.xlu0 %v1889, 127
        %v1893 = vpop.permute.xlu0 %1892
        %1894 = vrot.lane.b32.xlu0 %v1891, 127
        %v1895 = vpop.permute.xlu0 %1894
        %v1898 = vadd.f32 %v1871, %v1893
        %v1899 = vadd.f32 %v1872, %v1895
        %v1900 = vlaneseq
        %v1901 = vshrl.u32 %v1900, 7
        %v1902 = vsub.s32 1, %v1901
        %v1903 = vrot.slane %v1027, %v1902
        %1905 = vrot.lane.b32.xlu0 %v1903, 2
        %v1906 = vpop.permute.xlu0 %1905
        %v1908 = vmul.f32 %v1722, %v1906
        %v1909 = vmul.f32 %v1723, %v1906
        %v1910 = vmul.f32 %v1724, %v1906
        %v1914 = vrot.slane %v1908, 1
        %v1915 = vrot.slane %v1909, 1
        %v1916 = vsel %vm1863, %v1914, %v1915
        %v1917 = vrot.slane %v1910, 1
        %v1918 = vsel %vm1863, %v1915, %v1917
        %1919 = vrot.lane.b32.xlu0 %v1916, 126
        %v1920 = vpop.permute.xlu0 %1919
        %1921 = vrot.lane.b32.xlu0 %v1918, 126
        %v1922 = vpop.permute.xlu0 %1921
        %v1925 = vadd.f32 %v1898, %v1920
        %v1926 = vadd.f32 %v1899, %v1922
        %v1927 = vlaneseq
        %v1928 = vshrl.u32 %v1927, 7
        %v1929 = vsub.s32 2, %v1928
        %v1930 = vrot.slane %v1027, %v1929
        %1932 = vrot.lane.b32.xlu0 %v1930, 3
        %v1933 = vpop.permute.xlu0 %1932
        %v1935 = vmul.f32 %v1722, %v1933
        %v1936 = vmul.f32 %v1723, %v1933
        %v1937 = vmul.f32 %v1724, %v1933
        %v1941 = vrot.slane %v1935, 1
        %v1942 = vrot.slane %v1936, 1
        %v1943 = vsel %vm1863, %v1941, %v1942
        %v1944 = vrot.slane %v1937, 1
        %v1945 = vsel %vm1863, %v1942, %v1944
        %1946 = vrot.lane.b32.xlu0 %v1943, 125
        %v1947 = vpop.permute.xlu0 %1946
        %1948 = vrot.lane.b32.xlu0 %v1945, 125
        %v1949 = vpop.permute.xlu0 %1948
        %v1952 = vadd.f32 %v1925, %v1947
        %v1953 = vadd.f32 %v1926, %v1949
        %v1954 = vlaneseq
        %v1955 = vshrl.u32 %v1954, 7
        %v1956 = vsub.s32 3, %v1955
        %v1957 = vrot.slane %v1027, %v1956
        %1959 = vrot.lane.b32.xlu0 %v1957, 4
        %v1960 = vpop.permute.xlu0 %1959
        %v1962 = vmul.f32 %v1722, %v1960
        %v1963 = vmul.f32 %v1723, %v1960
        %v1964 = vmul.f32 %v1724, %v1960
        %v1968 = vrot.slane %v1962, 1
        %v1969 = vrot.slane %v1963, 1
        %v1970 = vsel %vm1863, %v1968, %v1969
        %v1971 = vrot.slane %v1964, 1
        %v1972 = vsel %vm1863, %v1969, %v1971
        %1973 = vrot.lane.b32.xlu0 %v1970, 124
        %v1974 = vpop.permute.xlu0 %1973
        %1975 = vrot.lane.b32.xlu0 %v1972, 124
        %v1976 = vpop.permute.xlu0 %1975
        %v1979 = vadd.f32 %v1952, %v1974
        %v1980 = vadd.f32 %v1953, %v1976
        %v1981 = vlaneseq
        %v1982 = vshrl.u32 %v1981, 7
        %v1983 = vsub.s32 4, %v1982
        %v1984 = vrot.slane %v1027, %v1983
        %1986 = vrot.lane.b32.xlu0 %v1984, 5
        %v1987 = vpop.permute.xlu0 %1986
        %v1989 = vmul.f32 %v1722, %v1987
        %v1990 = vmul.f32 %v1723, %v1987
        %v1991 = vmul.f32 %v1724, %v1987
        %v1995 = vrot.slane %v1989, 1
        %v1996 = vrot.slane %v1990, 1
        %v1997 = vsel %vm1863, %v1995, %v1996
        %v1998 = vrot.slane %v1991, 1
        %v1999 = vsel %vm1863, %v1996, %v1998
        %2000 = vrot.lane.b32.xlu0 %v1997, 123
        %v2001 = vpop.permute.xlu0 %2000
        %2002 = vrot.lane.b32.xlu0 %v1999, 123
        %v2003 = vpop.permute.xlu0 %2002
        %v2006 = vadd.f32 %v1979, %v2001
        %v2007 = vadd.f32 %v1980, %v2003
        %v2008 = vlaneseq
        %v2009 = vshrl.u32 %v2008, 7
        %v2010 = vsub.s32 5, %v2009
        %v2011 = vrot.slane %v1027, %v2010
        %2013 = vrot.lane.b32.xlu0 %v2011, 6
        %v2014 = vpop.permute.xlu0 %2013
        %v2016 = vmul.f32 %v1722, %v2014
        %v2017 = vmul.f32 %v1723, %v2014
        %v2018 = vmul.f32 %v1724, %v2014
        %v2022 = vrot.slane %v2016, 1
        %v2023 = vrot.slane %v2017, 1
        %v2024 = vsel %vm1863, %v2022, %v2023
        %v2025 = vrot.slane %v2018, 1
        %v2026 = vsel %vm1863, %v2023, %v2025
        %2027 = vrot.lane.b32.xlu0 %v2024, 122
        %v2028 = vpop.permute.xlu0 %2027
        %2029 = vrot.lane.b32.xlu0 %v2026, 122
        %v2030 = vpop.permute.xlu0 %2029
        %v2033 = vadd.f32 %v2006, %v2028
        %v2034 = vadd.f32 %v2007, %v2030
        %v2035 = vlaneseq
        %v2036 = vshrl.u32 %v2035, 7
        %v2037 = vsub.s32 6, %v2036
        %v2038 = vrot.slane %v1027, %v2037
        %v2039 = vmul.f32 %v1722, %v2038
        %v2040 = vmul.f32 %v1723, %v2038
        %v2041 = vmul.f32 %v1724, %v2038
        %vm2045 = vcmask 1045504
        %v2046 = vrot.slane %v2039, 2
        %v2047 = vrot.slane %v2040, 2
        %v2048 = vsel %vm2045, %v2046, %v2047
        %v2049 = vrot.slane %v2041, 2
        %v2050 = vsel %vm2045, %v2047, %v2049
        %v2053 = vadd.f32 %v2033, %v2048
        %v2054 = vadd.f32 %v2034, %v2050
        %v2055 = vlaneseq
        %v2056 = vshrl.u32 %v2055, 7
        %v2057 = vsub.s32 7, %v2056
        %v2058 = vrot.slane %v1027, %v2057
        %2060 = vrot.lane.b32.xlu0 %v2058, 1
        %v2061 = vpop.permute.xlu0 %2060
        %v2063 = vmul.f32 %v1722, %v2061
        %v2064 = vmul.f32 %v1723, %v2061
        %v2065 = vmul.f32 %v1724, %v2061
        %v2069 = vrot.slane %v2063, 2
        %v2070 = vrot.slane %v2064, 2
        %v2071 = vsel %vm2045, %v2069, %v2070
        %v2072 = vrot.slane %v2065, 2
        %v2073 = vsel %vm2045, %v2070, %v2072
        %2074 = vrot.lane.b32.xlu0 %v2071, 127
        %v2075 = vpop.permute.xlu0 %2074
        %2076 = vrot.lane.b32.xlu0 %v2073, 127
        %v2077 = vpop.permute.xlu0 %2076
        %v2080 = vadd.f32 %v2053, %v2075
        %v2081 = vadd.f32 %v2054, %v2077
        %v2082 = vlaneseq
        %v2083 = vshrl.u32 %v2082, 7
        %v2084 = vsub.s32 0, %v2083
        %v2085 = vrot.slane %v1028, %v2084
        %2087 = vrot.lane.b32.xlu0 %v2085, 2
        %v2088 = vpop.permute.xlu0 %2087
        %v2090 = vmul.f32 %v1722, %v2088
        %v2091 = vmul.f32 %v1723, %v2088
        %v2092 = vmul.f32 %v1724, %v2088
        %v2096 = vrot.slane %v2090, 2
        %v2097 = vrot.slane %v2091, 2
        %v2098 = vsel %vm2045, %v2096, %v2097
        %v2099 = vrot.slane %v2092, 2
        %v2100 = vsel %vm2045, %v2097, %v2099
        %2101 = vrot.lane.b32.xlu0 %v2098, 126
        %v2102 = vpop.permute.xlu0 %2101
        %2103 = vrot.lane.b32.xlu0 %v2100, 126
        %v2104 = vpop.permute.xlu0 %2103
        %v2107 = vadd.f32 %v2080, %v2102
        %v2108 = vadd.f32 %v2081, %v2104
        %v2109 = vlaneseq
        %v2110 = vshrl.u32 %v2109, 7
        %v2111 = vsub.s32 1, %v2110
        %v2112 = vrot.slane %v1028, %v2111
        %2114 = vrot.lane.b32.xlu0 %v2112, 3
        %v2115 = vpop.permute.xlu0 %2114
        %v2117 = vmul.f32 %v1722, %v2115
        %v2118 = vmul.f32 %v1723, %v2115
        %v2119 = vmul.f32 %v1724, %v2115
        %v2123 = vrot.slane %v2117, 2
        %v2124 = vrot.slane %v2118, 2
        %v2125 = vsel %vm2045, %v2123, %v2124
        %v2126 = vrot.slane %v2119, 2
        %v2127 = vsel %vm2045, %v2124, %v2126
        %2128 = vrot.lane.b32.xlu0 %v2125, 125
        %v2129 = vpop.permute.xlu0 %2128
        %2130 = vrot.lane.b32.xlu0 %v2127, 125
        %v2131 = vpop.permute.xlu0 %2130
        %v2134 = vadd.f32 %v2107, %v2129
        %v2135 = vadd.f32 %v2108, %v2131
        %v2136 = vlaneseq
        %v2137 = vshrl.u32 %v2136, 7
        %v2138 = vsub.s32 2, %v2137
        %v2139 = vrot.slane %v1028, %v2138
        %2141 = vrot.lane.b32.xlu0 %v2139, 4
        %v2142 = vpop.permute.xlu0 %2141
        %v2144 = vmul.f32 %v1722, %v2142
        %v2145 = vmul.f32 %v1723, %v2142
        %v2146 = vmul.f32 %v1724, %v2142
        %v2150 = vrot.slane %v2144, 2
        %v2151 = vrot.slane %v2145, 2
        %v2152 = vsel %vm2045, %v2150, %v2151
        %v2153 = vrot.slane %v2146, 2
        %v2154 = vsel %vm2045, %v2151, %v2153
        %2155 = vrot.lane.b32.xlu0 %v2152, 124
        %v2156 = vpop.permute.xlu0 %2155
        %2157 = vrot.lane.b32.xlu0 %v2154, 124
        %v2158 = vpop.permute.xlu0 %2157
        %v2161 = vadd.f32 %v2134, %v2156
        %v2162 = vadd.f32 %v2135, %v2158
        %v2163 = vlaneseq
        %v2164 = vshrl.u32 %v2163, 7
        %v2165 = vsub.s32 3, %v2164
        %v2166 = vrot.slane %v1028, %v2165
        %2168 = vrot.lane.b32.xlu0 %v2166, 5
        %v2169 = vpop.permute.xlu0 %2168
        %v2171 = vmul.f32 %v1722, %v2169
        %v2172 = vmul.f32 %v1723, %v2169
        %v2173 = vmul.f32 %v1724, %v2169
        %v2177 = vrot.slane %v2171, 2
        %v2178 = vrot.slane %v2172, 2
        %v2179 = vsel %vm2045, %v2177, %v2178
        %v2180 = vrot.slane %v2173, 2
        %v2181 = vsel %vm2045, %v2178, %v2180
        %2182 = vrot.lane.b32.xlu0 %v2179, 123
        %v2183 = vpop.permute.xlu0 %2182
        %2184 = vrot.lane.b32.xlu0 %v2181, 123
        %v2185 = vpop.permute.xlu0 %2184
        %v2188 = vadd.f32 %v2161, %v2183
        %v2189 = vadd.f32 %v2162, %v2185
        %v2190 = vlaneseq
        %v2191 = vshrl.u32 %v2190, 7
        %v2192 = vsub.s32 4, %v2191
        %v2193 = vrot.slane %v1028, %v2192
        %2195 = vrot.lane.b32.xlu0 %v2193, 6
        %v2196 = vpop.permute.xlu0 %2195
        %v2198 = vmul.f32 %v1722, %v2196
        %v2199 = vmul.f32 %v1723, %v2196
        %v2200 = vmul.f32 %v1724, %v2196
        %v2204 = vrot.slane %v2198, 2
        %v2205 = vrot.slane %v2199, 2
        %v2206 = vsel %vm2045, %v2204, %v2205
        %v2207 = vrot.slane %v2200, 2
        %v2208 = vsel %vm2045, %v2205, %v2207
        %2209 = vrot.lane.b32.xlu0 %v2206, 122
        %v2210 = vpop.permute.xlu0 %2209
        %2211 = vrot.lane.b32.xlu0 %v2208, 122
        %v2212 = vpop.permute.xlu0 %2211
        %v2215 = vadd.f32 %v2188, %v2210
        %v2216 = vadd.f32 %v2189, %v2212
        %v2217 = vlaneseq
        %v2218 = vshrl.u32 %v2217, 7
        %v2219 = vsub.s32 5, %v2218
        %v2220 = vrot.slane %v1028, %v2219
        %v2221 = vmul.f32 %v1722, %v2220
        %v2222 = vmul.f32 %v1723, %v2220
        %v2223 = vmul.f32 %v1724, %v2220
        %vm2227 = vcmask 1044480
        %v2228 = vrot.slane %v2221, 3
        %v2229 = vrot.slane %v2222, 3
        %v2230 = vsel %vm2227, %v2228, %v2229
        %v2231 = vrot.slane %v2223, 3
        %v2232 = vsel %vm2227, %v2229, %v2231
        %v2235 = vadd.f32 %v2215, %v2230
        %v2236 = vadd.f32 %v2216, %v2232
        %v2237 = vlaneseq
        %v2238 = vshrl.u32 %v2237, 7
        %v2239 = vsub.s32 6, %v2238
        %v2240 = vrot.slane %v1028, %v2239
        %2242 = vrot.lane.b32.xlu0 %v2240, 1
        %v2243 = vpop.permute.xlu0 %2242
        %v2245 = vmul.f32 %v1722, %v2243
        %v2246 = vmul.f32 %v1723, %v2243
        %v2247 = vmul.f32 %v1724, %v2243
        %v2251 = vrot.slane %v2245, 3
        %v2252 = vrot.slane %v2246, 3
        %v2253 = vsel %vm2227, %v2251, %v2252
        %v2254 = vrot.slane %v2247, 3
        %v2255 = vsel %vm2227, %v2252, %v2254
        %2256 = vrot.lane.b32.xlu0 %v2253, 127
        %v2257 = vpop.permute.xlu0 %2256
        %2258 = vrot.lane.b32.xlu0 %v2255, 127
        %v2259 = vpop.permute.xlu0 %2258
        %v2262 = vadd.f32 %v2235, %v2257
        %v2263 = vadd.f32 %v2236, %v2259
        %v2264 = vlaneseq
        %v2265 = vshrl.u32 %v2264, 7
        %v2266 = vsub.s32 7, %v2265
        %v2267 = vrot.slane %v1028, %v2266
        %2269 = vrot.lane.b32.xlu0 %v2267, 2
        %v2270 = vpop.permute.xlu0 %2269
        %v2272 = vmul.f32 %v1722, %v2270
        %v2273 = vmul.f32 %v1723, %v2270
        %v2274 = vmul.f32 %v1724, %v2270
        %v2278 = vrot.slane %v2272, 3
        %v2279 = vrot.slane %v2273, 3
        %v2280 = vsel %vm2227, %v2278, %v2279
        %v2281 = vrot.slane %v2274, 3
        %v2282 = vsel %vm2227, %v2279, %v2281
        %2283 = vrot.lane.b32.xlu0 %v2280, 126
        %v2284 = vpop.permute.xlu0 %2283
        %2285 = vrot.lane.b32.xlu0 %v2282, 126
        %v2286 = vpop.permute.xlu0 %2285
        %v2289 = vadd.f32 %v2262, %v2284
        %v2290 = vadd.f32 %v2263, %v2286
        %v2291 = vlaneseq
        %v2292 = vshrl.u32 %v2291, 7
        %v2293 = vsub.s32 0, %v2292
        %v2294 = vrot.slane %v1029, %v2293
        %2296 = vrot.lane.b32.xlu0 %v2294, 3
        %v2297 = vpop.permute.xlu0 %2296
        %v2299 = vmul.f32 %v1722, %v2297
        %v2300 = vmul.f32 %v1723, %v2297
        %v2301 = vmul.f32 %v1724, %v2297
        %v2305 = vrot.slane %v2299, 3
        %v2306 = vrot.slane %v2300, 3
        %v2307 = vsel %vm2227, %v2305, %v2306
        %v2308 = vrot.slane %v2301, 3
        %v2309 = vsel %vm2227, %v2306, %v2308
        %2310 = vrot.lane.b32.xlu0 %v2307, 125
        %v2311 = vpop.permute.xlu0 %2310
        %2312 = vrot.lane.b32.xlu0 %v2309, 125
        %v2313 = vpop.permute.xlu0 %2312
        %v2316 = vadd.f32 %v2289, %v2311
        %v2317 = vadd.f32 %v2290, %v2313
        %v2318 = vlaneseq
        %v2319 = vshrl.u32 %v2318, 7
        %v2320 = vsub.s32 1, %v2319
        %v2321 = vrot.slane %v1029, %v2320
        %2323 = vrot.lane.b32.xlu0 %v2321, 4
        %v2324 = vpop.permute.xlu0 %2323
        %v2326 = vmul.f32 %v1722, %v2324
        %v2327 = vmul.f32 %v1723, %v2324
        %v2328 = vmul.f32 %v1724, %v2324
        %v2332 = vrot.slane %v2326, 3
        %v2333 = vrot.slane %v2327, 3
        %v2334 = vsel %vm2227, %v2332, %v2333
        %v2335 = vrot.slane %v2328, 3
        %v2336 = vsel %vm2227, %v2333, %v2335
        %2337 = vrot.lane.b32.xlu0 %v2334, 124
        %v2338 = vpop.permute.xlu0 %2337
        %2339 = vrot.lane.b32.xlu0 %v2336, 124
        %v2340 = vpop.permute.xlu0 %2339
        %v2343 = vadd.f32 %v2316, %v2338
        %v2344 = vadd.f32 %v2317, %v2340
        %v2345 = vlaneseq
        %v2346 = vshrl.u32 %v2345, 7
        %v2347 = vsub.s32 2, %v2346
        %v2348 = vrot.slane %v1029, %v2347
        %2350 = vrot.lane.b32.xlu0 %v2348, 5
        %v2351 = vpop.permute.xlu0 %2350
        %v2353 = vmul.f32 %v1722, %v2351
        %v2354 = vmul.f32 %v1723, %v2351
        %v2355 = vmul.f32 %v1724, %v2351
        %v2359 = vrot.slane %v2353, 3
        %v2360 = vrot.slane %v2354, 3
        %v2361 = vsel %vm2227, %v2359, %v2360
        %v2362 = vrot.slane %v2355, 3
        %v2363 = vsel %vm2227, %v2360, %v2362
        %2364 = vrot.lane.b32.xlu0 %v2361, 123
        %v2365 = vpop.permute.xlu0 %2364
        %2366 = vrot.lane.b32.xlu0 %v2363, 123
        %v2367 = vpop.permute.xlu0 %2366
        %v2370 = vadd.f32 %v2343, %v2365
        %v2371 = vadd.f32 %v2344, %v2367
        %v2372 = vlaneseq
        %v2373 = vshrl.u32 %v2372, 7
        %v2374 = vsub.s32 3, %v2373
        %v2375 = vrot.slane %v1029, %v2374
        %2377 = vrot.lane.b32.xlu0 %v2375, 6
        %v2378 = vpop.permute.xlu0 %2377
        %v2380 = vmul.f32 %v1722, %v2378
        %v2381 = vmul.f32 %v1723, %v2378
        %v2382 = vmul.f32 %v1724, %v2378
        %v2386 = vrot.slane %v2380, 3
        %v2387 = vrot.slane %v2381, 3
        %v2388 = vsel %vm2227, %v2386, %v2387
        %v2389 = vrot.slane %v2382, 3
        %v2390 = vsel %vm2227, %v2387, %v2389
        %2391 = vrot.lane.b32.xlu0 %v2388, 122
        %v2392 = vpop.permute.xlu0 %2391
        %2393 = vrot.lane.b32.xlu0 %v2390, 122
        %v2394 = vpop.permute.xlu0 %2393
        %v2397 = vadd.f32 %v2370, %v2392
        %v2398 = vadd.f32 %v2371, %v2394
        %v2399 = vlaneseq
        %v2400 = vshrl.u32 %v2399, 7
        %v2401 = vsub.s32 4, %v2400
        %v2402 = vrot.slane %v1029, %v2401
        %v2403 = vmul.f32 %v1722, %v2402
        %v2404 = vmul.f32 %v1723, %v2402
        %v2405 = vmul.f32 %v1724, %v2402
        %v2409 = vrot.slane %v2403, 4
        %v2410 = vrot.slane %v2404, 4
        %v2411 = vsel %vm473, %v2409, %v2410
        %v2412 = vrot.slane %v2405, 4
        %v2413 = vsel %vm473, %v2410, %v2412
        %v2416 = vadd.f32 %v2397, %v2411
        %v2417 = vadd.f32 %v2398, %v2413
        %v2418 = vlaneseq
        %v2419 = vshrl.u32 %v2418, 7
        %v2420 = vsub.s32 5, %v2419
        %v2421 = vrot.slane %v1029, %v2420
        %2423 = vrot.lane.b32.xlu0 %v2421, 1
        %v2424 = vpop.permute.xlu0 %2423
        %v2426 = vmul.f32 %v1722, %v2424
        %v2427 = vmul.f32 %v1723, %v2424
        %v2428 = vmul.f32 %v1724, %v2424
        %v2432 = vrot.slane %v2426, 4
        %v2433 = vrot.slane %v2427, 4
        %v2434 = vsel %vm473, %v2432, %v2433
        %v2435 = vrot.slane %v2428, 4
        %v2436 = vsel %vm473, %v2433, %v2435
        %2437 = vrot.lane.b32.xlu0 %v2434, 127
        %v2438 = vpop.permute.xlu0 %2437
        %2439 = vrot.lane.b32.xlu0 %v2436, 127
        %v2440 = vpop.permute.xlu0 %2439
        %v2443 = vadd.f32 %v2416, %v2438
        %v2444 = vadd.f32 %v2417, %v2440
        %v2445 = vlaneseq
        %v2446 = vshrl.u32 %v2445, 7
        %v2447 = vsub.s32 6, %v2446
        %v2448 = vrot.slane %v1029, %v2447
        %2450 = vrot.lane.b32.xlu0 %v2448, 2
        %v2451 = vpop.permute.xlu0 %2450
        %v2453 = vmul.f32 %v1722, %v2451
        %v2454 = vmul.f32 %v1723, %v2451
        %v2455 = vmul.f32 %v1724, %v2451
        %v2459 = vrot.slane %v2453, 4
        %v2460 = vrot.slane %v2454, 4
        %v2461 = vsel %vm473, %v2459, %v2460
        %v2462 = vrot.slane %v2455, 4
        %v2463 = vsel %vm473, %v2460, %v2462
        %2464 = vrot.lane.b32.xlu0 %v2461, 126
        %v2465 = vpop.permute.xlu0 %2464
        %2466 = vrot.lane.b32.xlu0 %v2463, 126
        %v2467 = vpop.permute.xlu0 %2466
        %v2470 = vadd.f32 %v2443, %v2465
        %v2471 = vadd.f32 %v2444, %v2467
        %v2472 = vlaneseq
        %v2473 = vshrl.u32 %v2472, 7
        %v2474 = vsub.s32 7, %v2473
        %v2475 = vrot.slane %v1029, %v2474
        %2477 = vrot.lane.b32.xlu0 %v2475, 3
        %v2478 = vpop.permute.xlu0 %2477
        %v2480 = vmul.f32 %v1722, %v2478
        %v2481 = vmul.f32 %v1723, %v2478
        %v2482 = vmul.f32 %v1724, %v2478
        %v2486 = vrot.slane %v2480, 4
        %v2487 = vrot.slane %v2481, 4
        %v2488 = vsel %vm473, %v2486, %v2487
        %v2489 = vrot.slane %v2482, 4
        %v2490 = vsel %vm473, %v2487, %v2489
        %2491 = vrot.lane.b32.xlu0 %v2488, 125
        %v2492 = vpop.permute.xlu0 %2491
        %2493 = vrot.lane.b32.xlu0 %v2490, 125
        %v2494 = vpop.permute.xlu0 %2493
        %v2497 = vadd.f32 %v2470, %v2492
        %v2498 = vadd.f32 %v2471, %v2494
        %v2499 = vlaneseq
        %v2500 = vshrl.u32 %v2499, 7
        %v2501 = vsub.s32 0, %v2500
        %v2502 = vrot.slane %v1030, %v2501
        %2504 = vrot.lane.b32.xlu0 %v2502, 4
        %v2505 = vpop.permute.xlu0 %2504
        %v2507 = vmul.f32 %v1722, %v2505
        %v2508 = vmul.f32 %v1723, %v2505
        %v2509 = vmul.f32 %v1724, %v2505
        %v2513 = vrot.slane %v2507, 4
        %v2514 = vrot.slane %v2508, 4
        %v2515 = vsel %vm473, %v2513, %v2514
        %v2516 = vrot.slane %v2509, 4
        %v2517 = vsel %vm473, %v2514, %v2516
        %2518 = vrot.lane.b32.xlu0 %v2515, 124
        %v2519 = vpop.permute.xlu0 %2518
        %2520 = vrot.lane.b32.xlu0 %v2517, 124
        %v2521 = vpop.permute.xlu0 %2520
        %v2524 = vadd.f32 %v2497, %v2519
        %v2525 = vadd.f32 %v2498, %v2521
        %v2526 = vlaneseq
        %v2527 = vshrl.u32 %v2526, 7
        %v2528 = vsub.s32 1, %v2527
        %v2529 = vrot.slane %v1030, %v2528
        %2531 = vrot.lane.b32.xlu0 %v2529, 5
        %v2532 = vpop.permute.xlu0 %2531
        %v2534 = vmul.f32 %v1722, %v2532
        %v2535 = vmul.f32 %v1723, %v2532
        %v2536 = vmul.f32 %v1724, %v2532
        %v2540 = vrot.slane %v2534, 4
        %v2541 = vrot.slane %v2535, 4
        %v2542 = vsel %vm473, %v2540, %v2541
        %v2543 = vrot.slane %v2536, 4
        %v2544 = vsel %vm473, %v2541, %v2543
        %2545 = vrot.lane.b32.xlu0 %v2542, 123
        %v2546 = vpop.permute.xlu0 %2545
        %2547 = vrot.lane.b32.xlu0 %v2544, 123
        %v2548 = vpop.permute.xlu0 %2547
        %v2551 = vadd.f32 %v2524, %v2546
        %v2552 = vadd.f32 %v2525, %v2548
        %v2553 = vlaneseq
        %v2554 = vshrl.u32 %v2553, 7
        %v2555 = vsub.s32 2, %v2554
        %v2556 = vrot.slane %v1030, %v2555
        %2558 = vrot.lane.b32.xlu0 %v2556, 6
        %v2559 = vpop.permute.xlu0 %2558
        %v2561 = vmul.f32 %v1722, %v2559
        %v2562 = vmul.f32 %v1723, %v2559
        %v2563 = vmul.f32 %v1724, %v2559
        %v2567 = vrot.slane %v2561, 4
        %v2568 = vrot.slane %v2562, 4
        %v2569 = vsel %vm473, %v2567, %v2568
        %v2570 = vrot.slane %v2563, 4
        %v2571 = vsel %vm473, %v2568, %v2570
        %2572 = vrot.lane.b32.xlu0 %v2569, 122
        %v2573 = vpop.permute.xlu0 %2572
        %2574 = vrot.lane.b32.xlu0 %v2571, 122
        %v2575 = vpop.permute.xlu0 %2574
        %v2578 = vadd.f32 %v2551, %v2573
        %v2579 = vadd.f32 %v2552, %v2575
        %v2580 = vlaneseq
        %v2581 = vshrl.u32 %v2580, 7
        %v2582 = vsub.s32 3, %v2581
        %v2583 = vrot.slane %v1030, %v2582
        %v2584 = vmul.f32 %v1722, %v2583
        %v2585 = vmul.f32 %v1723, %v2583
        %v2586 = vmul.f32 %v1724, %v2583
        %vm2590 = vcmask 1042432
        %v2591 = vrot.slane %v2584, 5
        %v2592 = vrot.slane %v2585, 5
        %v2593 = vsel %vm2590, %v2591, %v2592
        %v2594 = vrot.slane %v2586, 5
        %v2595 = vsel %vm2590, %v2592, %v2594
        %v2598 = vadd.f32 %v2578, %v2593
        %v2599 = vadd.f32 %v2579, %v2595
        %v2600 = vlaneseq
        %v2601 = vshrl.u32 %v2600, 7
        %v2602 = vsub.s32 4, %v2601
        %v2603 = vrot.slane %v1030, %v2602
        %2605 = vrot.lane.b32.xlu0 %v2603, 1
        %v2606 = vpop.permute.xlu0 %2605
        %v2608 = vmul.f32 %v1722, %v2606
        %v2609 = vmul.f32 %v1723, %v2606
        %v2610 = vmul.f32 %v1724, %v2606
        %v2614 = vrot.slane %v2608, 5
        %v2615 = vrot.slane %v2609, 5
        %v2616 = vsel %vm2590, %v2614, %v2615
        %v2617 = vrot.slane %v2610, 5
        %v2618 = vsel %vm2590, %v2615, %v2617
        %2619 = vrot.lane.b32.xlu0 %v2616, 127
        %v2620 = vpop.permute.xlu0 %2619
        %2621 = vrot.lane.b32.xlu0 %v2618, 127
        %v2622 = vpop.permute.xlu0 %2621
        %v2625 = vadd.f32 %v2598, %v2620
        %v2626 = vadd.f32 %v2599, %v2622
        %v2627 = vlaneseq
        %v2628 = vshrl.u32 %v2627, 7
        %v2629 = vsub.s32 5, %v2628
        %v2630 = vrot.slane %v1030, %v2629
        %2632 = vrot.lane.b32.xlu0 %v2630, 2
        %v2633 = vpop.permute.xlu0 %2632
        %v2635 = vmul.f32 %v1722, %v2633
        %v2636 = vmul.f32 %v1723, %v2633
        %v2637 = vmul.f32 %v1724, %v2633
        %v2641 = vrot.slane %v2635, 5
        %v2642 = vrot.slane %v2636, 5
        %v2643 = vsel %vm2590, %v2641, %v2642
        %v2644 = vrot.slane %v2637, 5
        %v2645 = vsel %vm2590, %v2642, %v2644
        %2646 = vrot.lane.b32.xlu0 %v2643, 126
        %v2647 = vpop.permute.xlu0 %2646
        %2648 = vrot.lane.b32.xlu0 %v2645, 126
        %v2649 = vpop.permute.xlu0 %2648
        %v2652 = vadd.f32 %v2625, %v2647
        %v2653 = vadd.f32 %v2626, %v2649
        %v2654 = vlaneseq
        %v2655 = vshrl.u32 %v2654, 7
        %v2656 = vsub.s32 6, %v2655
        %v2657 = vrot.slane %v1030, %v2656
        %2659 = vrot.lane.b32.xlu0 %v2657, 3
        %v2660 = vpop.permute.xlu0 %2659
        %v2662 = vmul.f32 %v1722, %v2660
        %v2663 = vmul.f32 %v1723, %v2660
        %v2664 = vmul.f32 %v1724, %v2660
        %v2668 = vrot.slane %v2662, 5
        %v2669 = vrot.slane %v2663, 5
        %v2670 = vsel %vm2590, %v2668, %v2669
        %v2671 = vrot.slane %v2664, 5
        %v2672 = vsel %vm2590, %v2669, %v2671
        %2673 = vrot.lane.b32.xlu0 %v2670, 125
        %v2674 = vpop.permute.xlu0 %2673
        %2675 = vrot.lane.b32.xlu0 %v2672, 125
        %v2676 = vpop.permute.xlu0 %2675
        %v2679 = vadd.f32 %v2652, %v2674
        %v2680 = vadd.f32 %v2653, %v2676
        %v2681 = vlaneseq
        %v2682 = vshrl.u32 %v2681, 7
        %v2683 = vsub.s32 7, %v2682
        %v2684 = vrot.slane %v1030, %v2683
        %2686 = vrot.lane.b32.xlu0 %v2684, 4
        %v2687 = vpop.permute.xlu0 %2686
        %v2689 = vmul.f32 %v1722, %v2687
        %v2690 = vmul.f32 %v1723, %v2687
        %v2691 = vmul.f32 %v1724, %v2687
        %v2695 = vrot.slane %v2689, 5
        %v2696 = vrot.slane %v2690, 5
        %v2697 = vsel %vm2590, %v2695, %v2696
        %v2698 = vrot.slane %v2691, 5
        %v2699 = vsel %vm2590, %v2696, %v2698
        %2700 = vrot.lane.b32.xlu0 %v2697, 124
        %v2701 = vpop.permute.xlu0 %2700
        %2702 = vrot.lane.b32.xlu0 %v2699, 124
        %v2703 = vpop.permute.xlu0 %2702
        %v2706 = vadd.f32 %v2679, %v2701
        %v2707 = vadd.f32 %v2680, %v2703
        %v2708 = vlaneseq
        %v2709 = vshrl.u32 %v2708, 7
        %v2710 = vsub.s32 0, %v2709
        %v2711 = vrot.slane %v1031, %v2710
        %2713 = vrot.lane.b32.xlu0 %v2711, 5
        %v2714 = vpop.permute.xlu0 %2713
        %v2716 = vmul.f32 %v1722, %v2714
        %v2717 = vmul.f32 %v1723, %v2714
        %v2718 = vmul.f32 %v1724, %v2714
        %v2722 = vrot.slane %v2716, 5
        %v2723 = vrot.slane %v2717, 5
        %v2724 = vsel %vm2590, %v2722, %v2723
        %v2725 = vrot.slane %v2718, 5
        %v2726 = vsel %vm2590, %v2723, %v2725
        %2727 = vrot.lane.b32.xlu0 %v2724, 123
        %v2728 = vpop.permute.xlu0 %2727
        %2729 = vrot.lane.b32.xlu0 %v2726, 123
        %v2730 = vpop.permute.xlu0 %2729
        %v2733 = vadd.f32 %v2706, %v2728
        %v2734 = vadd.f32 %v2707, %v2730
        %v2735 = vlaneseq
        %v2736 = vshrl.u32 %v2735, 7
        %v2737 = vsub.s32 1, %v2736
        %v2738 = vrot.slane %v1031, %v2737
        %2740 = vrot.lane.b32.xlu0 %v2738, 6
        %v2741 = vpop.permute.xlu0 %2740
        %v2743 = vmul.f32 %v1722, %v2741
        %v2744 = vmul.f32 %v1723, %v2741
        %v2745 = vmul.f32 %v1724, %v2741
        %v2749 = vrot.slane %v2743, 5
        %v2750 = vrot.slane %v2744, 5
        %v2751 = vsel %vm2590, %v2749, %v2750
        %v2752 = vrot.slane %v2745, 5
        %v2753 = vsel %vm2590, %v2750, %v2752
        %2754 = vrot.lane.b32.xlu0 %v2751, 122
        %v2755 = vpop.permute.xlu0 %2754
        %2756 = vrot.lane.b32.xlu0 %v2753, 122
        %v2757 = vpop.permute.xlu0 %2756
        %v2760 = vadd.f32 %v2733, %v2755
        %v2761 = vadd.f32 %v2734, %v2757
        %v2762 = vlaneseq
        %v2763 = vshrl.u32 %v2762, 7
        %v2764 = vsub.s32 2, %v2763
        %v2765 = vrot.slane %v1031, %v2764
        %v2766 = vmul.f32 %v1722, %v2765
        %v2767 = vmul.f32 %v1723, %v2765
        %v2768 = vmul.f32 %v1724, %v2765
        %v2772 = vrot.slane %v2766, 6
        %v2773 = vrot.slane %v2767, 6
        %v2774 = vsel %vm942, %v2772, %v2773
        %v2775 = vrot.slane %v2768, 6
        %v2776 = vsel %vm942, %v2773, %v2775
        %v2779 = vadd.f32 %v2760, %v2774
        %v2780 = vadd.f32 %v2761, %v2776
        %v2781 = vlaneseq
        %v2782 = vshrl.u32 %v2781, 7
        %v2783 = vsub.s32 3, %v2782
        %v2784 = vrot.slane %v1031, %v2783
        %2786 = vrot.lane.b32.xlu0 %v2784, 1
        %v2787 = vpop.permute.xlu0 %2786
        %v2789 = vmul.f32 %v1722, %v2787
        %v2790 = vmul.f32 %v1723, %v2787
        %v2791 = vmul.f32 %v1724, %v2787
        %v2795 = vrot.slane %v2789, 6
        %v2796 = vrot.slane %v2790, 6
        %v2797 = vsel %vm942, %v2795, %v2796
        %v2798 = vrot.slane %v2791, 6
        %v2799 = vsel %vm942, %v2796, %v2798
        %2800 = vrot.lane.b32.xlu0 %v2797, 127
        %v2801 = vpop.permute.xlu0 %2800
        %2802 = vrot.lane.b32.xlu0 %v2799, 127
        %v2803 = vpop.permute.xlu0 %2802
        %v2806 = vadd.f32 %v2779, %v2801
        %v2807 = vadd.f32 %v2780, %v2803
        %v2808 = vlaneseq
        %v2809 = vshrl.u32 %v2808, 7
        %v2810 = vsub.s32 4, %v2809
        %v2811 = vrot.slane %v1031, %v2810
        %2813 = vrot.lane.b32.xlu0 %v2811, 2
        %v2814 = vpop.permute.xlu0 %2813
        %v2816 = vmul.f32 %v1722, %v2814
        %v2817 = vmul.f32 %v1723, %v2814
        %v2818 = vmul.f32 %v1724, %v2814
        %v2822 = vrot.slane %v2816, 6
        %v2823 = vrot.slane %v2817, 6
        %v2824 = vsel %vm942, %v2822, %v2823
        %v2825 = vrot.slane %v2818, 6
        %v2826 = vsel %vm942, %v2823, %v2825
        %2827 = vrot.lane.b32.xlu0 %v2824, 126
        %v2828 = vpop.permute.xlu0 %2827
        %2829 = vrot.lane.b32.xlu0 %v2826, 126
        %v2830 = vpop.permute.xlu0 %2829
        %v2833 = vadd.f32 %v2806, %v2828
        %v2834 = vadd.f32 %v2807, %v2830
        %v2835 = vlaneseq
        %v2836 = vshrl.u32 %v2835, 7
        %v2837 = vsub.s32 5, %v2836
        %v2838 = vrot.slane %v1031, %v2837
        %2840 = vrot.lane.b32.xlu0 %v2838, 3
        %v2841 = vpop.permute.xlu0 %2840
        %v2843 = vmul.f32 %v1722, %v2841
        %v2844 = vmul.f32 %v1723, %v2841
        %v2845 = vmul.f32 %v1724, %v2841
        %v2849 = vrot.slane %v2843, 6
        %v2850 = vrot.slane %v2844, 6
        %v2851 = vsel %vm942, %v2849, %v2850
        %v2852 = vrot.slane %v2845, 6
        %v2853 = vsel %vm942, %v2850, %v2852
        %2854 = vrot.lane.b32.xlu0 %v2851, 125
        %v2855 = vpop.permute.xlu0 %2854
        %2856 = vrot.lane.b32.xlu0 %v2853, 125
        %v2857 = vpop.permute.xlu0 %2856
        %v2860 = vadd.f32 %v2833, %v2855
        %v2861 = vadd.f32 %v2834, %v2857
        %v2862 = vlaneseq
        %v2863 = vshrl.u32 %v2862, 7
        %v2864 = vsub.s32 6, %v2863
        %v2865 = vrot.slane %v1031, %v2864
        %2867 = vrot.lane.b32.xlu0 %v2865, 4
        %v2868 = vpop.permute.xlu0 %2867
        %v2870 = vmul.f32 %v1722, %v2868
        %v2871 = vmul.f32 %v1723, %v2868
        %v2872 = vmul.f32 %v1724, %v2868
        %v2876 = vrot.slane %v2870, 6
        %v2877 = vrot.slane %v2871, 6
        %v2878 = vsel %vm942, %v2876, %v2877
        %v2879 = vrot.slane %v2872, 6
        %v2880 = vsel %vm942, %v2877, %v2879
        %2881 = vrot.lane.b32.xlu0 %v2878, 124
        %v2882 = vpop.permute.xlu0 %2881
        %2883 = vrot.lane.b32.xlu0 %v2880, 124
        %v2884 = vpop.permute.xlu0 %2883
        %v2887 = vadd.f32 %v2860, %v2882
        %v2888 = vadd.f32 %v2861, %v2884
        %v2889 = vlaneseq
        %v2890 = vshrl.u32 %v2889, 7
        %v2891 = vsub.s32 7, %v2890
        %v2892 = vrot.slane %v1031, %v2891
        %2894 = vrot.lane.b32.xlu0 %v2892, 5
        %v2895 = vpop.permute.xlu0 %2894
        %v2897 = vmul.f32 %v1722, %v2895
        %v2898 = vmul.f32 %v1723, %v2895
        %v2899 = vmul.f32 %v1724, %v2895
        %v2903 = vrot.slane %v2897, 6
        %v2904 = vrot.slane %v2898, 6
        %v2905 = vsel %vm942, %v2903, %v2904
        %v2906 = vrot.slane %v2899, 6
        %v2907 = vsel %vm942, %v2904, %v2906
        %2908 = vrot.lane.b32.xlu0 %v2905, 123
        %v2909 = vpop.permute.xlu0 %2908
        %2910 = vrot.lane.b32.xlu0 %v2907, 123
        %v2911 = vpop.permute.xlu0 %2910
        %v2914 = vadd.f32 %v2887, %v2909
        %v2915 = vadd.f32 %v2888, %v2911
        %v2916 = vlaneseq
        %v2917 = vshrl.u32 %v2916, 7
        %v2918 = vsub.s32 0, %v2917
        %v2919 = vrot.slane %v1032, %v2918
        %2921 = vrot.lane.b32.xlu0 %v2919, 6
        %v2922 = vpop.permute.xlu0 %2921
        %v2924 = vmul.f32 %v1722, %v2922
        %v2925 = vmul.f32 %v1723, %v2922
        %v2926 = vmul.f32 %v1724, %v2922
        %v2930 = vrot.slane %v2924, 6
        %v2931 = vrot.slane %v2925, 6
        %v2932 = vsel %vm942, %v2930, %v2931
        %v2933 = vrot.slane %v2926, 6
        %v2934 = vsel %vm942, %v2931, %v2933
        %2935 = vrot.lane.b32.xlu0 %v2932, 122
        %v2936 = vpop.permute.xlu0 %2935
        %2937 = vrot.lane.b32.xlu0 %v2934, 122
        %v2938 = vpop.permute.xlu0 %2937
        %v2941 = vadd.f32 %v2914, %v2936
        %v2942 = vadd.f32 %v2915, %v2938
        %2945 = vrot.lane.b32.xlu0 %v2941, 106
        %v2946 = vpop.permute.xlu0 %2945
        %2947 = vrot.lane.b32.xlu0 %v2942, 106
        %v2948 = vpop.permute.xlu0 %2947
        %v2951 = vadd.f32 %v2941, %v2946
        %v2952 = vadd.f32 %v2942, %v2948
        %v2953 = vstv %s1033
        %v2954 = vadd.f32 %v2951, %v2953
        %v2955 = vadd.f32 %v2952, %v2953
        %v2956 = vxor.u32 %v2954, 2147483648
        %v2957 = vxor.u32 %v2955, 2147483648
        %v2958 = vmul.f32 %v2956, 1.442695
        %v2959 = vpow.pop %v2958
        %v2960 = vmul.f32 %v2957, 1.442695
        %v2961 = vpow.pop %v2960
        %v2962 = vadd.f32 %v2959, 1.0
        %v2963 = vadd.f32 %v2961, 1.0
        %v2964 = vrcp.pop %v2962
        %v2965 = vmul.f32 1.0, %v2964
        %v2966 = vrcp.pop %v2963
        %v2967 = vmul.f32 1.0, %v2966
        %v2968 = vlaneseq
        %v2969 = vshrl.u32 %v2968, 7
        %v2970 = vsub.s32 0, %v2969
        %v2971 = vrot.slane %v2965, %v2970
        %2973 = vbcast.lane.b32.xlu0 %v2971, 256
        %v2974 = vpop.permute.xlu0 %2973
        %s2976 = sor.u32 256, 8
        %2977 = vbcast.lane.b32.xlu0 %v2971, %s2976
        %v2978 = vpop.permute.xlu0 %2977
        %v2979 = vlaneseq
        %v2980 = vshrl.u32 %v2979, 7
        %v2981 = vsub.s32 1, %v2980
        %v2982 = vrot.slane %v2965, %v2981
        %2984 = vbcast.lane.b32.xlu0 %v2982, 256
        %v2985 = vpop.permute.xlu0 %2984
        %s2987 = sor.u32 256, 8
        %2988 = vbcast.lane.b32.xlu0 %v2982, %s2987
        %v2989 = vpop.permute.xlu0 %2988
        %v2990 = vlaneseq
        %v2991 = vshrl.u32 %v2990, 7
        %v2992 = vsub.s32 2, %v2991
        %v2993 = vrot.slane %v2965, %v2992
        %2995 = vbcast.lane.b32.xlu0 %v2993, 256
        %v2996 = vpop.permute.xlu0 %2995
        %s2998 = sor.u32 256, 8
        %2999 = vbcast.lane.b32.xlu0 %v2993, %s2998
        %v3000 = vpop.permute.xlu0 %2999
        %v3001 = vlaneseq
        %v3002 = vshrl.u32 %v3001, 7
        %v3003 = vsub.s32 3, %v3002
        %v3004 = vrot.slane %v2965, %v3003
        %3006 = vbcast.lane.b32.xlu0 %v3004, 256
        %v3007 = vpop.permute.xlu0 %3006
        %s3009 = sor.u32 256, 8
        %3010 = vbcast.lane.b32.xlu0 %v3004, %s3009
        %v3011 = vpop.permute.xlu0 %3010
        %v3012 = vlaneseq
        %v3013 = vshrl.u32 %v3012, 7
        %v3014 = vsub.s32 4, %v3013
        %v3015 = vrot.slane %v2965, %v3014
        %3017 = vbcast.lane.b32.xlu0 %v3015, 256
        %v3018 = vpop.permute.xlu0 %3017
        %s3020 = sor.u32 256, 8
        %3021 = vbcast.lane.b32.xlu0 %v3015, %s3020
        %v3022 = vpop.permute.xlu0 %3021
        %v3023 = vlaneseq
        %v3024 = vshrl.u32 %v3023, 7
        %v3025 = vsub.s32 5, %v3024
        %v3026 = vrot.slane %v2965, %v3025
        %3028 = vbcast.lane.b32.xlu0 %v3026, 256
        %v3029 = vpop.permute.xlu0 %3028
        %s3031 = sor.u32 256, 8
        %3032 = vbcast.lane.b32.xlu0 %v3026, %s3031
        %v3033 = vpop.permute.xlu0 %3032
        %v3034 = vlaneseq
        %v3035 = vshrl.u32 %v3034, 7
        %v3036 = vsub.s32 6, %v3035
        %v3037 = vrot.slane %v2965, %v3036
        %3039 = vbcast.lane.b32.xlu0 %v3037, 256
        %v3040 = vpop.permute.xlu0 %3039
        %s3042 = sor.u32 256, 8
        %3043 = vbcast.lane.b32.xlu0 %v3037, %s3042
        %v3044 = vpop.permute.xlu0 %3043
        %v3045 = vlaneseq
        %v3046 = vshrl.u32 %v3045, 7
        %v3047 = vsub.s32 7, %v3046
        %v3048 = vrot.slane %v2965, %v3047
        %3050 = vbcast.lane.b32.xlu0 %v3048, 256
        %v3051 = vpop.permute.xlu0 %3050
        %s3053 = sor.u32 256, 8
        %3054 = vbcast.lane.b32.xlu0 %v3048, %s3053
        %v3055 = vpop.permute.xlu0 %3054
        %v3056 = vlaneseq
        %v3057 = vshrl.u32 %v3056, 7
        %v3058 = vsub.s32 0, %v3057
        %v3059 = vrot.slane %v2967, %v3058
        %3061 = vbcast.lane.b32.xlu0 %v3059, 256
        %v3062 = vpop.permute.xlu0 %3061
        %s3064 = sor.u32 256, 8
        %3065 = vbcast.lane.b32.xlu0 %v3059, %s3064
        %v3066 = vpop.permute.xlu0 %3065
        %v3067 = vlaneseq
        %v3068 = vshrl.u32 %v3067, 7
        %v3069 = vsub.s32 1, %v3068
        %v3070 = vrot.slane %v2967, %v3069
        %3072 = vbcast.lane.b32.xlu0 %v3070, 256
        %v3073 = vpop.permute.xlu0 %3072
        %s3075 = sor.u32 256, 8
        %3076 = vbcast.lane.b32.xlu0 %v3070, %s3075
        %v3077 = vpop.permute.xlu0 %3076
        %v3078 = vlaneseq
        %v3079 = vshrl.u32 %v3078, 7
        %v3080 = vsub.s32 2, %v3079
        %v3081 = vrot.slane %v2967, %v3080
        %3083 = vbcast.lane.b32.xlu0 %v3081, 256
        %v3084 = vpop.permute.xlu0 %3083
        %s3086 = sor.u32 256, 8
        %3087 = vbcast.lane.b32.xlu0 %v3081, %s3086
        %v3088 = vpop.permute.xlu0 %3087
        %v3089 = vlaneseq
        %v3090 = vshrl.u32 %v3089, 7
        %v3091 = vsub.s32 3, %v3090
        %v3092 = vrot.slane %v2967, %v3091
        %3094 = vbcast.lane.b32.xlu0 %v3092, 256
        %v3095 = vpop.permute.xlu0 %3094
        %s3097 = sor.u32 256, 8
        %3098 = vbcast.lane.b32.xlu0 %v3092, %s3097
        %v3099 = vpop.permute.xlu0 %3098
        %v3100 = vlaneseq
        %v3101 = vshrl.u32 %v3100, 7
        %v3102 = vsub.s32 4, %v3101
        %v3103 = vrot.slane %v2967, %v3102
        %3105 = vbcast.lane.b32.xlu0 %v3103, 256
        %v3106 = vpop.permute.xlu0 %3105
        %s3108 = sor.u32 256, 8
        %3109 = vbcast.lane.b32.xlu0 %v3103, %s3108
        %v3110 = vpop.permute.xlu0 %3109
        %v3111 = vlaneseq
        %v3112 = vshrl.u32 %v3111, 7
        %v3113 = vsub.s32 5, %v3112
        %v3114 = vrot.slane %v2967, %v3113
        %3116 = vbcast.lane.b32.xlu0 %v3114, 256
        %v3117 = vpop.permute.xlu0 %3116
        %s3119 = sor.u32 256, 8
        %3120 = vbcast.lane.b32.xlu0 %v3114, %s3119
        %v3121 = vpop.permute.xlu0 %3120
        %v3122 = vlaneseq
        %v3123 = vshrl.u32 %v3122, 7
        %v3124 = vsub.s32 6, %v3123
        %v3125 = vrot.slane %v2967, %v3124
        %3127 = vbcast.lane.b32.xlu0 %v3125, 256
        %v3128 = vpop.permute.xlu0 %3127
        %s3130 = sor.u32 256, 8
        %3131 = vbcast.lane.b32.xlu0 %v3125, %s3130
        %v3132 = vpop.permute.xlu0 %3131
        %v3133 = vlaneseq
        %v3134 = vshrl.u32 %v3133, 7
        %v3135 = vsub.s32 7, %v3134
        %v3136 = vrot.slane %v2967, %v3135
        %3138 = vbcast.lane.b32.xlu0 %v3136, 256
        %v3139 = vpop.permute.xlu0 %3138
        %s3141 = sor.u32 256, 8
        %3142 = vbcast.lane.b32.xlu0 %v3136, %s3141
        %v3143 = vpop.permute.xlu0 %3142
        %v3144 = vmul.f32 %v1057, %v2974
        %v3145 = vmul.f32 %v1058, %v2978
        %v3146 = vmul.f32 %v1059, %v2985
        %v3147 = vmul.f32 %v1060, %v2989
        %v3148 = vmul.f32 %v1061, %v2996
        %v3149 = vmul.f32 %v1062, %v3000
        %v3150 = vmul.f32 %v1063, %v3007
        %v3151 = vmul.f32 %v1064, %v3011
        %v3152 = vmul.f32 %v1065, %v3018
        %v3153 = vmul.f32 %v1066, %v3022
        %v3154 = vmul.f32 %v1067, %v3029
        %v3155 = vmul.f32 %v1068, %v3033
        %v3156 = vmul.f32 %v1069, %v3040
        %v3157 = vmul.f32 %v1070, %v3044
        %v3158 = vmul.f32 %v1071, %v3051
        %v3159 = vmul.f32 %v1072, %v3055
        %v3160 = vmul.f32 %v1073, %v3062
        %v3161 = vmul.f32 %v1074, %v3066
        %v3162 = vmul.f32 %v1075, %v3073
        %v3163 = vmul.f32 %v1076, %v3077
        %v3164 = vmul.f32 %v1077, %v3084
        %v3165 = vmul.f32 %v1078, %v3088
        %v3166 = vmul.f32 %v1079, %v3095
        %v3167 = vmul.f32 %v1080, %v3099
        %v3168 = vmul.f32 %v1081, %v3106
        %v3169 = vmul.f32 %v1082, %v3110
        %v3170 = vmul.f32 %v1083, %v3117
        %v3171 = vmul.f32 %v1084, %v3121
        %v3172 = vmul.f32 %v1085, %v3128
        %v3173 = vmul.f32 %v1086, %v3132
        %v3174 = vmul.f32 %v1087, %v3139
        %v3175 = vmul.f32 %v1088, %v3143
        %v3177 = vsel %vm702, %v3144, 0
        %v3180 = vsel %vm702, %v3145, 0
        %v3183 = vsel %vm702, %v3146, 0
        %v3186 = vsel %vm702, %v3147, 0
        %v3189 = vsel %vm702, %v3148, 0
        %v3192 = vsel %vm702, %v3149, 0
        %v3195 = vsel %vm702, %v3150, 0
        %v3198 = vsel %vm702, %v3151, 0
        %v3201 = vsel %vm702, %v3152, 0
        %v3204 = vsel %vm702, %v3153, 0
        %v3207 = vsel %vm702, %v3154, 0
        %v3210 = vsel %vm702, %v3155, 0
        %v3213 = vsel %vm702, %v3156, 0
        %v3216 = vsel %vm702, %v3157, 0
        %v3219 = vsel %vm702, %v3158, 0
        %v3222 = vsel %vm702, %v3159, 0
        %v3225 = vsel %vm702, %v3160, 0
        %v3228 = vsel %vm702, %v3161, 0
        %v3231 = vsel %vm702, %v3162, 0
        %v3234 = vsel %vm702, %v3163, 0
        %v3237 = vsel %vm702, %v3164, 0
        %v3240 = vsel %vm702, %v3165, 0
        %v3243 = vsel %vm702, %v3166, 0
        %v3246 = vsel %vm702, %v3167, 0
        %v3249 = vsel %vm702, %v3168, 0
        %v3252 = vsel %vm702, %v3169, 0
        %v3255 = vsel %vm702, %v3170, 0
        %v3258 = vsel %vm702, %v3171, 0
        %v3261 = vsel %vm702, %v3172, 0
        %v3264 = vsel %vm702, %v3173, 0
        %v3267 = vsel %vm702, %v3174, 0
        %v3270 = vsel %vm702, %v3175, 0
        %3272 = vmatprep.subr.mxu0 0.0
        %3273 = vmatpush1.msra.mxu0 %v1049
        %3274 = vmatprep.subr.mxu0 0.0
        %3275 = vmatpush1.msra.mxu0 %v1050
        %3276 = vmatprep.subr.mxu0 0.0
        %3277 = vmatpush1.msra.mxu0 %v1051
        %3278 = vmatprep.subr.mxu0 0.0
        %3279 = vmatpush1.msra.mxu0 %v1052
        %3280 = vmatprep.subr.mxu0 0.0
        %3281 = vmatpush1.msra.mxu0 0.0
        %3282 = vmatprep.subr.mxu0 0.0
        %3283 = vmatpush1.msra.mxu0 0.0
        %3284 = vmatprep.subr.mxu0 0.0
        %3285 = vmatpush1.msra.mxu0 0.0
        %3286 = vmatprep.subr.mxu0 0.0
        %3287 = vmatpush1.msra.mxu0 0.0
        %3288 = vmatprep.subr.mxu0 0.0
        %3289 = vmatpush1.msra.mxu0 0.0
        %3290 = vmatprep.subr.mxu0 0.0
        %3291 = vmatpush1.msra.mxu0 0.0
        %3292 = vmatprep.subr.mxu0 0.0
        %3293 = vmatpush1.msra.mxu0 0.0
        %3294 = vmatprep.subr.mxu0 0.0
        %3295 = vmatpush1.msra.mxu0 0.0
        %3296 = vmatprep.subr.mxu0 0.0
        %3297 = vmatpush1.msra.mxu0 0.0
        %3298 = vmatprep.subr.mxu0 0.0
        %3299 = vmatpush1.msra.mxu0 0.0
        %3300 = vmatprep.subr.mxu0 0.0
        %3301 = vmatpush1.msra.mxu0 0.0
        %3302 = vmatprep.subr.mxu0 0.0
        %3303 = vmatpush1.msra.mxu0 0.0
        %3304 = vmatprep.subr.mxu0 0.0
        %3305 = vmatpush1.msra.mxu0 0.0
        %3306 = vmatprep.subr.mxu0 0.0
        %3307 = vmatpush1.msra.mxu0 0.0
        %3308 = vmatprep.subr.mxu0 0.0
        %3309 = vmatpush1.msra.mxu0 0.0
        %3310 = vmatprep.subr.mxu0 0.0
        %3311 = vmatpush1.msra.mxu0 0.0
        %3312 = vmatprep.subr.mxu0 0.0
        %3313 = vmatpush1.msra.mxu0 0.0
        %3314 = vmatprep.subr.mxu0 0.0
        %3315 = vmatpush1.msra.mxu0 0.0
        %3316 = vmatprep.subr.mxu0 0.0
        %3317 = vmatpush1.msra.mxu0 0.0
        %3318 = vmatprep.subr.mxu0 0.0
        %3319 = vmatpush1.msra.mxu0 0.0
        %3320 = vmatprep.subr.mxu0 0.0
        %3321 = vmatpush1.msra.mxu0 0.0
        %3322 = vmatprep.subr.mxu0 0.0
        %3323 = vmatpush1.msra.mxu0 0.0
        %3324 = vmatprep.subr.mxu0 0.0
        %3325 = vmatpush1.msra.mxu0 0.0
        %3326 = vmatprep.subr.mxu0 0.0
        %3327 = vmatpush1.msra.mxu0 0.0
        %3328 = vmatprep.subr.mxu0 0.0
        %3329 = vmatpush1.msra.mxu0 0.0
        %3330 = vmatprep.subr.mxu0 0.0
        %3331 = vmatpush1.msra.mxu0 0.0
        %3332 = vmatprep.subr.mxu0 0.0
        %3333 = vmatpush1.msra.mxu0 0.0
        %3334 = vmatprep.subr.mxu0 0.0
        %3335 = vmatpush1.msra.mxu0 0.0
        %3336 = vmatprep.mubr.f32.mxu0 0.0
        %3337 = vmatmul.mubr.f32.gmra.mrb[0].mxu0 %v3177
        %v3338 = vpop.f32.mrb[0].mxu0
        %v3339 = vadd.f32 0.0, %v3338
        %v3340 = vpop.f32.mrb[0].mxu0
        %3341 = vmatprep.mubr.f32.mxu0 0.0
        %3342 = vmatmul.mubr.f32.gmra.mrb[0].mxu0 %v3180
        %v3343 = vpop.f32.mrb[0].mxu0
        %v3344 = vadd.f32 0.0, %v3343
        %v3345 = vpop.f32.mrb[0].mxu0
        %3346 = vmatprep.mubr.f32.mxu0 0.0
        %3347 = vmatmul.mubr.f32.gmra.mrb[0].mxu0 %v3183
        %v3348 = vpop.f32.mrb[0].mxu0
        %v3349 = vadd.f32 0.0, %v3348
        %v3350 = vpop.f32.mrb[0].mxu0
        %3351 = vmatprep.mubr.f32.mxu0 0.0
        %3352 = vmatmul.mubr.f32.gmra.mrb[0].mxu0 %v3186
        %v3353 = vpop.f32.mrb[0].mxu0
        %v3354 = vadd.f32 0.0, %v3353
        %v3355 = vpop.f32.mrb[0].mxu0
        %3356 = vmatprep.mubr.f32.mxu0 0.0
        %3357 = vmatmul.mubr.f32.gmra.mrb[0].mxu0 %v3189
        %v3358 = vpop.f32.mrb[0].mxu0
        %v3359 = vadd.f32 0.0, %v3358
        %v3360 = vpop.f32.mrb[0].mxu0
        %3361 = vmatprep.mubr.f32.mxu0 0.0
        %3362 = vmatmul.mubr.f32.gmra.mrb[0].mxu0 %v3192
        %v3363 = vpop.f32.mrb[0].mxu0
        %v3364 = vadd.f32 0.0, %v3363
        %v3365 = vpop.f32.mrb[0].mxu0
        %3366 = vmatprep.mubr.f32.mxu0 0.0
        %3367 = vmatmul.mubr.f32.gmra.mrb[0].mxu0 %v3195
        %v3368 = vpop.f32.mrb[0].mxu0
        %v3369 = vadd.f32 0.0, %v3368
        %v3370 = vpop.f32.mrb[0].mxu0
        %3371 = vmatprep.mubr.f32.mxu0 0.0
        %3372 = vmatmul.mubr.f32.gmra.mrb[0].mxu0 %v3198
        %v3373 = vpop.f32.mrb[0].mxu0
        %v3374 = vadd.f32 0.0, %v3373
        %v3375 = vpop.f32.mrb[0].mxu0
        %3376 = vmatprep.mubr.f32.mxu0 0.0
        %3377 = vmatmul.mubr.f32.gmra.mrb[0].mxu0 %v3201
        %v3378 = vpop.f32.mrb[0].mxu0
        %v3379 = vadd.f32 0.0, %v3378
        %v3380 = vpop.f32.mrb[0].mxu0
        %3381 = vmatprep.mubr.f32.mxu0 0.0
        %3382 = vmatmul.mubr.f32.gmra.mrb[0].mxu0 %v3204
        %v3383 = vpop.f32.mrb[0].mxu0
        %v3384 = vadd.f32 0.0, %v3383
        %v3385 = vpop.f32.mrb[0].mxu0
        %3386 = vmatprep.mubr.f32.mxu0 0.0
        %3387 = vmatmul.mubr.f32.gmra.mrb[0].mxu0 %v3207
        %v3388 = vpop.f32.mrb[0].mxu0
        %v3389 = vadd.f32 0.0, %v3388
        %v3390 = vpop.f32.mrb[0].mxu0
        %3391 = vmatprep.mubr.f32.mxu0 0.0
        %3392 = vmatmul.mubr.f32.gmra.mrb[0].mxu0 %v3210
        %v3393 = vpop.f32.mrb[0].mxu0
        %v3394 = vadd.f32 0.0, %v3393
        %v3395 = vpop.f32.mrb[0].mxu0
        %3396 = vmatprep.mubr.f32.mxu0 0.0
        %3397 = vmatmul.mubr.f32.gmra.mrb[0].mxu0 %v3213
        %v3398 = vpop.f32.mrb[0].mxu0
        %v3399 = vadd.f32 0.0, %v3398
        %v3400 = vpop.f32.mrb[0].mxu0
        %3401 = vmatprep.mubr.f32.mxu0 0.0
        %3402 = vmatmul.mubr.f32.gmra.mrb[0].mxu0 %v3216
        %v3403 = vpop.f32.mrb[0].mxu0
        %v3404 = vadd.f32 0.0, %v3403
        %v3405 = vpop.f32.mrb[0].mxu0
        %3406 = vmatprep.mubr.f32.mxu0 0.0
        %3407 = vmatmul.mubr.f32.gmra.mrb[0].mxu0 %v3219
        %v3408 = vpop.f32.mrb[0].mxu0
        %v3409 = vadd.f32 0.0, %v3408
        %v3410 = vpop.f32.mrb[0].mxu0
        %3411 = vmatprep.mubr.f32.mxu0 0.0
        %3412 = vmatmul.mubr.f32.gmra.mrb[0].mxu0 %v3222
        %v3413 = vpop.f32.mrb[0].mxu0
        %v3414 = vadd.f32 0.0, %v3413
        %v3415 = vpop.f32.mrb[0].mxu0
        %3416 = vmatprep.mubr.f32.mxu0 0.0
        %3417 = vmatmul.mubr.f32.gmra.mrb[0].mxu0 %v3225
        %v3418 = vpop.f32.mrb[0].mxu0
        %v3419 = vadd.f32 0.0, %v3418
        %v3420 = vpop.f32.mrb[0].mxu0
        %3421 = vmatprep.mubr.f32.mxu0 0.0
        %3422 = vmatmul.mubr.f32.gmra.mrb[0].mxu0 %v3228
        %v3423 = vpop.f32.mrb[0].mxu0
        %v3424 = vadd.f32 0.0, %v3423
        %v3425 = vpop.f32.mrb[0].mxu0
        %3426 = vmatprep.mubr.f32.mxu0 0.0
        %3427 = vmatmul.mubr.f32.gmra.mrb[0].mxu0 %v3231
        %v3428 = vpop.f32.mrb[0].mxu0
        %v3429 = vadd.f32 0.0, %v3428
        %v3430 = vpop.f32.mrb[0].mxu0
        %3431 = vmatprep.mubr.f32.mxu0 0.0
        %3432 = vmatmul.mubr.f32.gmra.mrb[0].mxu0 %v3234
        %v3433 = vpop.f32.mrb[0].mxu0
        %v3434 = vadd.f32 0.0, %v3433
        %v3435 = vpop.f32.mrb[0].mxu0
        %3436 = vmatprep.mubr.f32.mxu0 0.0
        %3437 = vmatmul.mubr.f32.gmra.mrb[0].mxu0 %v3237
        %v3438 = vpop.f32.mrb[0].mxu0
        %v3439 = vadd.f32 0.0, %v3438
        %v3440 = vpop.f32.mrb[0].mxu0
        %3441 = vmatprep.mubr.f32.mxu0 0.0
        %3442 = vmatmul.mubr.f32.gmra.mrb[0].mxu0 %v3240
        %v3443 = vpop.f32.mrb[0].mxu0
        %v3444 = vadd.f32 0.0, %v3443
        %v3445 = vpop.f32.mrb[0].mxu0
        %3446 = vmatprep.mubr.f32.mxu0 0.0
        %3447 = vmatmul.mubr.f32.gmra.mrb[0].mxu0 %v3243
        %v3448 = vpop.f32.mrb[0].mxu0
        %v3449 = vadd.f32 0.0, %v3448
        %v3450 = vpop.f32.mrb[0].mxu0
        %3451 = vmatprep.mubr.f32.mxu0 0.0
        %3452 = vmatmul.mubr.f32.gmra.mrb[0].mxu0 %v3246
        %v3453 = vpop.f32.mrb[0].mxu0
        %v3454 = vadd.f32 0.0, %v3453
        %v3455 = vpop.f32.mrb[0].mxu0
        %3456 = vmatprep.mubr.f32.mxu0 0.0
        %3457 = vmatmul.mubr.f32.gmra.mrb[0].mxu0 %v3249
        %v3458 = vpop.f32.mrb[0].mxu0
        %v3459 = vadd.f32 0.0, %v3458
        %v3460 = vpop.f32.mrb[0].mxu0
        %3461 = vmatprep.mubr.f32.mxu0 0.0
        %3462 = vmatmul.mubr.f32.gmra.mrb[0].mxu0 %v3252
        %v3463 = vpop.f32.mrb[0].mxu0
        %v3464 = vadd.f32 0.0, %v3463
        %v3465 = vpop.f32.mrb[0].mxu0
        %3466 = vmatprep.mubr.f32.mxu0 0.0
        %3467 = vmatmul.mubr.f32.gmra.mrb[0].mxu0 %v3255
        %v3468 = vpop.f32.mrb[0].mxu0
        %v3469 = vadd.f32 0.0, %v3468
        %v3470 = vpop.f32.mrb[0].mxu0
        %3471 = vmatprep.mubr.f32.mxu0 0.0
        %3472 = vmatmul.mubr.f32.gmra.mrb[0].mxu0 %v3258
        %v3473 = vpop.f32.mrb[0].mxu0
        %v3474 = vadd.f32 0.0, %v3473
        %v3475 = vpop.f32.mrb[0].mxu0
        %3476 = vmatprep.mubr.f32.mxu0 0.0
        %3477 = vmatmul.mubr.f32.gmra.mrb[0].mxu0 %v3261
        %v3478 = vpop.f32.mrb[0].mxu0
        %v3479 = vadd.f32 0.0, %v3478
        %v3480 = vpop.f32.mrb[0].mxu0
        %3481 = vmatprep.mubr.f32.mxu0 0.0
        %3482 = vmatmul.mubr.f32.gmra.mrb[0].mxu0 %v3264
        %v3483 = vpop.f32.mrb[0].mxu0
        %v3484 = vadd.f32 0.0, %v3483
        %v3485 = vpop.f32.mrb[0].mxu0
        %3486 = vmatprep.mubr.f32.mxu0 0.0
        %3487 = vmatmul.mubr.f32.gmra.mrb[0].mxu0 %v3267
        %v3488 = vpop.f32.mrb[0].mxu0
        %v3489 = vadd.f32 0.0, %v3488
        %v3490 = vpop.f32.mrb[0].mxu0
        %3491 = vmatprep.mubr.f32.mxu0 0.0
        %3492 = vmatmul.mubr.f32.gmra.mrb[0].mxu0 %v3270
        %v3493 = vpop.f32.mrb[0].mxu0
        %v3494 = vadd.f32 0.0, %v3493
        %v3495 = vpop.f32.mrb[0].mxu0
        %3496 = vdwg.mxu0
        %3497 = vxpose.xlu0.b32.start [1/16] %v3339, 128
        %3498 = vxpose.xlu0.b32.cont [2/16] %v3344, 128
        %3499 = vxpose.xlu0.b32.cont [3/16] %v3349, 128
        %3500 = vxpose.xlu0.b32.cont [4/16] %v3354, 128
        %3501 = vxpose.xlu0.b32.cont [5/16] %v3359, 128
        %3502 = vxpose.xlu0.b32.cont [6/16] %v3364, 128
        %3503 = vxpose.xlu0.b32.cont [7/16] %v3369, 128
        %3504 = vxpose.xlu0.b32.cont [8/16] %v3374, 128
        %3505 = vxpose.xlu0.b32.cont [9/16] %v3379, 128
        %3506 = vxpose.xlu0.b32.cont [10/16] %v3384, 128
        %3507 = vxpose.xlu0.b32.cont [11/16] %v3389, 128
        %3508 = vxpose.xlu0.b32.cont [12/16] %v3394, 128
        %3509 = vxpose.xlu0.b32.cont [13/16] %v3399, 128
        %3510 = vxpose.xlu0.b32.cont [14/16] %v3404, 128
        %3511 = vxpose.xlu0.b32.cont [15/16] %v3409, 128
        %3512 = vxpose.xlu0.b32.end [16/16] %v3414, 128
        %v3513 = vpop.trf.xlu0
        %v3514 = vpop.trf.xlu0
        %v3515 = vpop.trf.xlu0
        %v3516 = vpop.trf.xlu0
        %v3517 = vpop.trf.xlu0
        %v3518 = vpop.trf.xlu0
        %v3519 = vpop.trf.xlu0
        %v3520 = vpop.trf.xlu0
        %v3521 = vpop.trf.xlu0
        %v3522 = vpop.trf.xlu0
        %v3523 = vpop.trf.xlu0
        %v3524 = vpop.trf.xlu0
        %v3525 = vpop.trf.xlu0
        %v3526 = vpop.trf.xlu0
        %v3527 = vpop.trf.xlu0
        %v3528 = vpop.trf.xlu0
        %3529 = vxpose.xlu0.b32.start [1/16] %v3419, 128
        %3530 = vxpose.xlu0.b32.cont [2/16] %v3424, 128
        %3531 = vxpose.xlu0.b32.cont [3/16] %v3429, 128
        %3532 = vxpose.xlu0.b32.cont [4/16] %v3434, 128
        %3533 = vxpose.xlu0.b32.cont [5/16] %v3439, 128
        %3534 = vxpose.xlu0.b32.cont [6/16] %v3444, 128
        %3535 = vxpose.xlu0.b32.cont [7/16] %v3449, 128
        %3536 = vxpose.xlu0.b32.cont [8/16] %v3454, 128
        %3537 = vxpose.xlu0.b32.cont [9/16] %v3459, 128
        %3538 = vxpose.xlu0.b32.cont [10/16] %v3464, 128
        %3539 = vxpose.xlu0.b32.cont [11/16] %v3469, 128
        %3540 = vxpose.xlu0.b32.cont [12/16] %v3474, 128
        %3541 = vxpose.xlu0.b32.cont [13/16] %v3479, 128
        %3542 = vxpose.xlu0.b32.cont [14/16] %v3484, 128
        %3543 = vxpose.xlu0.b32.cont [15/16] %v3489, 128
        %3544 = vxpose.xlu0.b32.end [16/16] %v3494, 128
        %v3545 = vpop.trf.xlu0
        %v3546 = vpop.trf.xlu0
        %v3547 = vpop.trf.xlu0
        %v3548 = vpop.trf.xlu0
        %v3549 = vpop.trf.xlu0
        %v3550 = vpop.trf.xlu0
        %v3551 = vpop.trf.xlu0
        %v3552 = vpop.trf.xlu0
        %v3553 = vpop.trf.xlu0
        %v3554 = vpop.trf.xlu0
        %v3555 = vpop.trf.xlu0
        %v3556 = vpop.trf.xlu0
        %v3557 = vpop.trf.xlu0
        %v3558 = vpop.trf.xlu0
        %v3559 = vpop.trf.xlu0
        %v3560 = vpop.trf.xlu0
        %3561 = vst [vmem:[%s326] sm:$0xff] %v3513
        %3562 = vst [vmem:[%s326 + $0x8] sm:$0xff] %v3545
        %3563 = vst [vmem:[%s326 + $0x10] sm:$0xff] %v3514
        %3564 = vst [vmem:[%s326 + $0x18] sm:$0xff] %v3546
        %3565 = vst [vmem:[%s326 + $0x20] sm:$0xff] %v3515
        %3566 = vst [vmem:[%s326 + $0x28] sm:$0xff] %v3547
        %3567 = vst [vmem:[%s326 + $0x30] sm:$0xff] %v3516
        %3568 = vst [vmem:[%s326 + $0x38] sm:$0xff] %v3548
        %s3569 = sand.u32 %s226, 1
        %s3570 = scalar_lea.sflag [#allocation5], %s3569
        %s3571 = sand.u32 %s226, 1
        %s3572 = smul.addr %s3571, 64
        %s3573 = scalar_lea.vmem [#allocation4], %s3572
        // Predicated region
        $region57: #{tpu_custom_call.1} parent=55 // pred_check
          %p3574 = pneg %p236
        $region58: #{tpu_custom_call.1} parent=55 // pred_check_branch
          %3576 = sbr.rel (%p3574) target = $region60
        $region59: #{tpu_custom_call.1} parent=55 // pred_region
          %s3578 = ssub.s32 1024, 1024
          %3579 = vsyncadd %s3570, %s3578
          %s3580 = smul.addr %s24, 8
          %s3581 = smul.addr %s3580, 128
          %s3582 = scalar_lea.hbm %s9, %s3581
          %s3583 = sshll.u32 %s3573, 4
          %s3584 = int_to_ptr.vmem [resolvable:$true] %s3583
          %3589 = dma.vmem_to_hbm [thread:$0]  %s3584, 1024, %s3582, %s3570, 256, 256, 16
        $region60: #{tpu_custom_call.1} parent=55 // pred_fallthru
          _
      $region56: #{tpu_custom_call.1} parent=5 // pred_fallthru
        _
      %p3590 = scmp.le.s32.totalorder 2, %s19
      // Predicated region
      $region61: #{tpu_custom_call.1} parent=5 // pred_check
        %p3591 = pneg %p3590
      $region62: #{tpu_custom_call.1} parent=5 // pred_check_branch
        %3593 = sbr.rel (%p3591) target = $region64
      $region63: #{tpu_custom_call.1} parent=5 // pred_region
        %s3594 = ssub.s32 %s19, 2
        // Predicated region
        $region65: #{tpu_custom_call.1} parent=63 // pred_check
          %p3595 = pneg %p242
        $region66: #{tpu_custom_call.1} parent=63 // pred_check_branch
          %3597 = sbr.rel (%p3595) target = $region68
        $region67: #{tpu_custom_call.1} parent=63 // pred_region
          %s3598 = sand.u32 %s227, 1
          %s3599 = scalar_lea.sflag [#allocation5], %s3598
          %s3600 = sand.u32 %s227, 1
          %s3601 = smul.addr %s3600, 64
          %s3602 = scalar_lea.vmem [#allocation4], %s3601
          %3603 = dma.done %s3599, 1024
        $region68: #{tpu_custom_call.1} parent=63 // pred_fallthru
          _
      $region64: #{tpu_custom_call.1} parent=5 // pred_fallthru
        _
    $region6: #{tpu_custom_call.1} parent=1 // loop_footer
      %s23 = sadd.s32 1, %s19
    $region7: #{tpu_custom_call.1} parent=1 // loop_footer_branch
      %18 = sbr.rel target = $region3
    $region8: #{tpu_custom_call.1} parent=1 // loop_exit
      _
    %3604 = vsyncpa [#allocation5], 1
    %s3605 = scalar_lea.sflag [#allocation5], 1
    %3606 = vsyncpa %s3605, 1

</llo_original>
